<compile_context>
chip_gen: v7x
topology: tpu7x:2x2x1
jax: 0.10.0
libtpu: 0.0.40
codegen_flags: <defaults>
</compile_context>

<pallas_src>
import functools

import jax
import jax.numpy as jnp
from jax import lax
from jax.experimental import pallas as pl
from jax.experimental.pallas import tpu as pltpu  # noqa: F401  (TPU backend)

PROTEIN_LEN = 16     # proteinLen  (= embedding vocab AND conv1 in-channels, per the module)
COMPOUND_LEN = 12    # compoundLen
EMBED_DIM = 32       # embeddingDim (must be > 21 so the protein conv stack has positive length)
BATCH = 2


def affinity_kernel(prot_ref, comp_ref,
                    pw1, pb1, pw2, pb2, pw3, pb3,
                    cw1, cb1, cw2, cb2, cw3, cb3,
                    fc1w, fc1b, fc2w, fc2b, fc3w, fc3b,
                    out_ref):
    B = prot_ref.shape[0]

    def conv_relu(x, w_ref, b_ref):
        # x: (Lin, Cin) f32, channels on lanes; w_ref: (K*Cin, Cout) bf16; b_ref: (1, Cout) f32.
        lin, cin = x.shape
        k = w_ref.shape[0] // cin
        lout = lin - k + 1
        # im2col: patch row l = [x[l+0,:] | x[l+1,:] | ... | x[l+k-1,:]]  -> (Lout, K*Cin)
        patches = jnp.concatenate([x[i:i + lout, :] for i in range(k)], axis=-1)
        acc = jnp.dot(patches.astype(jnp.bfloat16), w_ref[...],
                      preferred_element_type=jnp.float32)
        return jnp.maximum(acc + b_ref[...], 0.0)

    def branch(x, layers):
        for w_ref, b_ref in layers:
            x = conv_relu(x, w_ref, b_ref)
        return jnp.mean(x, axis=0, keepdims=True)            # temporal mean -> (1, 128)

    rows = []
    for b in range(B):                                       # static unroll (B is tiny)
        pf = branch(prot_ref[b], [(pw1, pb1), (pw2, pb2), (pw3, pb3)])
        cf = branch(comp_ref[b], [(cw1, cb1), (cw2, cb2), (cw3, cb3)])
        rows.append(jnp.concatenate([pf, cf], axis=-1))      # torch.cat -> (1, 256)
    feat = jnp.concatenate(rows, axis=0)                     # (B, 256), batch on sublanes

    h1 = jnp.maximum(jnp.dot(feat.astype(jnp.bfloat16), fc1w[...],
                             preferred_element_type=jnp.float32) + fc1b[...], 0.0)
    h2 = jnp.maximum(jnp.dot(h1.astype(jnp.bfloat16), fc2w[...],
                             preferred_element_type=jnp.float32) + fc2b[...], 0.0)
    # fc3 is a 128 -> 1 projection: VPU multiply + lane reduce instead of an N=1 matvec.
    y = jnp.sum(h2 * fc3w[...], axis=-1, keepdims=True) + fc3b[...]
    out_ref[...] = y


def affinity_predict(protein_idx, compound_idx, params):
    B = protein_idx.shape[0]
    # Embedding gather (plain-JAX glue). PyTorch treats the (B, L, E) embedding as NCW
    # (channels = token position, width = embedding dim); transpose so channels sit on the
    # lane (last) axis: (B, W=E, C=L).
    prot_x = jnp.transpose(params["prot_emb"][protein_idx], (0, 2, 1)).astype(jnp.float32)
    comp_x = jnp.transpose(params["comp_emb"][compound_idx], (0, 2, 1)).astype(jnp.float32)

    def conv_pack(w, b):
        # PyTorch Conv1d weight (Cout, Cin, K) -> im2col weight (K*Cin, Cout), bf16 for MXU.
        cout, cin, k = w.shape
        wt = jnp.transpose(w, (2, 1, 0)).reshape(k * cin, cout).astype(jnp.bfloat16)
        return wt, b.reshape(1, -1).astype(jnp.float32)

    def fc_pack(w, b):
        return jnp.transpose(w).astype(jnp.bfloat16), b.reshape(1, -1).astype(jnp.float32)

    pw1, pb1 = conv_pack(params["p_conv1_w"], params["p_conv1_b"])
    pw2, pb2 = conv_pack(params["p_conv2_w"], params["p_conv2_b"])
    pw3, pb3 = conv_pack(params["p_conv3_w"], params["p_conv3_b"])
    cw1, cb1 = conv_pack(params["c_conv1_w"], params["c_conv1_b"])
    cw2, cb2 = conv_pack(params["c_conv2_w"], params["c_conv2_b"])
    cw3, cb3 = conv_pack(params["c_conv3_w"], params["c_conv3_b"])
    fc1w, fc1b = fc_pack(params["fc1_w"], params["fc1_b"])   # (256, 256), (1, 256)
    fc2w, fc2b = fc_pack(params["fc2_w"], params["fc2_b"])   # (256, 128), (1, 128)
    fc3w = params["fc3_w"].astype(jnp.float32)               # (1, 128) row, used on the VPU
    fc3b = params["fc3_b"].reshape(1, 1).astype(jnp.float32)

    # Gridless call: whole arrays live in VMEM (total footprint ~0.6 MiB, fine on v5e/v6e/v7x),
    # weights are streamed in once with no double-buffering and no per-batch grid overhead.
    return pl.pallas_call(
        affinity_kernel,
        out_shape=jax.ShapeDtypeStruct((B, 1), jnp.float32),
    )(prot_x, comp_x,
      pw1, pb1, pw2, pb2, pw3, pb3,
      cw1, cb1, cw2, cb2, cw3, cb3,
      fc1w, fc1b, fc2w, fc2b, fc3w, fc3b)


def init_params(key):
    ks = iter(jax.random.split(key, 32))

    def w(shape, scale=0.1):
        return scale * jax.random.normal(next(ks), shape, jnp.float32)

    return {
        "prot_emb": w((PROTEIN_LEN, EMBED_DIM), 1.0),
        "comp_emb": w((COMPOUND_LEN, EMBED_DIM), 1.0),
        # ProteinNet convs: Conv1d(P,32,4), Conv1d(32,64,8), Conv1d(64,128,12)
        "p_conv1_w": w((32, PROTEIN_LEN, 4)),  "p_conv1_b": w((32,)),
        "p_conv2_w": w((64, 32, 8)),           "p_conv2_b": w((64,)),
        "p_conv3_w": w((128, 64, 12)),         "p_conv3_b": w((128,)),
        # CompoundNet convs: Conv1d(C,32,4), Conv1d(32,64,6), Conv1d(64,128,8)
        "c_conv1_w": w((32, COMPOUND_LEN, 4)), "c_conv1_b": w((32,)),
        "c_conv2_w": w((64, 32, 6)),           "c_conv2_b": w((64,)),
        "c_conv3_w": w((128, 64, 8)),          "c_conv3_b": w((128,)),
        # FC head
        "fc1_w": w((256, 256)), "fc1_b": w((256,)),
        "fc2_w": w((128, 256)), "fc2_b": w((128,)),
        "fc3_w": w((1, 128)),   "fc3_b": w((1,)),
    }


def reference(protein_idx, compound_idx, params):
    """Pure-JAX f32 reference with PyTorch semantics (dropout=identity)."""
    def conv1d_relu(x, w, b):
        K = w.shape[2]
        Lout = x.shape[2] - K + 1
        out = jnp.zeros((x.shape[0], w.shape[0], Lout), jnp.float32) + b[None, :, None]
        for k in range(K):
            out = out + jnp.einsum("oc,bcl->bol", w[:, :, k], x[:, :, k:k + Lout],
                                   precision=lax.Precision.HIGHEST)
        return jnp.maximum(out, 0.0)

    def branch(idx, table, convs):
        x = table[idx].astype(jnp.float32)          # (B, L, E) used as (N, C, W)
        for wb in convs:
            x = conv1d_relu(x, *wb)
        return x.mean(axis=2)

    pfeat = branch(protein_idx, params["prot_emb"],
                   [(params["p_conv1_w"], params["p_conv1_b"]),
                    (params["p_conv2_w"], params["p_conv2_b"]),
                    (params["p_conv3_w"], params["p_conv3_b"])])
    cfeat = branch(compound_idx, params["comp_emb"],
                   [(params["c_conv1_w"], params["c_conv1_b"]),
                    (params["c_conv2_w"], params["c_conv2_b"]),
                    (params["c_conv3_w"], params["c_conv3_b"])])
    feat = jnp.concatenate([pfeat, cfeat], axis=1)
    mm = functools.partial(jnp.matmul, precision=lax.Precision.HIGHEST)
    h = jnp.maximum(mm(feat, params["fc1_w"].T) + params["fc1_b"], 0.0)
    h = jnp.maximum(mm(h, params["fc2_w"].T) + params["fc2_b"], 0.0)
    return mm(h, params["fc3_w"].T) + params["fc3_b"]


if __name__ == "__main__":
    key = jax.random.PRNGKey(0)
    kp, kc, kw = jax.random.split(key, 3)
    params = init_params(kw)
    protein = jax.random.randint(kp, (BATCH, PROTEIN_LEN), 0, PROTEIN_LEN, jnp.int32)
    compound = jax.random.randint(kc, (BATCH, COMPOUND_LEN), 0, COMPOUND_LEN, jnp.int32)

    out = jax.jit(affinity_predict)(protein, compound, params)
    out = jax.block_until_ready(out)

    ref = reference(protein, compound, params)
    assert out.shape == (BATCH, 1), out.shape
    # bf16 MXU operands with f32 accumulation -> slightly looser tolerance than pure f32.
    assert jnp.allclose(out, ref, atol=5e-2, rtol=5e-2), (out, ref)
    print("KERNEL_OK")
</pallas_src>

<mosaic_0001>
module attributes {stable_mosaic.version = 11 : i64} {
  func.func @affinity_kernel(%arg0: memref<2x32x16xf32, #tpu.memory_space<vmem>>, %arg1: memref<2x32x12xf32, #tpu.memory_space<vmem>>, %arg2: memref<64x32xbf16, #tpu.memory_space<vmem>>, %arg3: memref<1x32xf32, #tpu.memory_space<vmem>>, %arg4: memref<256x64xbf16, #tpu.memory_space<vmem>>, %arg5: memref<1x64xf32, #tpu.memory_space<vmem>>, %arg6: memref<768x128xbf16, #tpu.memory_space<vmem>>, %arg7: memref<1x128xf32, #tpu.memory_space<vmem>>, %arg8: memref<48x32xbf16, #tpu.memory_space<vmem>>, %arg9: memref<1x32xf32, #tpu.memory_space<vmem>>, %arg10: memref<192x64xbf16, #tpu.memory_space<vmem>>, %arg11: memref<1x64xf32, #tpu.memory_space<vmem>>, %arg12: memref<512x128xbf16, #tpu.memory_space<vmem>>, %arg13: memref<1x128xf32, #tpu.memory_space<vmem>>, %arg14: memref<256x256xbf16, #tpu.memory_space<vmem>>, %arg15: memref<1x256xf32, #tpu.memory_space<vmem>>, %arg16: memref<256x128xbf16, #tpu.memory_space<vmem>>, %arg17: memref<1x128xf32, #tpu.memory_space<vmem>>, %arg18: memref<1x128xf32, #tpu.memory_space<vmem>>, %arg19: memref<1x1xf32, #tpu.memory_space<vmem>>, %arg20: memref<2x1xf32, #tpu.memory_space<vmem>>) attributes {dimension_semantics = [], scalar_prefetch = 0 : i64, scratch_operands = 0 : i64, tpu.core_type = #tpu.core_type<tc>} {
    %c0 = arith.constant 0 : index
    %c0_0 = arith.constant 0 : index
    %c0_1 = arith.constant 0 : index
    %0 = vector.load %arg0[%c0, %c0_0, %c0_1] : memref<2x32x16xf32, #tpu.memory_space<vmem>>, vector<1x32x16xf32>
    %1 = vector.shape_cast %0 : vector<1x32x16xf32> to vector<32x16xf32>
    %2 = vector.extract_strided_slice %1 {offsets = [0, 0], sizes = [29, 16], strides = [1, 1]} : vector<32x16xf32> to vector<29x16xf32>
    %3 = vector.extract_strided_slice %1 {offsets = [1, 0], sizes = [29, 16], strides = [1, 1]} : vector<32x16xf32> to vector<29x16xf32>
    %4 = vector.extract_strided_slice %1 {offsets = [2, 0], sizes = [29, 16], strides = [1, 1]} : vector<32x16xf32> to vector<29x16xf32>
    %5 = vector.extract_strided_slice %1 {offsets = [3, 0], sizes = [29, 16], strides = [1, 1]} : vector<32x16xf32> to vector<29x16xf32>
    %6 = tpu.concatenate %2, %3, %4, %5 in 1 : vector<29x16xf32>, vector<29x16xf32>, vector<29x16xf32>, vector<29x16xf32> -> vector<29x64xf32>
    %7 = arith.truncf %6 : vector<29x64xf32> to vector<29x64xbf16>
    %c0_2 = arith.constant 0 : index
    %c0_3 = arith.constant 0 : index
    %8 = vector.load %arg2[%c0_2, %c0_3] : memref<64x32xbf16, #tpu.memory_space<vmem>>, vector<64x32xbf16>
    %cst = arith.constant dense<0.000000e+00> : vector<29x32xf32>
    %9 = tpu.matmul %7, %8, %cst {dimension_numbers = #tpu.dot_dimension_numbers<[1], [0], [0], [1], [0, 0, 1, 1], [], []>} : vector<29x64xbf16>, vector<64x32xbf16>, vector<29x32xf32> -> vector<29x32xf32>
    %c0_4 = arith.constant 0 : index
    %c0_5 = arith.constant 0 : index
    %10 = vector.load %arg3[%c0_4, %c0_5] : memref<1x32xf32, #tpu.memory_space<vmem>>, vector<1x32xf32>
    %11 = vector.broadcast %10 : vector<1x32xf32> to vector<29x32xf32>
    %12 = arith.addf %9, %11 : vector<29x32xf32>
    %cst_6 = arith.constant 0.000000e+00 : f32
    %13 = vector.broadcast %cst_6 : f32 to vector<29x32xf32>
    %14 = arith.maximumf %12, %13 : vector<29x32xf32>
    %15 = vector.extract_strided_slice %14 {offsets = [0, 0], sizes = [22, 32], strides = [1, 1]} : vector<29x32xf32> to vector<22x32xf32>
    %16 = vector.extract_strided_slice %14 {offsets = [1, 0], sizes = [22, 32], strides = [1, 1]} : vector<29x32xf32> to vector<22x32xf32>
    %17 = vector.extract_strided_slice %14 {offsets = [2, 0], sizes = [22, 32], strides = [1, 1]} : vector<29x32xf32> to vector<22x32xf32>
    %18 = vector.extract_strided_slice %14 {offsets = [3, 0], sizes = [22, 32], strides = [1, 1]} : vector<29x32xf32> to vector<22x32xf32>
    %19 = vector.extract_strided_slice %14 {offsets = [4, 0], sizes = [22, 32], strides = [1, 1]} : vector<29x32xf32> to vector<22x32xf32>
    %20 = vector.extract_strided_slice %14 {offsets = [5, 0], sizes = [22, 32], strides = [1, 1]} : vector<29x32xf32> to vector<22x32xf32>
    %21 = vector.extract_strided_slice %14 {offsets = [6, 0], sizes = [22, 32], strides = [1, 1]} : vector<29x32xf32> to vector<22x32xf32>
    %22 = vector.extract_strided_slice %14 {offsets = [7, 0], sizes = [22, 32], strides = [1, 1]} : vector<29x32xf32> to vector<22x32xf32>
    %23 = tpu.concatenate %15, %16, %17, %18, %19, %20, %21, %22 in 1 : vector<22x32xf32>, vector<22x32xf32>, vector<22x32xf32>, vector<22x32xf32>, vector<22x32xf32>, vector<22x32xf32>, vector<22x32xf32>, vector<22x32xf32> -> vector<22x256xf32>
    %24 = arith.truncf %23 : vector<22x256xf32> to vector<22x256xbf16>
    %c0_7 = arith.constant 0 : index
    %c0_8 = arith.constant 0 : index
    %25 = vector.load %arg4[%c0_7, %c0_8] : memref<256x64xbf16, #tpu.memory_space<vmem>>, vector<256x64xbf16>
    %cst_9 = arith.constant dense<0.000000e+00> : vector<22x64xf32>
    %26 = tpu.matmul %24, %25, %cst_9 {dimension_numbers = #tpu.dot_dimension_numbers<[1], [0], [0], [1], [0, 0, 1, 1], [], []>} : vector<22x256xbf16>, vector<256x64xbf16>, vector<22x64xf32> -> vector<22x64xf32>
    %c0_10 = arith.constant 0 : index
    %c0_11 = arith.constant 0 : index
    %27 = vector.load %arg5[%c0_10, %c0_11] : memref<1x64xf32, #tpu.memory_space<vmem>>, vector<1x64xf32>
    %28 = vector.broadcast %27 : vector<1x64xf32> to vector<22x64xf32>
    %29 = arith.addf %26, %28 : vector<22x64xf32>
    %cst_12 = arith.constant 0.000000e+00 : f32
    %30 = vector.broadcast %cst_12 : f32 to vector<22x64xf32>
    %31 = arith.maximumf %29, %30 : vector<22x64xf32>
    %32 = vector.extract_strided_slice %31 {offsets = [0, 0], sizes = [11, 64], strides = [1, 1]} : vector<22x64xf32> to vector<11x64xf32>
    %33 = vector.extract_strided_slice %31 {offsets = [1, 0], sizes = [11, 64], strides = [1, 1]} : vector<22x64xf32> to vector<11x64xf32>
    %34 = vector.extract_strided_slice %31 {offsets = [2, 0], sizes = [11, 64], strides = [1, 1]} : vector<22x64xf32> to vector<11x64xf32>
    %35 = vector.extract_strided_slice %31 {offsets = [3, 0], sizes = [11, 64], strides = [1, 1]} : vector<22x64xf32> to vector<11x64xf32>
    %36 = vector.extract_strided_slice %31 {offsets = [4, 0], sizes = [11, 64], strides = [1, 1]} : vector<22x64xf32> to vector<11x64xf32>
    %37 = vector.extract_strided_slice %31 {offsets = [5, 0], sizes = [11, 64], strides = [1, 1]} : vector<22x64xf32> to vector<11x64xf32>
    %38 = vector.extract_strided_slice %31 {offsets = [6, 0], sizes = [11, 64], strides = [1, 1]} : vector<22x64xf32> to vector<11x64xf32>
    %39 = vector.extract_strided_slice %31 {offsets = [7, 0], sizes = [11, 64], strides = [1, 1]} : vector<22x64xf32> to vector<11x64xf32>
    %40 = vector.extract_strided_slice %31 {offsets = [8, 0], sizes = [11, 64], strides = [1, 1]} : vector<22x64xf32> to vector<11x64xf32>
    %41 = vector.extract_strided_slice %31 {offsets = [9, 0], sizes = [11, 64], strides = [1, 1]} : vector<22x64xf32> to vector<11x64xf32>
    %42 = vector.extract_strided_slice %31 {offsets = [10, 0], sizes = [11, 64], strides = [1, 1]} : vector<22x64xf32> to vector<11x64xf32>
    %43 = vector.extract_strided_slice %31 {offsets = [11, 0], sizes = [11, 64], strides = [1, 1]} : vector<22x64xf32> to vector<11x64xf32>
    %44 = tpu.concatenate %32, %33, %34, %35, %36, %37, %38, %39, %40, %41, %42, %43 in 1 : vector<11x64xf32>, vector<11x64xf32>, vector<11x64xf32>, vector<11x64xf32>, vector<11x64xf32>, vector<11x64xf32>, vector<11x64xf32>, vector<11x64xf32>, vector<11x64xf32>, vector<11x64xf32>, vector<11x64xf32>, vector<11x64xf32> -> vector<11x768xf32>
    %45 = arith.truncf %44 : vector<11x768xf32> to vector<11x768xbf16>
    %c0_13 = arith.constant 0 : index
    %c0_14 = arith.constant 0 : index
    %46 = vector.load %arg6[%c0_13, %c0_14] : memref<768x128xbf16, #tpu.memory_space<vmem>>, vector<768x128xbf16>
    %cst_15 = arith.constant dense<0.000000e+00> : vector<11x128xf32>
    %47 = tpu.matmul %45, %46, %cst_15 {dimension_numbers = #tpu.dot_dimension_numbers<[1], [0], [0], [1], [0, 0, 1, 1], [], []>} : vector<11x768xbf16>, vector<768x128xbf16>, vector<11x128xf32> -> vector<11x128xf32>
    %c0_16 = arith.constant 0 : index
    %c0_17 = arith.constant 0 : index
    %48 = vector.load %arg7[%c0_16, %c0_17] : memref<1x128xf32, #tpu.memory_space<vmem>>, vector<1x128xf32>
    %49 = vector.broadcast %48 : vector<1x128xf32> to vector<11x128xf32>
    %50 = arith.addf %47, %49 : vector<11x128xf32>
    %cst_18 = arith.constant 0.000000e+00 : f32
    %51 = vector.broadcast %cst_18 : f32 to vector<11x128xf32>
    %52 = arith.maximumf %50, %51 : vector<11x128xf32>
    %cst_19 = arith.constant dense<0.000000e+00> : vector<128xf32>
    %53 = vector.multi_reduction <add>, %52, %cst_19 [0] : vector<11x128xf32> to vector<128xf32>
    %54 = vector.shape_cast %53 : vector<128xf32> to vector<1x128xf32>
    %cst_20 = arith.constant 1.100000e+01 : f32
    %55 = vector.broadcast %cst_20 : f32 to vector<1x128xf32>
    %56 = arith.divf %54, %55 : vector<1x128xf32>
    %c0_21 = arith.constant 0 : index
    %c0_22 = arith.constant 0 : index
    %c0_23 = arith.constant 0 : index
    %57 = vector.load %arg1[%c0_21, %c0_22, %c0_23] : memref<2x32x12xf32, #tpu.memory_space<vmem>>, vector<1x32x12xf32>
    %58 = vector.shape_cast %57 : vector<1x32x12xf32> to vector<32x12xf32>
    %59 = vector.extract_strided_slice %58 {offsets = [0, 0], sizes = [29, 12], strides = [1, 1]} : vector<32x12xf32> to vector<29x12xf32>
    %60 = vector.extract_strided_slice %58 {offsets = [1, 0], sizes = [29, 12], strides = [1, 1]} : vector<32x12xf32> to vector<29x12xf32>
    %61 = vector.extract_strided_slice %58 {offsets = [2, 0], sizes = [29, 12], strides = [1, 1]} : vector<32x12xf32> to vector<29x12xf32>
    %62 = vector.extract_strided_slice %58 {offsets = [3, 0], sizes = [29, 12], strides = [1, 1]} : vector<32x12xf32> to vector<29x12xf32>
    %63 = tpu.concatenate %59, %60, %61, %62 in 1 : vector<29x12xf32>, vector<29x12xf32>, vector<29x12xf32>, vector<29x12xf32> -> vector<29x48xf32>
    %64 = arith.truncf %63 : vector<29x48xf32> to vector<29x48xbf16>
    %c0_24 = arith.constant 0 : index
    %c0_25 = arith.constant 0 : index
    %65 = vector.load %arg8[%c0_24, %c0_25] : memref<48x32xbf16, #tpu.memory_space<vmem>>, vector<48x32xbf16>
    %cst_26 = arith.constant dense<0.000000e+00> : vector<29x32xf32>
    %66 = tpu.matmul %64, %65, %cst_26 {dimension_numbers = #tpu.dot_dimension_numbers<[1], [0], [0], [1], [0, 0, 1, 1], [], []>} : vector<29x48xbf16>, vector<48x32xbf16>, vector<29x32xf32> -> vector<29x32xf32>
    %c0_27 = arith.constant 0 : index
    %c0_28 = arith.constant 0 : index
    %67 = vector.load %arg9[%c0_27, %c0_28] : memref<1x32xf32, #tpu.memory_space<vmem>>, vector<1x32xf32>
    %68 = vector.broadcast %67 : vector<1x32xf32> to vector<29x32xf32>
    %69 = arith.addf %66, %68 : vector<29x32xf32>
    %cst_29 = arith.constant 0.000000e+00 : f32
    %70 = vector.broadcast %cst_29 : f32 to vector<29x32xf32>
    %71 = arith.maximumf %69, %70 : vector<29x32xf32>
    %72 = vector.extract_strided_slice %71 {offsets = [0, 0], sizes = [24, 32], strides = [1, 1]} : vector<29x32xf32> to vector<24x32xf32>
    %73 = vector.extract_strided_slice %71 {offsets = [1, 0], sizes = [24, 32], strides = [1, 1]} : vector<29x32xf32> to vector<24x32xf32>
    %74 = vector.extract_strided_slice %71 {offsets = [2, 0], sizes = [24, 32], strides = [1, 1]} : vector<29x32xf32> to vector<24x32xf32>
    %75 = vector.extract_strided_slice %71 {offsets = [3, 0], sizes = [24, 32], strides = [1, 1]} : vector<29x32xf32> to vector<24x32xf32>
    %76 = vector.extract_strided_slice %71 {offsets = [4, 0], sizes = [24, 32], strides = [1, 1]} : vector<29x32xf32> to vector<24x32xf32>
    %77 = vector.extract_strided_slice %71 {offsets = [5, 0], sizes = [24, 32], strides = [1, 1]} : vector<29x32xf32> to vector<24x32xf32>
    %78 = tpu.concatenate %72, %73, %74, %75, %76, %77 in 1 : vector<24x32xf32>, vector<24x32xf32>, vector<24x32xf32>, vector<24x32xf32>, vector<24x32xf32>, vector<24x32xf32> -> vector<24x192xf32>
    %79 = arith.truncf %78 : vector<24x192xf32> to vector<24x192xbf16>
    %c0_30 = arith.constant 0 : index
    %c0_31 = arith.constant 0 : index
    %80 = vector.load %arg10[%c0_30, %c0_31] : memref<192x64xbf16, #tpu.memory_space<vmem>>, vector<192x64xbf16>
    %cst_32 = arith.constant dense<0.000000e+00> : vector<24x64xf32>
    %81 = tpu.matmul %79, %80, %cst_32 {dimension_numbers = #tpu.dot_dimension_numbers<[1], [0], [0], [1], [0, 0, 1, 1], [], []>} : vector<24x192xbf16>, vector<192x64xbf16>, vector<24x64xf32> -> vector<24x64xf32>
    %c0_33 = arith.constant 0 : index
    %c0_34 = arith.constant 0 : index
    %82 = vector.load %arg11[%c0_33, %c0_34] : memref<1x64xf32, #tpu.memory_space<vmem>>, vector<1x64xf32>
    %83 = vector.broadcast %82 : vector<1x64xf32> to vector<24x64xf32>
    %84 = arith.addf %81, %83 : vector<24x64xf32>
    %cst_35 = arith.constant 0.000000e+00 : f32
    %85 = vector.broadcast %cst_35 : f32 to vector<24x64xf32>
    %86 = arith.maximumf %84, %85 : vector<24x64xf32>
    %87 = vector.extract_strided_slice %86 {offsets = [0, 0], sizes = [17, 64], strides = [1, 1]} : vector<24x64xf32> to vector<17x64xf32>
    %88 = vector.extract_strided_slice %86 {offsets = [1, 0], sizes = [17, 64], strides = [1, 1]} : vector<24x64xf32> to vector<17x64xf32>
    %89 = vector.extract_strided_slice %86 {offsets = [2, 0], sizes = [17, 64], strides = [1, 1]} : vector<24x64xf32> to vector<17x64xf32>
    %90 = vector.extract_strided_slice %86 {offsets = [3, 0], sizes = [17, 64], strides = [1, 1]} : vector<24x64xf32> to vector<17x64xf32>
    %91 = vector.extract_strided_slice %86 {offsets = [4, 0], sizes = [17, 64], strides = [1, 1]} : vector<24x64xf32> to vector<17x64xf32>
    %92 = vector.extract_strided_slice %86 {offsets = [5, 0], sizes = [17, 64], strides = [1, 1]} : vector<24x64xf32> to vector<17x64xf32>
    %93 = vector.extract_strided_slice %86 {offsets = [6, 0], sizes = [17, 64], strides = [1, 1]} : vector<24x64xf32> to vector<17x64xf32>
    %94 = vector.extract_strided_slice %86 {offsets = [7, 0], sizes = [17, 64], strides = [1, 1]} : vector<24x64xf32> to vector<17x64xf32>
    %95 = tpu.concatenate %87, %88, %89, %90, %91, %92, %93, %94 in 1 : vector<17x64xf32>, vector<17x64xf32>, vector<17x64xf32>, vector<17x64xf32>, vector<17x64xf32>, vector<17x64xf32>, vector<17x64xf32>, vector<17x64xf32> -> vector<17x512xf32>
    %96 = arith.truncf %95 : vector<17x512xf32> to vector<17x512xbf16>
    %c0_36 = arith.constant 0 : index
    %c0_37 = arith.constant 0 : index
    %97 = vector.load %arg12[%c0_36, %c0_37] : memref<512x128xbf16, #tpu.memory_space<vmem>>, vector<512x128xbf16>
    %cst_38 = arith.constant dense<0.000000e+00> : vector<17x128xf32>
    %98 = tpu.matmul %96, %97, %cst_38 {dimension_numbers = #tpu.dot_dimension_numbers<[1], [0], [0], [1], [0, 0, 1, 1], [], []>} : vector<17x512xbf16>, vector<512x128xbf16>, vector<17x128xf32> -> vector<17x128xf32>
    %c0_39 = arith.constant 0 : index
    %c0_40 = arith.constant 0 : index
    %99 = vector.load %arg13[%c0_39, %c0_40] : memref<1x128xf32, #tpu.memory_space<vmem>>, vector<1x128xf32>
    %100 = vector.broadcast %99 : vector<1x128xf32> to vector<17x128xf32>
    %101 = arith.addf %98, %100 : vector<17x128xf32>
    %cst_41 = arith.constant 0.000000e+00 : f32
    %102 = vector.broadcast %cst_41 : f32 to vector<17x128xf32>
    %103 = arith.maximumf %101, %102 : vector<17x128xf32>
    %cst_42 = arith.constant dense<0.000000e+00> : vector<128xf32>
    %104 = vector.multi_reduction <add>, %103, %cst_42 [0] : vector<17x128xf32> to vector<128xf32>
    %105 = vector.shape_cast %104 : vector<128xf32> to vector<1x128xf32>
    %cst_43 = arith.constant 1.700000e+01 : f32
    %106 = vector.broadcast %cst_43 : f32 to vector<1x128xf32>
    %107 = arith.divf %105, %106 : vector<1x128xf32>
    %108 = tpu.concatenate %56, %107 in 1 : vector<1x128xf32>, vector<1x128xf32> -> vector<1x256xf32>
    %c1 = arith.constant 1 : index
    %c0_44 = arith.constant 0 : index
    %c0_45 = arith.constant 0 : index
    %109 = vector.load %arg0[%c1, %c0_44, %c0_45] : memref<2x32x16xf32, #tpu.memory_space<vmem>>, vector<1x32x16xf32>
    %110 = vector.shape_cast %109 : vector<1x32x16xf32> to vector<32x16xf32>
    %111 = vector.extract_strided_slice %110 {offsets = [0, 0], sizes = [29, 16], strides = [1, 1]} : vector<32x16xf32> to vector<29x16xf32>
    %112 = vector.extract_strided_slice %110 {offsets = [1, 0], sizes = [29, 16], strides = [1, 1]} : vector<32x16xf32> to vector<29x16xf32>
    %113 = vector.extract_strided_slice %110 {offsets = [2, 0], sizes = [29, 16], strides = [1, 1]} : vector<32x16xf32> to vector<29x16xf32>
    %114 = vector.extract_strided_slice %110 {offsets = [3, 0], sizes = [29, 16], strides = [1, 1]} : vector<32x16xf32> to vector<29x16xf32>
    %115 = tpu.concatenate %111, %112, %113, %114 in 1 : vector<29x16xf32>, vector<29x16xf32>, vector<29x16xf32>, vector<29x16xf32> -> vector<29x64xf32>
    %116 = arith.truncf %115 : vector<29x64xf32> to vector<29x64xbf16>
    %c0_46 = arith.constant 0 : index
    %c0_47 = arith.constant 0 : index
    %117 = vector.load %arg2[%c0_46, %c0_47] : memref<64x32xbf16, #tpu.memory_space<vmem>>, vector<64x32xbf16>
    %cst_48 = arith.constant dense<0.000000e+00> : vector<29x32xf32>
    %118 = tpu.matmul %116, %117, %cst_48 {dimension_numbers = #tpu.dot_dimension_numbers<[1], [0], [0], [1], [0, 0, 1, 1], [], []>} : vector<29x64xbf16>, vector<64x32xbf16>, vector<29x32xf32> -> vector<29x32xf32>
    %c0_49 = arith.constant 0 : index
    %c0_50 = arith.constant 0 : index
    %119 = vector.load %arg3[%c0_49, %c0_50] : memref<1x32xf32, #tpu.memory_space<vmem>>, vector<1x32xf32>
    %120 = vector.broadcast %119 : vector<1x32xf32> to vector<29x32xf32>
    %121 = arith.addf %118, %120 : vector<29x32xf32>
    %cst_51 = arith.constant 0.000000e+00 : f32
    %122 = vector.broadcast %cst_51 : f32 to vector<29x32xf32>
    %123 = arith.maximumf %121, %122 : vector<29x32xf32>
    %124 = vector.extract_strided_slice %123 {offsets = [0, 0], sizes = [22, 32], strides = [1, 1]} : vector<29x32xf32> to vector<22x32xf32>
    %125 = vector.extract_strided_slice %123 {offsets = [1, 0], sizes = [22, 32], strides = [1, 1]} : vector<29x32xf32> to vector<22x32xf32>
    %126 = vector.extract_strided_slice %123 {offsets = [2, 0], sizes = [22, 32], strides = [1, 1]} : vector<29x32xf32> to vector<22x32xf32>
    %127 = vector.extract_strided_slice %123 {offsets = [3, 0], sizes = [22, 32], strides = [1, 1]} : vector<29x32xf32> to vector<22x32xf32>
    %128 = vector.extract_strided_slice %123 {offsets = [4, 0], sizes = [22, 32], strides = [1, 1]} : vector<29x32xf32> to vector<22x32xf32>
    %129 = vector.extract_strided_slice %123 {offsets = [5, 0], sizes = [22, 32], strides = [1, 1]} : vector<29x32xf32> to vector<22x32xf32>
    %130 = vector.extract_strided_slice %123 {offsets = [6, 0], sizes = [22, 32], strides = [1, 1]} : vector<29x32xf32> to vector<22x32xf32>
    %131 = vector.extract_strided_slice %123 {offsets = [7, 0], sizes = [22, 32], strides = [1, 1]} : vector<29x32xf32> to vector<22x32xf32>
    %132 = tpu.concatenate %124, %125, %126, %127, %128, %129, %130, %131 in 1 : vector<22x32xf32>, vector<22x32xf32>, vector<22x32xf32>, vector<22x32xf32>, vector<22x32xf32>, vector<22x32xf32>, vector<22x32xf32>, vector<22x32xf32> -> vector<22x256xf32>
    %133 = arith.truncf %132 : vector<22x256xf32> to vector<22x256xbf16>
    %c0_52 = arith.constant 0 : index
    %c0_53 = arith.constant 0 : index
    %134 = vector.load %arg4[%c0_52, %c0_53] : memref<256x64xbf16, #tpu.memory_space<vmem>>, vector<256x64xbf16>
    %cst_54 = arith.constant dense<0.000000e+00> : vector<22x64xf32>
    %135 = tpu.matmul %133, %134, %cst_54 {dimension_numbers = #tpu.dot_dimension_numbers<[1], [0], [0], [1], [0, 0, 1, 1], [], []>} : vector<22x256xbf16>, vector<256x64xbf16>, vector<22x64xf32> -> vector<22x64xf32>
    %c0_55 = arith.constant 0 : index
    %c0_56 = arith.constant 0 : index
    %136 = vector.load %arg5[%c0_55, %c0_56] : memref<1x64xf32, #tpu.memory_space<vmem>>, vector<1x64xf32>
    %137 = vector.broadcast %136 : vector<1x64xf32> to vector<22x64xf32>
    %138 = arith.addf %135, %137 : vector<22x64xf32>
    %cst_57 = arith.constant 0.000000e+00 : f32
    %139 = vector.broadcast %cst_57 : f32 to vector<22x64xf32>
    %140 = arith.maximumf %138, %139 : vector<22x64xf32>
    %141 = vector.extract_strided_slice %140 {offsets = [0, 0], sizes = [11, 64], strides = [1, 1]} : vector<22x64xf32> to vector<11x64xf32>
    %142 = vector.extract_strided_slice %140 {offsets = [1, 0], sizes = [11, 64], strides = [1, 1]} : vector<22x64xf32> to vector<11x64xf32>
    %143 = vector.extract_strided_slice %140 {offsets = [2, 0], sizes = [11, 64], strides = [1, 1]} : vector<22x64xf32> to vector<11x64xf32>
    %144 = vector.extract_strided_slice %140 {offsets = [3, 0], sizes = [11, 64], strides = [1, 1]} : vector<22x64xf32> to vector<11x64xf32>
    %145 = vector.extract_strided_slice %140 {offsets = [4, 0], sizes = [11, 64], strides = [1, 1]} : vector<22x64xf32> to vector<11x64xf32>
    %146 = vector.extract_strided_slice %140 {offsets = [5, 0], sizes = [11, 64], strides = [1, 1]} : vector<22x64xf32> to vector<11x64xf32>
    %147 = vector.extract_strided_slice %140 {offsets = [6, 0], sizes = [11, 64], strides = [1, 1]} : vector<22x64xf32> to vector<11x64xf32>
    %148 = vector.extract_strided_slice %140 {offsets = [7, 0], sizes = [11, 64], strides = [1, 1]} : vector<22x64xf32> to vector<11x64xf32>
    %149 = vector.extract_strided_slice %140 {offsets = [8, 0], sizes = [11, 64], strides = [1, 1]} : vector<22x64xf32> to vector<11x64xf32>
    %150 = vector.extract_strided_slice %140 {offsets = [9, 0], sizes = [11, 64], strides = [1, 1]} : vector<22x64xf32> to vector<11x64xf32>
    %151 = vector.extract_strided_slice %140 {offsets = [10, 0], sizes = [11, 64], strides = [1, 1]} : vector<22x64xf32> to vector<11x64xf32>
    %152 = vector.extract_strided_slice %140 {offsets = [11, 0], sizes = [11, 64], strides = [1, 1]} : vector<22x64xf32> to vector<11x64xf32>
    %153 = tpu.concatenate %141, %142, %143, %144, %145, %146, %147, %148, %149, %150, %151, %152 in 1 : vector<11x64xf32>, vector<11x64xf32>, vector<11x64xf32>, vector<11x64xf32>, vector<11x64xf32>, vector<11x64xf32>, vector<11x64xf32>, vector<11x64xf32>, vector<11x64xf32>, vector<11x64xf32>, vector<11x64xf32>, vector<11x64xf32> -> vector<11x768xf32>
    %154 = arith.truncf %153 : vector<11x768xf32> to vector<11x768xbf16>
    %c0_58 = arith.constant 0 : index
    %c0_59 = arith.constant 0 : index
    %155 = vector.load %arg6[%c0_58, %c0_59] : memref<768x128xbf16, #tpu.memory_space<vmem>>, vector<768x128xbf16>
    %cst_60 = arith.constant dense<0.000000e+00> : vector<11x128xf32>
    %156 = tpu.matmul %154, %155, %cst_60 {dimension_numbers = #tpu.dot_dimension_numbers<[1], [0], [0], [1], [0, 0, 1, 1], [], []>} : vector<11x768xbf16>, vector<768x128xbf16>, vector<11x128xf32> -> vector<11x128xf32>
    %c0_61 = arith.constant 0 : index
    %c0_62 = arith.constant 0 : index
    %157 = vector.load %arg7[%c0_61, %c0_62] : memref<1x128xf32, #tpu.memory_space<vmem>>, vector<1x128xf32>
    %158 = vector.broadcast %157 : vector<1x128xf32> to vector<11x128xf32>
    %159 = arith.addf %156, %158 : vector<11x128xf32>
    %cst_63 = arith.constant 0.000000e+00 : f32
    %160 = vector.broadcast %cst_63 : f32 to vector<11x128xf32>
    %161 = arith.maximumf %159, %160 : vector<11x128xf32>
    %cst_64 = arith.constant dense<0.000000e+00> : vector<128xf32>
    %162 = vector.multi_reduction <add>, %161, %cst_64 [0] : vector<11x128xf32> to vector<128xf32>
    %163 = vector.shape_cast %162 : vector<128xf32> to vector<1x128xf32>
    %cst_65 = arith.constant 1.100000e+01 : f32
    %164 = vector.broadcast %cst_65 : f32 to vector<1x128xf32>
    %165 = arith.divf %163, %164 : vector<1x128xf32>
    %c1_66 = arith.constant 1 : index
    %c0_67 = arith.constant 0 : index
    %c0_68 = arith.constant 0 : index
    %166 = vector.load %arg1[%c1_66, %c0_67, %c0_68] : memref<2x32x12xf32, #tpu.memory_space<vmem>>, vector<1x32x12xf32>
    %167 = vector.shape_cast %166 : vector<1x32x12xf32> to vector<32x12xf32>
    %168 = vector.extract_strided_slice %167 {offsets = [0, 0], sizes = [29, 12], strides = [1, 1]} : vector<32x12xf32> to vector<29x12xf32>
    %169 = vector.extract_strided_slice %167 {offsets = [1, 0], sizes = [29, 12], strides = [1, 1]} : vector<32x12xf32> to vector<29x12xf32>
    %170 = vector.extract_strided_slice %167 {offsets = [2, 0], sizes = [29, 12], strides = [1, 1]} : vector<32x12xf32> to vector<29x12xf32>
    %171 = vector.extract_strided_slice %167 {offsets = [3, 0], sizes = [29, 12], strides = [1, 1]} : vector<32x12xf32> to vector<29x12xf32>
    %172 = tpu.concatenate %168, %169, %170, %171 in 1 : vector<29x12xf32>, vector<29x12xf32>, vector<29x12xf32>, vector<29x12xf32> -> vector<29x48xf32>
    %173 = arith.truncf %172 : vector<29x48xf32> to vector<29x48xbf16>
    %c0_69 = arith.constant 0 : index
    %c0_70 = arith.constant 0 : index
    %174 = vector.load %arg8[%c0_69, %c0_70] : memref<48x32xbf16, #tpu.memory_space<vmem>>, vector<48x32xbf16>
    %cst_71 = arith.constant dense<0.000000e+00> : vector<29x32xf32>
    %175 = tpu.matmul %173, %174, %cst_71 {dimension_numbers = #tpu.dot_dimension_numbers<[1], [0], [0], [1], [0, 0, 1, 1], [], []>} : vector<29x48xbf16>, vector<48x32xbf16>, vector<29x32xf32> -> vector<29x32xf32>
    %c0_72 = arith.constant 0 : index
    %c0_73 = arith.constant 0 : index
    %176 = vector.load %arg9[%c0_72, %c0_73] : memref<1x32xf32, #tpu.memory_space<vmem>>, vector<1x32xf32>
    %177 = vector.broadcast %176 : vector<1x32xf32> to vector<29x32xf32>
    %178 = arith.addf %175, %177 : vector<29x32xf32>
    %cst_74 = arith.constant 0.000000e+00 : f32
    %179 = vector.broadcast %cst_74 : f32 to vector<29x32xf32>
    %180 = arith.maximumf %178, %179 : vector<29x32xf32>
    %181 = vector.extract_strided_slice %180 {offsets = [0, 0], sizes = [24, 32], strides = [1, 1]} : vector<29x32xf32> to vector<24x32xf32>
    %182 = vector.extract_strided_slice %180 {offsets = [1, 0], sizes = [24, 32], strides = [1, 1]} : vector<29x32xf32> to vector<24x32xf32>
    %183 = vector.extract_strided_slice %180 {offsets = [2, 0], sizes = [24, 32], strides = [1, 1]} : vector<29x32xf32> to vector<24x32xf32>
    %184 = vector.extract_strided_slice %180 {offsets = [3, 0], sizes = [24, 32], strides = [1, 1]} : vector<29x32xf32> to vector<24x32xf32>
    %185 = vector.extract_strided_slice %180 {offsets = [4, 0], sizes = [24, 32], strides = [1, 1]} : vector<29x32xf32> to vector<24x32xf32>
    %186 = vector.extract_strided_slice %180 {offsets = [5, 0], sizes = [24, 32], strides = [1, 1]} : vector<29x32xf32> to vector<24x32xf32>
    %187 = tpu.concatenate %181, %182, %183, %184, %185, %186 in 1 : vector<24x32xf32>, vector<24x32xf32>, vector<24x32xf32>, vector<24x32xf32>, vector<24x32xf32>, vector<24x32xf32> -> vector<24x192xf32>
    %188 = arith.truncf %187 : vector<24x192xf32> to vector<24x192xbf16>
    %c0_75 = arith.constant 0 : index
    %c0_76 = arith.constant 0 : index
    %189 = vector.load %arg10[%c0_75, %c0_76] : memref<192x64xbf16, #tpu.memory_space<vmem>>, vector<192x64xbf16>
    %cst_77 = arith.constant dense<0.000000e+00> : vector<24x64xf32>
    %190 = tpu.matmul %188, %189, %cst_77 {dimension_numbers = #tpu.dot_dimension_numbers<[1], [0], [0], [1], [0, 0, 1, 1], [], []>} : vector<24x192xbf16>, vector<192x64xbf16>, vector<24x64xf32> -> vector<24x64xf32>
    %c0_78 = arith.constant 0 : index
    %c0_79 = arith.constant 0 : index
    %191 = vector.load %arg11[%c0_78, %c0_79] : memref<1x64xf32, #tpu.memory_space<vmem>>, vector<1x64xf32>
    %192 = vector.broadcast %191 : vector<1x64xf32> to vector<24x64xf32>
    %193 = arith.addf %190, %192 : vector<24x64xf32>
    %cst_80 = arith.constant 0.000000e+00 : f32
    %194 = vector.broadcast %cst_80 : f32 to vector<24x64xf32>
    %195 = arith.maximumf %193, %194 : vector<24x64xf32>
    %196 = vector.extract_strided_slice %195 {offsets = [0, 0], sizes = [17, 64], strides = [1, 1]} : vector<24x64xf32> to vector<17x64xf32>
    %197 = vector.extract_strided_slice %195 {offsets = [1, 0], sizes = [17, 64], strides = [1, 1]} : vector<24x64xf32> to vector<17x64xf32>
    %198 = vector.extract_strided_slice %195 {offsets = [2, 0], sizes = [17, 64], strides = [1, 1]} : vector<24x64xf32> to vector<17x64xf32>
    %199 = vector.extract_strided_slice %195 {offsets = [3, 0], sizes = [17, 64], strides = [1, 1]} : vector<24x64xf32> to vector<17x64xf32>
    %200 = vector.extract_strided_slice %195 {offsets = [4, 0], sizes = [17, 64], strides = [1, 1]} : vector<24x64xf32> to vector<17x64xf32>
    %201 = vector.extract_strided_slice %195 {offsets = [5, 0], sizes = [17, 64], strides = [1, 1]} : vector<24x64xf32> to vector<17x64xf32>
    %202 = vector.extract_strided_slice %195 {offsets = [6, 0], sizes = [17, 64], strides = [1, 1]} : vector<24x64xf32> to vector<17x64xf32>
    %203 = vector.extract_strided_slice %195 {offsets = [7, 0], sizes = [17, 64], strides = [1, 1]} : vector<24x64xf32> to vector<17x64xf32>
    %204 = tpu.concatenate %196, %197, %198, %199, %200, %201, %202, %203 in 1 : vector<17x64xf32>, vector<17x64xf32>, vector<17x64xf32>, vector<17x64xf32>, vector<17x64xf32>, vector<17x64xf32>, vector<17x64xf32>, vector<17x64xf32> -> vector<17x512xf32>
    %205 = arith.truncf %204 : vector<17x512xf32> to vector<17x512xbf16>
    %c0_81 = arith.constant 0 : index
    %c0_82 = arith.constant 0 : index
    %206 = vector.load %arg12[%c0_81, %c0_82] : memref<512x128xbf16, #tpu.memory_space<vmem>>, vector<512x128xbf16>
    %cst_83 = arith.constant dense<0.000000e+00> : vector<17x128xf32>
    %207 = tpu.matmul %205, %206, %cst_83 {dimension_numbers = #tpu.dot_dimension_numbers<[1], [0], [0], [1], [0, 0, 1, 1], [], []>} : vector<17x512xbf16>, vector<512x128xbf16>, vector<17x128xf32> -> vector<17x128xf32>
    %c0_84 = arith.constant 0 : index
    %c0_85 = arith.constant 0 : index
    %208 = vector.load %arg13[%c0_84, %c0_85] : memref<1x128xf32, #tpu.memory_space<vmem>>, vector<1x128xf32>
    %209 = vector.broadcast %208 : vector<1x128xf32> to vector<17x128xf32>
    %210 = arith.addf %207, %209 : vector<17x128xf32>
    %cst_86 = arith.constant 0.000000e+00 : f32
    %211 = vector.broadcast %cst_86 : f32 to vector<17x128xf32>
    %212 = arith.maximumf %210, %211 : vector<17x128xf32>
    %cst_87 = arith.constant dense<0.000000e+00> : vector<128xf32>
    %213 = vector.multi_reduction <add>, %212, %cst_87 [0] : vector<17x128xf32> to vector<128xf32>
    %214 = vector.shape_cast %213 : vector<128xf32> to vector<1x128xf32>
    %cst_88 = arith.constant 1.700000e+01 : f32
    %215 = vector.broadcast %cst_88 : f32 to vector<1x128xf32>
    %216 = arith.divf %214, %215 : vector<1x128xf32>
    %217 = tpu.concatenate %165, %216 in 1 : vector<1x128xf32>, vector<1x128xf32> -> vector<1x256xf32>
    %218 = tpu.concatenate %108, %217 in 0 : vector<1x256xf32>, vector<1x256xf32> -> vector<2x256xf32>
    %219 = arith.truncf %218 : vector<2x256xf32> to vector<2x256xbf16>
    %c0_89 = arith.constant 0 : index
    %c0_90 = arith.constant 0 : index
    %220 = vector.load %arg14[%c0_89, %c0_90] : memref<256x256xbf16, #tpu.memory_space<vmem>>, vector<256x256xbf16>
    %cst_91 = arith.constant dense<0.000000e+00> : vector<2x256xf32>
    %221 = tpu.matmul %219, %220, %cst_91 {dimension_numbers = #tpu.dot_dimension_numbers<[1], [0], [0], [1], [0, 0, 1, 1], [], []>} : vector<2x256xbf16>, vector<256x256xbf16>, vector<2x256xf32> -> vector<2x256xf32>
    %c0_92 = arith.constant 0 : index
    %c0_93 = arith.constant 0 : index
    %222 = vector.load %arg15[%c0_92, %c0_93] : memref<1x256xf32, #tpu.memory_space<vmem>>, vector<1x256xf32>
    %223 = vector.broadcast %222 : vector<1x256xf32> to vector<2x256xf32>
    %224 = arith.addf %221, %223 : vector<2x256xf32>
    %cst_94 = arith.constant 0.000000e+00 : f32
    %225 = vector.broadcast %cst_94 : f32 to vector<2x256xf32>
    %226 = arith.maximumf %224, %225 : vector<2x256xf32>
    %227 = arith.truncf %226 : vector<2x256xf32> to vector<2x256xbf16>
    %c0_95 = arith.constant 0 : index
    %c0_96 = arith.constant 0 : index
    %228 = vector.load %arg16[%c0_95, %c0_96] : memref<256x128xbf16, #tpu.memory_space<vmem>>, vector<256x128xbf16>
    %cst_97 = arith.constant dense<0.000000e+00> : vector<2x128xf32>
    %229 = tpu.matmul %227, %228, %cst_97 {dimension_numbers = #tpu.dot_dimension_numbers<[1], [0], [0], [1], [0, 0, 1, 1], [], []>} : vector<2x256xbf16>, vector<256x128xbf16>, vector<2x128xf32> -> vector<2x128xf32>
    %c0_98 = arith.constant 0 : index
    %c0_99 = arith.constant 0 : index
    %230 = vector.load %arg17[%c0_98, %c0_99] : memref<1x128xf32, #tpu.memory_space<vmem>>, vector<1x128xf32>
    %231 = vector.broadcast %230 : vector<1x128xf32> to vector<2x128xf32>
    %232 = arith.addf %229, %231 : vector<2x128xf32>
    %cst_100 = arith.constant 0.000000e+00 : f32
    %233 = vector.broadcast %cst_100 : f32 to vector<2x128xf32>
    %234 = arith.maximumf %232, %233 : vector<2x128xf32>
    %c0_101 = arith.constant 0 : index
    %c0_102 = arith.constant 0 : index
    %235 = vector.load %arg18[%c0_101, %c0_102] : memref<1x128xf32, #tpu.memory_space<vmem>>, vector<1x128xf32>
    %236 = vector.broadcast %235 : vector<1x128xf32> to vector<2x128xf32>
    %237 = arith.mulf %234, %236 : vector<2x128xf32>
    %cst_103 = arith.constant dense<0.000000e+00> : vector<2xf32>
    %238 = vector.multi_reduction <add>, %237, %cst_103 [1] : vector<2x128xf32> to vector<2xf32>
    %239 = vector.shape_cast %238 : vector<2xf32> to vector<2x1xf32>
    %c0_104 = arith.constant 0 : index
    %c0_105 = arith.constant 0 : index
    %240 = vector.load %arg19[%c0_104, %c0_105] : memref<1x1xf32, #tpu.memory_space<vmem>>, vector<1x1xf32>
    %241 = vector.broadcast %240 : vector<1x1xf32> to vector<2x1xf32>
    %242 = arith.addf %239, %241 : vector<2x1xf32>
    %c0_106 = arith.constant 0 : index
    %c0_107 = arith.constant 0 : index
    %243 = vector.load %arg20[%c0_106, %c0_107] : memref<2x1xf32, #tpu.memory_space<vmem>>, vector<2x1xf32>
    tpu.vector_store %arg20[%c0_106, %c0_107], %242 {strides = array<i32>} : memref<2x1xf32, #tpu.memory_space<vmem>>, vector<2x1xf32>,
    return
  }
}

</mosaic_0001>

<llo_original>
// kernel: affinity_predict.1
$region0: #{affinity_predict.1}
  #allocation0 [shape = 'u32[]', space=smem, size = 0x4, offset = 0x4, fixed_abs, tag = 'smem constant byte address 0x4 - core index']
  #allocation1 [shape = 'u32[144,128]{1,0:T(1,128)}', space=vmem, size = 0x12000, scoped, tag = 'internal scratch']
  #allocation2 [shape = 'f32[1,1]{1,0:T(1,128)S(1)}', space=vmem, size = 0x200, scoped, tag = 'scoped memory for affinity_predict.1']
  %s0 = inlined_call_operand.vmem [shape: f32[2,32,16], index: 0, kind: input, shape index: {}]
  %s1 = inlined_call_operand.vmem [shape: f32[2,32,12], index: 1, kind: input, shape index: {}]
  %s2 = inlined_call_operand.vmem [shape: bf16[64,32], index: 2, kind: input, shape index: {}]
  %s3 = inlined_call_operand.vmem [shape: f32[1,32], index: 3, kind: input, shape index: {}]
  %s4 = inlined_call_operand.vmem [shape: bf16[256,64], index: 4, kind: input, shape index: {}]
  %s5 = inlined_call_operand.vmem [shape: f32[1,64], index: 5, kind: input, shape index: {}]
  %s6 = inlined_call_operand.vmem [shape: bf16[768,128], index: 6, kind: input, shape index: {}]
  %s7 = inlined_call_operand.vmem [shape: f32[1,128], index: 7, kind: input, shape index: {}]
  %s8 = inlined_call_operand.vmem [shape: bf16[48,32], index: 8, kind: input, shape index: {}]
  %s9 = inlined_call_operand.vmem [shape: f32[1,32], index: 9, kind: input, shape index: {}]
  %s10 = inlined_call_operand.vmem [shape: bf16[192,64], index: 10, kind: input, shape index: {}]
  %s11 = inlined_call_operand.vmem [shape: f32[1,64], index: 11, kind: input, shape index: {}]
  %s12 = inlined_call_operand.vmem [shape: bf16[512,128], index: 12, kind: input, shape index: {}]
  %s13 = inlined_call_operand.vmem [shape: f32[1,128], index: 13, kind: input, shape index: {}]
  %s14 = inlined_call_operand.vmem [shape: bf16[256,256], index: 14, kind: input, shape index: {}]
  %s15 = inlined_call_operand.vmem [shape: f32[1,256], index: 15, kind: input, shape index: {}]
  %s16 = inlined_call_operand.vmem [shape: bf16[256,128], index: 16, kind: input, shape index: {}]
  %s17 = inlined_call_operand.vmem [shape: f32[1,128], index: 17, kind: input, shape index: {}]
  %s18 = inlined_call_operand.vmem [shape: f32[1,128], index: 18, kind: input, shape index: {}]
  %s19 = inlined_call_operand.<no memory space> [shape: f32[1,1], index: 19, kind: input, shape index: {}]
  %s20 = inlined_call_operand.vmem [shape: f32[2,1], index: 20, kind: output, shape index: {}]
  %s21 = sld [smem:[#allocation0]]
  $region90: #{affinity_predict.1} parent=0
    _
  %s23 = ssub.s32 1, %s21
  %s24 = scalar_select 0, %s23, %s21
  %v25 = vstv %s19
  %26 = vst [vmem:[#allocation2] sm:$0x1] %v25
  // Predicated region
  $region2: #{affinity_predict.1} parent=0 // pred_check
    _
  $region3: #{affinity_predict.1} parent=0 // pred_check_branch
    %28 = sbr.rel (0) target = $region5
  $region4: #{affinity_predict.1} parent=0 // pred_region
    _
  $region5: #{affinity_predict.1} parent=0 // pred_fallthru
    _
  // Predicated region
  $region6: #{affinity_predict.1} parent=0 // pred_check
    _
  $region7: #{affinity_predict.1} parent=0 // pred_check_branch
    %30 = sbr.rel (0) target = $region9
  $region8: #{affinity_predict.1} parent=0 // pred_region
    _
  $region9: #{affinity_predict.1} parent=0 // pred_fallthru
    _
  // Predicated region
  $region10: #{affinity_predict.1} parent=0 // pred_check
    _
  $region11: #{affinity_predict.1} parent=0 // pred_check_branch
    %32 = sbr.rel (0) target = $region13
  $region12: #{affinity_predict.1} parent=0 // pred_region
    _
  $region13: #{affinity_predict.1} parent=0 // pred_fallthru
    _
  // Predicated region
  $region14: #{affinity_predict.1} parent=0 // pred_check
    _
  $region15: #{affinity_predict.1} parent=0 // pred_check_branch
    %34 = sbr.rel (0) target = $region17
  $region16: #{affinity_predict.1} parent=0 // pred_region
    _
  $region17: #{affinity_predict.1} parent=0 // pred_fallthru
    _
  // Predicated region
  $region18: #{affinity_predict.1} parent=0 // pred_check
    _
  $region19: #{affinity_predict.1} parent=0 // pred_check_branch
    %36 = sbr.rel (0) target = $region21
  $region20: #{affinity_predict.1} parent=0 // pred_region
    _
  $region21: #{affinity_predict.1} parent=0 // pred_fallthru
    _
  // Predicated region
  $region22: #{affinity_predict.1} parent=0 // pred_check
    _
  $region23: #{affinity_predict.1} parent=0 // pred_check_branch
    %38 = sbr.rel (0) target = $region25
  $region24: #{affinity_predict.1} parent=0 // pred_region
    _
  $region25: #{affinity_predict.1} parent=0 // pred_fallthru
    _
  // Predicated region
  $region26: #{affinity_predict.1} parent=0 // pred_check
    _
  $region27: #{affinity_predict.1} parent=0 // pred_check_branch
    %40 = sbr.rel (0) target = $region29
  $region28: #{affinity_predict.1} parent=0 // pred_region
    _
  $region29: #{affinity_predict.1} parent=0 // pred_fallthru
    _
  // Predicated region
  $region30: #{affinity_predict.1} parent=0 // pred_check
    _
  $region31: #{affinity_predict.1} parent=0 // pred_check_branch
    %42 = sbr.rel (0) target = $region33
  $region32: #{affinity_predict.1} parent=0 // pred_region
    _
  $region33: #{affinity_predict.1} parent=0 // pred_fallthru
    _
  // Predicated region
  $region34: #{affinity_predict.1} parent=0 // pred_check
    _
  $region35: #{affinity_predict.1} parent=0 // pred_check_branch
    %44 = sbr.rel (0) target = $region37
  $region36: #{affinity_predict.1} parent=0 // pred_region
    _
  $region37: #{affinity_predict.1} parent=0 // pred_fallthru
    _
  // Predicated region
  $region38: #{affinity_predict.1} parent=0 // pred_check
    _
  $region39: #{affinity_predict.1} parent=0 // pred_check_branch
    %46 = sbr.rel (0) target = $region41
  $region40: #{affinity_predict.1} parent=0 // pred_region
    _
  $region41: #{affinity_predict.1} parent=0 // pred_fallthru
    _
  // Predicated region
  $region42: #{affinity_predict.1} parent=0 // pred_check
    _
  $region43: #{affinity_predict.1} parent=0 // pred_check_branch
    %48 = sbr.rel (0) target = $region45
  $region44: #{affinity_predict.1} parent=0 // pred_region
    _
  $region45: #{affinity_predict.1} parent=0 // pred_fallthru
    _
  // Predicated region
  $region46: #{affinity_predict.1} parent=0 // pred_check
    _
  $region47: #{affinity_predict.1} parent=0 // pred_check_branch
    %50 = sbr.rel (0) target = $region49
  $region48: #{affinity_predict.1} parent=0 // pred_region
    _
  $region49: #{affinity_predict.1} parent=0 // pred_fallthru
    _
  // Predicated region
  $region50: #{affinity_predict.1} parent=0 // pred_check
    _
  $region51: #{affinity_predict.1} parent=0 // pred_check_branch
    %52 = sbr.rel (0) target = $region53
  $region52: #{affinity_predict.1} parent=0 // pred_region
    _
  $region53: #{affinity_predict.1} parent=0 // pred_fallthru
    _
  // Predicated region
  $region54: #{affinity_predict.1} parent=0 // pred_check
    _
  $region55: #{affinity_predict.1} parent=0 // pred_check_branch
    %54 = sbr.rel (0) target = $region57
  $region56: #{affinity_predict.1} parent=0 // pred_region
    _
  $region57: #{affinity_predict.1} parent=0 // pred_fallthru
    _
  // Predicated region
  $region58: #{affinity_predict.1} parent=0 // pred_check
    _
  $region59: #{affinity_predict.1} parent=0 // pred_check_branch
    %56 = sbr.rel (0) target = $region61
  $region60: #{affinity_predict.1} parent=0 // pred_region
    _
  $region61: #{affinity_predict.1} parent=0 // pred_fallthru
    _
  // Predicated region
  $region62: #{affinity_predict.1} parent=0 // pred_check
    _
  $region63: #{affinity_predict.1} parent=0 // pred_check_branch
    %58 = sbr.rel (0) target = $region65
  $region64: #{affinity_predict.1} parent=0 // pred_region
    _
  $region65: #{affinity_predict.1} parent=0 // pred_fallthru
    _
  // Predicated region
  $region66: #{affinity_predict.1} parent=0 // pred_check
    _
  $region67: #{affinity_predict.1} parent=0 // pred_check_branch
    %60 = sbr.rel (0) target = $region69
  $region68: #{affinity_predict.1} parent=0 // pred_region
    _
  $region69: #{affinity_predict.1} parent=0 // pred_fallthru
    _
  // Predicated region
  $region70: #{affinity_predict.1} parent=0 // pred_check
    _
  $region71: #{affinity_predict.1} parent=0 // pred_check_branch
    %62 = sbr.rel (0) target = $region73
  $region72: #{affinity_predict.1} parent=0 // pred_region
    _
  $region73: #{affinity_predict.1} parent=0 // pred_fallthru
    _
  // Predicated region
  $region74: #{affinity_predict.1} parent=0 // pred_check
    _
  $region75: #{affinity_predict.1} parent=0 // pred_check_branch
    %64 = sbr.rel (0) target = $region77
  $region76: #{affinity_predict.1} parent=0 // pred_region
    _
  $region77: #{affinity_predict.1} parent=0 // pred_fallthru
    _
  // Predicated region
  $region78: #{affinity_predict.1} parent=0 // pred_check
    _
  $region79: #{affinity_predict.1} parent=0 // pred_check_branch
    %66 = sbr.rel (0) target = $region81
  $region80: #{affinity_predict.1} parent=0 // pred_region
    _
  $region81: #{affinity_predict.1} parent=0 // pred_fallthru
    _
  %v68 = vld [vmem:[%s0] sm:$0xff]
  %v69 = vld [vmem:[%s0 + $0x8] sm:$0xff]
  %v70 = vld [vmem:[%s0 + $0x10] sm:$0xff]
  %v71 = vld [vmem:[%s0 + $0x18] sm:$0xff]
  %vm76 = vcmask 1046528
  %v77 = vrot.slane %v68, 1
  %v78 = vrot.slane %v69, 1
  %v79 = vsel %vm76, %v77, %v78
  %v80 = vrot.slane %v70, 1
  %v81 = vsel %vm76, %v78, %v80
  %v82 = vrot.slane %v71, 1
  %v83 = vsel %vm76, %v80, %v82
  %84 = vrot.lane.b32.xlu0 %v79, 16
  %v85 = vpop.permute.xlu0 %84
  %86 = vrot.lane.b32.xlu0 %v81, 16
  %v87 = vpop.permute.xlu0 %86
  %88 = vrot.lane.b32.xlu0 %v83, 16
  %v89 = vpop.permute.xlu0 %88
  %90 = vrot.lane.b32.xlu0 %v82, 16
  %v91 = vpop.permute.xlu0 %90
  %vm96 = vcmask 1045504
  %v97 = vrot.slane %v68, 2
  %v98 = vrot.slane %v69, 2
  %v99 = vsel %vm96, %v97, %v98
  %v100 = vrot.slane %v70, 2
  %v101 = vsel %vm96, %v98, %v100
  %v102 = vrot.slane %v71, 2
  %v103 = vsel %vm96, %v100, %v102
  %104 = vrot.lane.b32.xlu0 %v99, 32
  %v105 = vpop.permute.xlu0 %104
  %106 = vrot.lane.b32.xlu0 %v101, 32
  %v107 = vpop.permute.xlu0 %106
  %108 = vrot.lane.b32.xlu0 %v103, 32
  %v109 = vpop.permute.xlu0 %108
  %110 = vrot.lane.b32.xlu0 %v102, 32
  %v111 = vpop.permute.xlu0 %110
  %vm116 = vcmask 1044480
  %v117 = vrot.slane %v68, 3
  %v118 = vrot.slane %v69, 3
  %v119 = vsel %vm116, %v117, %v118
  %v120 = vrot.slane %v70, 3
  %v121 = vsel %vm116, %v118, %v120
  %v122 = vrot.slane %v71, 3
  %v123 = vsel %vm116, %v120, %v122
  %124 = vrot.lane.b32.xlu0 %v119, 48
  %v125 = vpop.permute.xlu0 %124
  %126 = vrot.lane.b32.xlu0 %v121, 48
  %v127 = vpop.permute.xlu0 %126
  %128 = vrot.lane.b32.xlu0 %v123, 48
  %v129 = vpop.permute.xlu0 %128
  %130 = vrot.lane.b32.xlu0 %v122, 48
  %v131 = vpop.permute.xlu0 %130
  %vm136 = vcmask 130048
  %v137 = vsel %vm136, %v68, %v85
  %v138 = vsel %vm136, %v69, %v87
  %v139 = vsel %vm136, %v70, %v89
  %v140 = vsel %vm136, %v71, %v91
  %vm141 = vcmask 261120
  %v142 = vsel %vm141, %v137, %v105
  %v143 = vsel %vm141, %v138, %v107
  %v144 = vsel %vm141, %v139, %v109
  %v145 = vsel %vm141, %v140, %v111
  %vm146 = vcmask 392192
  %v147 = vsel %vm146, %v142, %v125
  %v148 = vsel %vm146, %v143, %v127
  %v149 = vsel %vm146, %v144, %v129
  %v150 = vsel %vm146, %v145, %v131
  %v151 = vpack.c.bf16 %v148, %v147
  %v152 = vpack.c.bf16 %v150, %v149
  %v153 = vld [vmem:[%s2] sm:$0xf]
  %v154 = vld [vmem:[%s2 + $0x4] sm:$0xf]
  %v155 = vld [vmem:[%s2 + $0x8] sm:$0xf]
  %v156 = vld [vmem:[%s2 + $0xc] sm:$0xf]
  %v157 = vld [vmem:[%s2 + $0x10] sm:$0xf]
  %v158 = vld [vmem:[%s2 + $0x14] sm:$0xf]
  %v159 = vld [vmem:[%s2 + $0x18] sm:$0xf]
  %v160 = vld [vmem:[%s2 + $0x1c] sm:$0xf]
  %v161 = vld [vmem:[%s3] sm:$0x1]
  %v163 = vlaneseq
  %v164 = vshrl.u32 %v163, 7
  %v165 = vsub.s32 0, %v164
  %v166 = vrot.slane %v161, %v165
  %v176 = vunpack.c.l.b16 %v153
  %v177 = vunpack.c.l.b16 %v154
  %v178 = vunpack.c.l.b16 %v155
  %v179 = vunpack.c.l.b16 %v156
  %v180 = vunpack.c.l.b16 %v157
  %v181 = vunpack.c.l.b16 %v158
  %v182 = vunpack.c.l.b16 %v159
  %v183 = vunpack.c.l.b16 %v160
  %v184 = vpack.c.b16 %v177, %v176
  %v185 = vpack.c.b16 %v179, %v178
  %v186 = vpack.c.b16 %v181, %v180
  %v187 = vpack.c.b16 %v183, %v182
  %vm192 = vcmask 523264
  %v194 = vsel %vm192, %v151, 0
  %v197 = vsel %vm192, %v152, 0
  %199 = vmatprep.subr.bf16.mxu0 0
  %200 = vmatpush1.bf16.msra.mxu0 %v184
  %201 = vmatprep.subr.bf16.mxu0 0
  %202 = vmatpush1.bf16.msra.mxu0 %v185
  %203 = vmatprep.subr.bf16.mxu0 0
  %204 = vmatpush1.bf16.msra.mxu0 %v186
  %205 = vmatprep.subr.bf16.mxu0 0
  %206 = vmatpush1.bf16.msra.mxu0 %v187
  %207 = vmatprep.subr.bf16.mxu0 0
  %208 = vmatpush1.bf16.msra.mxu0 0
  %209 = vmatprep.subr.bf16.mxu0 0
  %210 = vmatpush1.bf16.msra.mxu0 0
  %211 = vmatprep.subr.bf16.mxu0 0
  %212 = vmatpush1.bf16.msra.mxu0 0
  %213 = vmatprep.subr.bf16.mxu0 0
  %214 = vmatpush1.bf16.msra.mxu0 0
  %215 = vmatprep.subr.bf16.mxu0 0
  %216 = vmatpush1.bf16.msra.mxu0 0
  %217 = vmatprep.subr.bf16.mxu0 0
  %218 = vmatpush1.bf16.msra.mxu0 0
  %219 = vmatprep.subr.bf16.mxu0 0
  %220 = vmatpush1.bf16.msra.mxu0 0
  %221 = vmatprep.subr.bf16.mxu0 0
  %222 = vmatpush1.bf16.msra.mxu0 0
  %223 = vmatprep.subr.bf16.mxu0 0
  %224 = vmatpush1.bf16.msra.mxu0 0
  %225 = vmatprep.subr.bf16.mxu0 0
  %226 = vmatpush1.bf16.msra.mxu0 0
  %227 = vmatprep.subr.bf16.mxu0 0
  %228 = vmatpush1.bf16.msra.mxu0 0
  %229 = vmatprep.subr.bf16.mxu0 0
  %230 = vmatpush1.bf16.msra.mxu0 0
  %231 = vmatprep.mubr.bf16.mxu0 0
  %232 = vmatmul.mubr.bf16.gmra.mrb[0].mxu0 %v194
  %v233 = vpop.f32.mrb[0].mxu0
  %v234 = vadd.f32 %v166, %v233
  %v235 = vpop.f32.mrb[0].mxu0
  %v236 = vpop.f32.mrb[0].mxu0
  %v237 = vadd.f32 %v166, %v236
  %v238 = vpop.f32.mrb[0].mxu0
  %239 = vmatprep.mubr.bf16.mxu0 0
  %240 = vmatmul.mubr.bf16.gmra.mrb[0].mxu0 %v197
  %v241 = vpop.f32.mrb[0].mxu0
  %v242 = vadd.f32 %v166, %v241
  %v243 = vpop.f32.mrb[0].mxu0
  %v244 = vpop.f32.mrb[0].mxu0
  %v245 = vadd.f32 %v166, %v244
  %v246 = vpop.f32.mrb[0].mxu0
  %247 = vdwg.mxu0
  %v248 = vmax.f32 %v234, 0.0
  %v249 = vmax.f32 %v237, 0.0
  %v250 = vmax.f32 %v242, 0.0
  %v251 = vmax.f32 %v245, 0.0
  %v255 = vrot.slane %v248, 1
  %v256 = vrot.slane %v249, 1
  %v257 = vsel %vm76, %v255, %v256
  %v258 = vrot.slane %v250, 1
  %v259 = vsel %vm76, %v256, %v258
  %260 = vrot.lane.b32.xlu0 %v257, 32
  %v261 = vpop.permute.xlu0 %260
  %262 = vrot.lane.b32.xlu0 %v259, 32
  %v263 = vpop.permute.xlu0 %262
  %264 = vrot.lane.b32.xlu0 %v258, 32
  %v265 = vpop.permute.xlu0 %264
  %v269 = vrot.slane %v248, 2
  %v270 = vrot.slane %v249, 2
  %v271 = vsel %vm96, %v269, %v270
  %v272 = vrot.slane %v250, 2
  %v273 = vsel %vm96, %v270, %v272
  %274 = vrot.lane.b32.xlu0 %v271, 64
  %v275 = vpop.permute.xlu0 %274
  %276 = vrot.lane.b32.xlu0 %v273, 64
  %v277 = vpop.permute.xlu0 %276
  %278 = vrot.lane.b32.xlu0 %v272, 64
  %v279 = vpop.permute.xlu0 %278
  %v284 = vrot.slane %v248, 3
  %v285 = vrot.slane %v249, 3
  %v286 = vsel %vm116, %v284, %v285
  %v287 = vrot.slane %v250, 3
  %v288 = vsel %vm116, %v285, %v287
  %v289 = vrot.slane %v251, 3
  %v290 = vsel %vm116, %v287, %v289
  %291 = vrot.lane.b32.xlu0 %v286, 96
  %v292 = vpop.permute.xlu0 %291
  %293 = vrot.lane.b32.xlu0 %v288, 96
  %v294 = vpop.permute.xlu0 %293
  %295 = vrot.lane.b32.xlu0 %v290, 96
  %v296 = vpop.permute.xlu0 %295
  %vm300 = vcmask 1043456
  %v301 = vrot.slane %v248, 4
  %v302 = vrot.slane %v249, 4
  %v303 = vsel %vm300, %v301, %v302
  %v304 = vrot.slane %v250, 4
  %v305 = vsel %vm300, %v302, %v304
  %v306 = vrot.slane %v251, 4
  %v307 = vsel %vm300, %v304, %v306
  %vm311 = vcmask 1042432
  %v312 = vrot.slane %v248, 5
  %v313 = vrot.slane %v249, 5
  %v314 = vsel %vm311, %v312, %v313
  %v315 = vrot.slane %v250, 5
  %v316 = vsel %vm311, %v313, %v315
  %v317 = vrot.slane %v251, 5
  %v318 = vsel %vm311, %v315, %v317
  %319 = vrot.lane.b32.xlu0 %v314, 32
  %v320 = vpop.permute.xlu0 %319
  %321 = vrot.lane.b32.xlu0 %v316, 32
  %v322 = vpop.permute.xlu0 %321
  %323 = vrot.lane.b32.xlu0 %v318, 32
  %v324 = vpop.permute.xlu0 %323
  %vm328 = vcmask 1041408
  %v329 = vrot.slane %v248, 6
  %v330 = vrot.slane %v249, 6
  %v331 = vsel %vm328, %v329, %v330
  %v332 = vrot.slane %v250, 6
  %v333 = vsel %vm328, %v330, %v332
  %v334 = vrot.slane %v251, 6
  %v335 = vsel %vm328, %v332, %v334
  %336 = vrot.lane.b32.xlu0 %v331, 64
  %v337 = vpop.permute.xlu0 %336
  %338 = vrot.lane.b32.xlu0 %v333, 64
  %v339 = vpop.permute.xlu0 %338
  %340 = vrot.lane.b32.xlu0 %v335, 64
  %v341 = vpop.permute.xlu0 %340
  %vm345 = vcmask 1040384
  %v346 = vrot.slane %v248, 7
  %v347 = vrot.slane %v249, 7
  %v348 = vsel %vm345, %v346, %v347
  %v349 = vrot.slane %v250, 7
  %v350 = vsel %vm345, %v347, %v349
  %v351 = vrot.slane %v251, 7
  %v352 = vsel %vm345, %v349, %v351
  %353 = vrot.lane.b32.xlu0 %v348, 96
  %v354 = vpop.permute.xlu0 %353
  %355 = vrot.lane.b32.xlu0 %v350, 96
  %v356 = vpop.permute.xlu0 %355
  %357 = vrot.lane.b32.xlu0 %v352, 96
  %v358 = vpop.permute.xlu0 %357
  %v362 = vsel %vm141, %v248, %v261
  %v363 = vsel %vm141, %v249, %v263
  %v364 = vsel %vm141, %v250, %v265
  %v365 = vsel %vm192, %v362, %v275
  %v366 = vsel %vm192, %v363, %v277
  %v367 = vsel %vm192, %v364, %v279
  %vm368 = vcmask 785408
  %v369 = vsel %vm368, %v365, %v292
  %v370 = vsel %vm368, %v366, %v294
  %v371 = vsel %vm368, %v367, %v296
  %v372 = vsel %vm141, %v303, %v320
  %v373 = vsel %vm141, %v305, %v322
  %v374 = vsel %vm141, %v307, %v324
  %v375 = vsel %vm192, %v372, %v337
  %v376 = vsel %vm192, %v373, %v339
  %v377 = vsel %vm192, %v374, %v341
  %v378 = vsel %vm368, %v375, %v354
  %v379 = vsel %vm368, %v376, %v356
  %v380 = vsel %vm368, %v377, %v358
  %v381 = vpack.c.bf16 %v370, %v369
  %v382 = vpack.c.bf16 %v379, %v378
  %v383 = vpack.c.bf16 %v371, %v371
  %v384 = vpack.c.bf16 %v380, %v380
  %v385 = vld [vmem:[%s4] sm:$0xf]
  %v386 = vld [vmem:[%s4 + $0x4] sm:$0xf]
  %v387 = vld [vmem:[%s4 + $0x8] sm:$0xf]
  %v388 = vld [vmem:[%s4 + $0xc] sm:$0xf]
  %v389 = vld [vmem:[%s4 + $0x10] sm:$0xf]
  %v390 = vld [vmem:[%s4 + $0x14] sm:$0xf]
  %v391 = vld [vmem:[%s4 + $0x18] sm:$0xf]
  %v392 = vld [vmem:[%s4 + $0x1c] sm:$0xf]
  %v393 = vld [vmem:[%s4 + $0x20] sm:$0xf]
  %v394 = vld [vmem:[%s4 + $0x24] sm:$0xf]
  %v395 = vld [vmem:[%s4 + $0x28] sm:$0xf]
  %v396 = vld [vmem:[%s4 + $0x2c] sm:$0xf]
  %v397 = vld [vmem:[%s4 + $0x30] sm:$0xf]
  %v398 = vld [vmem:[%s4 + $0x34] sm:$0xf]
  %v399 = vld [vmem:[%s4 + $0x38] sm:$0xf]
  %v400 = vld [vmem:[%s4 + $0x3c] sm:$0xf]
  %v401 = vld [vmem:[%s4 + $0x40] sm:$0xf]
  %v402 = vld [vmem:[%s4 + $0x44] sm:$0xf]
  %v403 = vld [vmem:[%s4 + $0x48] sm:$0xf]
  %v404 = vld [vmem:[%s4 + $0x4c] sm:$0xf]
  %v405 = vld [vmem:[%s4 + $0x50] sm:$0xf]
  %v406 = vld [vmem:[%s4 + $0x54] sm:$0xf]
  %v407 = vld [vmem:[%s4 + $0x58] sm:$0xf]
  %v408 = vld [vmem:[%s4 + $0x5c] sm:$0xf]
  %v409 = vld [vmem:[%s4 + $0x60] sm:$0xf]
  %v410 = vld [vmem:[%s4 + $0x64] sm:$0xf]
  %v411 = vld [vmem:[%s4 + $0x68] sm:$0xf]
  %v412 = vld [vmem:[%s4 + $0x6c] sm:$0xf]
  %v413 = vld [vmem:[%s4 + $0x70] sm:$0xf]
  %v414 = vld [vmem:[%s4 + $0x74] sm:$0xf]
  %v415 = vld [vmem:[%s4 + $0x78] sm:$0xf]
  %v416 = vld [vmem:[%s4 + $0x7c] sm:$0xf]
  %v417 = vld [vmem:[%s5] sm:$0x1]
  %v419 = vlaneseq
  %v420 = vshrl.u32 %v419, 7
  %v421 = vsub.s32 0, %v420
  %v422 = vrot.slane %v417, %v421
  %v456 = vunpack.c.l.b16 %v385
  %v457 = vunpack.c.l.b16 %v386
  %v458 = vunpack.c.l.b16 %v387
  %v459 = vunpack.c.l.b16 %v388
  %v460 = vunpack.c.l.b16 %v389
  %v461 = vunpack.c.l.b16 %v390
  %v462 = vunpack.c.l.b16 %v391
  %v463 = vunpack.c.l.b16 %v392
  %v464 = vunpack.c.l.b16 %v393
  %v465 = vunpack.c.l.b16 %v394
  %v466 = vunpack.c.l.b16 %v395
  %v467 = vunpack.c.l.b16 %v396
  %v468 = vunpack.c.l.b16 %v397
  %v469 = vunpack.c.l.b16 %v398
  %v470 = vunpack.c.l.b16 %v399
  %v471 = vunpack.c.l.b16 %v400
  %v472 = vunpack.c.l.b16 %v401
  %v473 = vunpack.c.l.b16 %v402
  %v474 = vunpack.c.l.b16 %v403
  %v475 = vunpack.c.l.b16 %v404
  %v476 = vunpack.c.l.b16 %v405
  %v477 = vunpack.c.l.b16 %v406
  %v478 = vunpack.c.l.b16 %v407
  %v479 = vunpack.c.l.b16 %v408
  %v480 = vunpack.c.l.b16 %v409
  %v481 = vunpack.c.l.b16 %v410
  %v482 = vunpack.c.l.b16 %v411
  %v483 = vunpack.c.l.b16 %v412
  %v484 = vunpack.c.l.b16 %v413
  %v485 = vunpack.c.l.b16 %v414
  %v486 = vunpack.c.l.b16 %v415
  %v487 = vunpack.c.l.b16 %v416
  %v488 = vpack.c.b16 %v457, %v456
  %v489 = vpack.c.b16 %v459, %v458
  %v490 = vpack.c.b16 %v461, %v460
  %v491 = vpack.c.b16 %v463, %v462
  %v492 = vpack.c.b16 %v465, %v464
  %v493 = vpack.c.b16 %v467, %v466
  %v494 = vpack.c.b16 %v469, %v468
  %v495 = vpack.c.b16 %v471, %v470
  %v496 = vpack.c.b16 %v473, %v472
  %v497 = vpack.c.b16 %v475, %v474
  %v498 = vpack.c.b16 %v477, %v476
  %v499 = vpack.c.b16 %v479, %v478
  %v500 = vpack.c.b16 %v481, %v480
  %v501 = vpack.c.b16 %v483, %v482
  %v502 = vpack.c.b16 %v485, %v484
  %v503 = vpack.c.b16 %v487, %v486
  %520 = vmatprep.subr.bf16.mxu0 0
  %521 = vmatpush1.bf16.msra.mxu0 %v488
  %522 = vmatprep.subr.bf16.mxu0 0
  %523 = vmatpush1.bf16.msra.mxu0 %v489
  %524 = vmatprep.subr.bf16.mxu0 0
  %525 = vmatpush1.bf16.msra.mxu0 %v490
  %526 = vmatprep.subr.bf16.mxu0 0
  %527 = vmatpush1.bf16.msra.mxu0 %v491
  %528 = vmatprep.subr.bf16.mxu0 0
  %529 = vmatpush1.bf16.msra.mxu0 %v492
  %530 = vmatprep.subr.bf16.mxu0 0
  %531 = vmatpush1.bf16.msra.mxu0 %v493
  %532 = vmatprep.subr.bf16.mxu0 0
  %533 = vmatpush1.bf16.msra.mxu0 %v494
  %534 = vmatprep.subr.bf16.mxu0 0
  %535 = vmatpush1.bf16.msra.mxu0 %v495
  %536 = vmatprep.subr.bf16.mxu0 0
  %537 = vmatpush1.bf16.msra.mxu0 %v496
  %538 = vmatprep.subr.bf16.mxu0 0
  %539 = vmatpush1.bf16.msra.mxu0 %v497
  %540 = vmatprep.subr.bf16.mxu0 0
  %541 = vmatpush1.bf16.msra.mxu0 %v498
  %542 = vmatprep.subr.bf16.mxu0 0
  %543 = vmatpush1.bf16.msra.mxu0 %v499
  %544 = vmatprep.subr.bf16.mxu0 0
  %545 = vmatpush1.bf16.msra.mxu0 %v500
  %546 = vmatprep.subr.bf16.mxu0 0
  %547 = vmatpush1.bf16.msra.mxu0 %v501
  %548 = vmatprep.subr.bf16.mxu0 0
  %549 = vmatpush1.bf16.msra.mxu0 %v502
  %550 = vmatprep.subr.bf16.mxu0 0
  %551 = vmatpush1.bf16.msra.mxu0 %v503
  %552 = vmatprep.mubr.bf16.mxu0 %v382
  %553 = vmatmul.mubr.bf16.gmra.mrb[0].mxu0 %v381
  %v554 = vpop.f32.mrb[0].mxu0
  %v555 = vadd.f32 %v422, %v554
  %v556 = vpop.f32.mrb[0].mxu0
  %v557 = vpop.f32.mrb[0].mxu0
  %v558 = vadd.f32 %v422, %v557
  %v559 = vpop.f32.mrb[0].mxu0
  %560 = vmatprep.mubr.bf16.mxu0 %v384
  %561 = vmatmul.mubr.bf16.gmra.mrb[0].mxu0 %v383
  %v562 = vpop.f32.mrb[0].mxu0
  %v563 = vadd.f32 %v422, %v562
  %v564 = vpop.f32.mrb[0].mxu0
  %v565 = vpop.f32.mrb[0].mxu0
  %v566 = vpop.f32.mrb[0].mxu0
  %567 = vdwg.mxu0
  %v568 = vmax.f32 %v555, 0.0
  %v569 = vmax.f32 %v558, 0.0
  %v570 = vmax.f32 %v563, 0.0
  %v573 = vrot.slane %v568, 1
  %v574 = vrot.slane %v569, 1
  %v575 = vsel %vm76, %v573, %v574
  %576 = vrot.lane.b32.xlu0 %v575, 64
  %v577 = vpop.permute.xlu0 %576
  %578 = vrot.lane.b32.xlu0 %v574, 64
  %v579 = vpop.permute.xlu0 %578
  %v582 = vrot.slane %v568, 2
  %v583 = vrot.slane %v569, 2
  %v584 = vsel %vm96, %v582, %v583
  %v587 = vrot.slane %v568, 3
  %v588 = vrot.slane %v569, 3
  %v589 = vsel %vm116, %v587, %v588
  %590 = vrot.lane.b32.xlu0 %v589, 64
  %v591 = vpop.permute.xlu0 %590
  %592 = vrot.lane.b32.xlu0 %v588, 64
  %v593 = vpop.permute.xlu0 %592
  %v596 = vrot.slane %v568, 4
  %v597 = vrot.slane %v569, 4
  %v598 = vsel %vm300, %v596, %v597
  %v601 = vrot.slane %v568, 5
  %v602 = vrot.slane %v569, 5
  %v603 = vsel %vm311, %v601, %v602
  %604 = vrot.lane.b32.xlu0 %v603, 64
  %v605 = vpop.permute.xlu0 %604
  %606 = vrot.lane.b32.xlu0 %v602, 64
  %v607 = vpop.permute.xlu0 %606
  %v611 = vrot.slane %v568, 6
  %v612 = vrot.slane %v569, 6
  %v613 = vsel %vm328, %v611, %v612
  %v614 = vrot.slane %v570, 6
  %v615 = vsel %vm328, %v612, %v614
  %v618 = vrot.slane %v568, 7
  %v619 = vrot.slane %v569, 7
  %v620 = vsel %vm345, %v618, %v619
  %v621 = vrot.slane %v570, 7
  %v622 = vsel %vm345, %v619, %v621
  %623 = vrot.lane.b32.xlu0 %v620, 64
  %v624 = vpop.permute.xlu0 %623
  %625 = vrot.lane.b32.xlu0 %v622, 64
  %v626 = vpop.permute.xlu0 %625
  %v629 = vrot.slane %v570, 1
  %v630 = vsel %vm76, %v574, %v629
  %631 = vrot.lane.b32.xlu0 %v630, 64
  %v632 = vpop.permute.xlu0 %631
  %633 = vrot.lane.b32.xlu0 %v629, 64
  %v634 = vpop.permute.xlu0 %633
  %v637 = vrot.slane %v570, 2
  %v638 = vsel %vm96, %v583, %v637
  %v641 = vrot.slane %v570, 3
  %v642 = vsel %vm116, %v588, %v641
  %643 = vrot.lane.b32.xlu0 %v642, 64
  %v644 = vpop.permute.xlu0 %643
  %645 = vrot.lane.b32.xlu0 %v641, 64
  %v646 = vpop.permute.xlu0 %645
  %v649 = vsel %vm192, %v568, %v577
  %v650 = vsel %vm192, %v569, %v579
  %v651 = vsel %vm192, %v584, %v591
  %v652 = vsel %vm192, %v583, %v593
  %v653 = vsel %vm192, %v598, %v605
  %v654 = vsel %vm192, %v597, %v607
  %v655 = vsel %vm192, %v613, %v624
  %v656 = vsel %vm192, %v615, %v626
  %v657 = vsel %vm192, %v569, %v632
  %v658 = vsel %vm192, %v570, %v634
  %v659 = vsel %vm192, %v638, %v644
  %v660 = vsel %vm192, %v637, %v646
  %v661 = vpack.c.bf16 %v650, %v649
  %v662 = vpack.c.bf16 %v652, %v651
  %v663 = vpack.c.bf16 %v654, %v653
  %v664 = vpack.c.bf16 %v656, %v655
  %v665 = vpack.c.bf16 %v658, %v657
  %v666 = vpack.c.bf16 %v660, %v659
  %v667 = vld [vmem:[%s6] sm:$0xf]
  %v668 = vld [vmem:[%s6 + $0x4] sm:$0xf]
  %v669 = vld [vmem:[%s6 + $0x8] sm:$0xf]
  %v670 = vld [vmem:[%s6 + $0xc] sm:$0xf]
  %v671 = vld [vmem:[%s6 + $0x10] sm:$0xf]
  %v672 = vld [vmem:[%s6 + $0x14] sm:$0xf]
  %v673 = vld [vmem:[%s6 + $0x18] sm:$0xf]
  %v674 = vld [vmem:[%s6 + $0x1c] sm:$0xf]
  %v675 = vld [vmem:[%s6 + $0x20] sm:$0xf]
  %v676 = vld [vmem:[%s6 + $0x24] sm:$0xf]
  %v677 = vld [vmem:[%s6 + $0x28] sm:$0xf]
  %v678 = vld [vmem:[%s6 + $0x2c] sm:$0xf]
  %v679 = vld [vmem:[%s6 + $0x30] sm:$0xf]
  %v680 = vld [vmem:[%s6 + $0x34] sm:$0xf]
  %v681 = vld [vmem:[%s6 + $0x38] sm:$0xf]
  %v682 = vld [vmem:[%s6 + $0x3c] sm:$0xf]
  %v683 = vld [vmem:[%s6 + $0x40] sm:$0xf]
  %v684 = vld [vmem:[%s6 + $0x44] sm:$0xf]
  %v685 = vld [vmem:[%s6 + $0x48] sm:$0xf]
  %v686 = vld [vmem:[%s6 + $0x4c] sm:$0xf]
  %v687 = vld [vmem:[%s6 + $0x50] sm:$0xf]
  %v688 = vld [vmem:[%s6 + $0x54] sm:$0xf]
  %v689 = vld [vmem:[%s6 + $0x58] sm:$0xf]
  %v690 = vld [vmem:[%s6 + $0x5c] sm:$0xf]
  %v691 = vld [vmem:[%s6 + $0x60] sm:$0xf]
  %v692 = vld [vmem:[%s6 + $0x64] sm:$0xf]
  %v693 = vld [vmem:[%s6 + $0x68] sm:$0xf]
  %v694 = vld [vmem:[%s6 + $0x6c] sm:$0xf]
  %v695 = vld [vmem:[%s6 + $0x70] sm:$0xf]
  %v696 = vld [vmem:[%s6 + $0x74] sm:$0xf]
  %v697 = vld [vmem:[%s6 + $0x78] sm:$0xf]
  %v698 = vld [vmem:[%s6 + $0x7c] sm:$0xf]
  %v699 = vld [vmem:[%s6 + $0x80] sm:$0xf]
  %v700 = vld [vmem:[%s6 + $0x84] sm:$0xf]
  %v701 = vld [vmem:[%s6 + $0x88] sm:$0xf]
  %v702 = vld [vmem:[%s6 + $0x8c] sm:$0xf]
  %v703 = vld [vmem:[%s6 + $0x90] sm:$0xf]
  %v704 = vld [vmem:[%s6 + $0x94] sm:$0xf]
  %v705 = vld [vmem:[%s6 + $0x98] sm:$0xf]
  %v706 = vld [vmem:[%s6 + $0x9c] sm:$0xf]
  %v707 = vld [vmem:[%s6 + $0xa0] sm:$0xf]
  %v708 = vld [vmem:[%s6 + $0xa4] sm:$0xf]
  %v709 = vld [vmem:[%s6 + $0xa8] sm:$0xf]
  %v710 = vld [vmem:[%s6 + $0xac] sm:$0xf]
  %v711 = vld [vmem:[%s6 + $0xb0] sm:$0xf]
  %v712 = vld [vmem:[%s6 + $0xb4] sm:$0xf]
  %v713 = vld [vmem:[%s6 + $0xb8] sm:$0xf]
  %v714 = vld [vmem:[%s6 + $0xbc] sm:$0xf]
  %v715 = vld [vmem:[%s6 + $0xc0] sm:$0xf]
  %v716 = vld [vmem:[%s6 + $0xc4] sm:$0xf]
  %v717 = vld [vmem:[%s6 + $0xc8] sm:$0xf]
  %v718 = vld [vmem:[%s6 + $0xcc] sm:$0xf]
  %v719 = vld [vmem:[%s6 + $0xd0] sm:$0xf]
  %v720 = vld [vmem:[%s6 + $0xd4] sm:$0xf]
  %v721 = vld [vmem:[%s6 + $0xd8] sm:$0xf]
  %v722 = vld [vmem:[%s6 + $0xdc] sm:$0xf]
  %v723 = vld [vmem:[%s6 + $0xe0] sm:$0xf]
  %v724 = vld [vmem:[%s6 + $0xe4] sm:$0xf]
  %v725 = vld [vmem:[%s6 + $0xe8] sm:$0xf]
  %v726 = vld [vmem:[%s6 + $0xec] sm:$0xf]
  %v727 = vld [vmem:[%s6 + $0xf0] sm:$0xf]
  %v728 = vld [vmem:[%s6 + $0xf4] sm:$0xf]
  %v729 = vld [vmem:[%s6 + $0xf8] sm:$0xf]
  %v730 = vld [vmem:[%s6 + $0xfc] sm:$0xf]
  %v731 = vld [vmem:[%s6 + $0x100] sm:$0xf]
  %v732 = vld [vmem:[%s6 + $0x104] sm:$0xf]
  %v733 = vld [vmem:[%s6 + $0x108] sm:$0xf]
  %v734 = vld [vmem:[%s6 + $0x10c] sm:$0xf]
  %v735 = vld [vmem:[%s6 + $0x110] sm:$0xf]
  %v736 = vld [vmem:[%s6 + $0x114] sm:$0xf]
  %v737 = vld [vmem:[%s6 + $0x118] sm:$0xf]
  %v738 = vld [vmem:[%s6 + $0x11c] sm:$0xf]
  %v739 = vld [vmem:[%s6 + $0x120] sm:$0xf]
  %v740 = vld [vmem:[%s6 + $0x124] sm:$0xf]
  %v741 = vld [vmem:[%s6 + $0x128] sm:$0xf]
  %v742 = vld [vmem:[%s6 + $0x12c] sm:$0xf]
  %v743 = vld [vmem:[%s6 + $0x130] sm:$0xf]
  %v744 = vld [vmem:[%s6 + $0x134] sm:$0xf]
  %v745 = vld [vmem:[%s6 + $0x138] sm:$0xf]
  %v746 = vld [vmem:[%s6 + $0x13c] sm:$0xf]
  %v747 = vld [vmem:[%s6 + $0x140] sm:$0xf]
  %v748 = vld [vmem:[%s6 + $0x144] sm:$0xf]
  %v749 = vld [vmem:[%s6 + $0x148] sm:$0xf]
  %v750 = vld [vmem:[%s6 + $0x14c] sm:$0xf]
  %v751 = vld [vmem:[%s6 + $0x150] sm:$0xf]
  %v752 = vld [vmem:[%s6 + $0x154] sm:$0xf]
  %v753 = vld [vmem:[%s6 + $0x158] sm:$0xf]
  %v754 = vld [vmem:[%s6 + $0x15c] sm:$0xf]
  %v755 = vld [vmem:[%s6 + $0x160] sm:$0xf]
  %v756 = vld [vmem:[%s6 + $0x164] sm:$0xf]
  %v757 = vld [vmem:[%s6 + $0x168] sm:$0xf]
  %v758 = vld [vmem:[%s6 + $0x16c] sm:$0xf]
  %v759 = vld [vmem:[%s6 + $0x170] sm:$0xf]
  %v760 = vld [vmem:[%s6 + $0x174] sm:$0xf]
  %v761 = vld [vmem:[%s6 + $0x178] sm:$0xf]
  %v762 = vld [vmem:[%s6 + $0x17c] sm:$0xf]
  %v763 = vld [vmem:[%s7] sm:$0x1]
  %v765 = vlaneseq
  %v766 = vshrl.u32 %v765, 7
  %v767 = vsub.s32 0, %v766
  %v768 = vrot.slane %v763, %v767
  %v866 = vunpack.c.l.b16 %v667
  %v867 = vunpack.c.l.b16 %v668
  %v868 = vunpack.c.l.b16 %v669
  %v869 = vunpack.c.l.b16 %v670
  %v870 = vunpack.c.l.b16 %v671
  %v871 = vunpack.c.l.b16 %v672
  %v872 = vunpack.c.l.b16 %v673
  %v873 = vunpack.c.l.b16 %v674
  %v874 = vunpack.c.l.b16 %v675
  %v875 = vunpack.c.l.b16 %v676
  %v876 = vunpack.c.l.b16 %v677
  %v877 = vunpack.c.l.b16 %v678
  %v878 = vunpack.c.l.b16 %v679
  %v879 = vunpack.c.l.b16 %v680
  %v880 = vunpack.c.l.b16 %v681
  %v881 = vunpack.c.l.b16 %v682
  %v882 = vunpack.c.l.b16 %v683
  %v883 = vunpack.c.l.b16 %v684
  %v884 = vunpack.c.l.b16 %v685
  %v885 = vunpack.c.l.b16 %v686
  %v886 = vunpack.c.l.b16 %v687
  %v887 = vunpack.c.l.b16 %v688
  %v888 = vunpack.c.l.b16 %v689
  %v889 = vunpack.c.l.b16 %v690
  %v890 = vunpack.c.l.b16 %v691
  %v891 = vunpack.c.l.b16 %v692
  %v892 = vunpack.c.l.b16 %v693
  %v893 = vunpack.c.l.b16 %v694
  %v894 = vunpack.c.l.b16 %v695
  %v895 = vunpack.c.l.b16 %v696
  %v896 = vunpack.c.l.b16 %v697
  %v897 = vunpack.c.l.b16 %v698
  %v898 = vunpack.c.l.b16 %v699
  %v899 = vunpack.c.l.b16 %v700
  %v900 = vunpack.c.l.b16 %v701
  %v901 = vunpack.c.l.b16 %v702
  %v902 = vunpack.c.l.b16 %v703
  %v903 = vunpack.c.l.b16 %v704
  %v904 = vunpack.c.l.b16 %v705
  %v905 = vunpack.c.l.b16 %v706
  %v906 = vunpack.c.l.b16 %v707
  %v907 = vunpack.c.l.b16 %v708
  %v908 = vunpack.c.l.b16 %v709
  %v909 = vunpack.c.l.b16 %v710
  %v910 = vunpack.c.l.b16 %v711
  %v911 = vunpack.c.l.b16 %v712
  %v912 = vunpack.c.l.b16 %v713
  %v913 = vunpack.c.l.b16 %v714
  %v914 = vunpack.c.l.b16 %v715
  %v915 = vunpack.c.l.b16 %v716
  %v916 = vunpack.c.l.b16 %v717
  %v917 = vunpack.c.l.b16 %v718
  %v918 = vunpack.c.l.b16 %v719
  %v919 = vunpack.c.l.b16 %v720
  %v920 = vunpack.c.l.b16 %v721
  %v921 = vunpack.c.l.b16 %v722
  %v922 = vunpack.c.l.b16 %v723
  %v923 = vunpack.c.l.b16 %v724
  %v924 = vunpack.c.l.b16 %v725
  %v925 = vunpack.c.l.b16 %v726
  %v926 = vunpack.c.l.b16 %v727
  %v927 = vunpack.c.l.b16 %v728
  %v928 = vunpack.c.l.b16 %v729
  %v929 = vunpack.c.l.b16 %v730
  %v930 = vunpack.c.l.b16 %v731
  %v931 = vunpack.c.l.b16 %v732
  %v932 = vunpack.c.l.b16 %v733
  %v933 = vunpack.c.l.b16 %v734
  %v934 = vunpack.c.l.b16 %v735
  %v935 = vunpack.c.l.b16 %v736
  %v936 = vunpack.c.l.b16 %v737
  %v937 = vunpack.c.l.b16 %v738
  %v938 = vunpack.c.l.b16 %v739
  %v939 = vunpack.c.l.b16 %v740
  %v940 = vunpack.c.l.b16 %v741
  %v941 = vunpack.c.l.b16 %v742
  %v942 = vunpack.c.l.b16 %v743
  %v943 = vunpack.c.l.b16 %v744
  %v944 = vunpack.c.l.b16 %v745
  %v945 = vunpack.c.l.b16 %v746
  %v946 = vunpack.c.l.b16 %v747
  %v947 = vunpack.c.l.b16 %v748
  %v948 = vunpack.c.l.b16 %v749
  %v949 = vunpack.c.l.b16 %v750
  %v950 = vunpack.c.l.b16 %v751
  %v951 = vunpack.c.l.b16 %v752
  %v952 = vunpack.c.l.b16 %v753
  %v953 = vunpack.c.l.b16 %v754
  %v954 = vunpack.c.l.b16 %v755
  %v955 = vunpack.c.l.b16 %v756
  %v956 = vunpack.c.l.b16 %v757
  %v957 = vunpack.c.l.b16 %v758
  %v958 = vunpack.c.l.b16 %v759
  %v959 = vunpack.c.l.b16 %v760
  %v960 = vunpack.c.l.b16 %v761
  %v961 = vunpack.c.l.b16 %v762
  %v962 = vpack.c.b16 %v867, %v866
  %v963 = vpack.c.b16 %v869, %v868
  %v964 = vpack.c.b16 %v871, %v870
  %v965 = vpack.c.b16 %v873, %v872
  %v966 = vpack.c.b16 %v875, %v874
  %v967 = vpack.c.b16 %v877, %v876
  %v968 = vpack.c.b16 %v879, %v878
  %v969 = vpack.c.b16 %v881, %v880
  %v970 = vpack.c.b16 %v883, %v882
  %v971 = vpack.c.b16 %v885, %v884
  %v972 = vpack.c.b16 %v887, %v886
  %v973 = vpack.c.b16 %v889, %v888
  %v974 = vpack.c.b16 %v891, %v890
  %v975 = vpack.c.b16 %v893, %v892
  %v976 = vpack.c.b16 %v895, %v894
  %v977 = vpack.c.b16 %v897, %v896
  %v978 = vpack.c.b16 %v899, %v898
  %v979 = vpack.c.b16 %v901, %v900
  %v980 = vpack.c.b16 %v903, %v902
  %v981 = vpack.c.b16 %v905, %v904
  %v982 = vpack.c.b16 %v907, %v906
  %v983 = vpack.c.b16 %v909, %v908
  %v984 = vpack.c.b16 %v911, %v910
  %v985 = vpack.c.b16 %v913, %v912
  %v986 = vpack.c.b16 %v915, %v914
  %v987 = vpack.c.b16 %v917, %v916
  %v988 = vpack.c.b16 %v919, %v918
  %v989 = vpack.c.b16 %v921, %v920
  %v990 = vpack.c.b16 %v923, %v922
  %v991 = vpack.c.b16 %v925, %v924
  %v992 = vpack.c.b16 %v927, %v926
  %v993 = vpack.c.b16 %v929, %v928
  %v994 = vpack.c.b16 %v931, %v930
  %v995 = vpack.c.b16 %v933, %v932
  %v996 = vpack.c.b16 %v935, %v934
  %v997 = vpack.c.b16 %v937, %v936
  %v998 = vpack.c.b16 %v939, %v938
  %v999 = vpack.c.b16 %v941, %v940
  %v1000 = vpack.c.b16 %v943, %v942
  %v1001 = vpack.c.b16 %v945, %v944
  %v1002 = vpack.c.b16 %v947, %v946
  %v1003 = vpack.c.b16 %v949, %v948
  %v1004 = vpack.c.b16 %v951, %v950
  %v1005 = vpack.c.b16 %v953, %v952
  %v1006 = vpack.c.b16 %v955, %v954
  %v1007 = vpack.c.b16 %v957, %v956
  %v1008 = vpack.c.b16 %v959, %v958
  %v1009 = vpack.c.b16 %v961, %v960
  %1058 = vmatprep.subr.bf16.mxu0 0
  %1059 = vmatpush1.bf16.msra.mxu0 %v962
  %1060 = vmatprep.subr.bf16.mxu0 0
  %1061 = vmatpush1.bf16.msra.mxu0 %v963
  %1062 = vmatprep.subr.bf16.mxu0 0
  %1063 = vmatpush1.bf16.msra.mxu0 %v964
  %1064 = vmatprep.subr.bf16.mxu0 0
  %1065 = vmatpush1.bf16.msra.mxu0 %v965
  %1066 = vmatprep.subr.bf16.mxu0 0
  %1067 = vmatpush1.bf16.msra.mxu0 %v966
  %1068 = vmatprep.subr.bf16.mxu0 0
  %1069 = vmatpush1.bf16.msra.mxu0 %v967
  %1070 = vmatprep.subr.bf16.mxu0 0
  %1071 = vmatpush1.bf16.msra.mxu0 %v968
  %1072 = vmatprep.subr.bf16.mxu0 0
  %1073 = vmatpush1.bf16.msra.mxu0 %v969
  %1074 = vmatprep.subr.bf16.mxu0 0
  %1075 = vmatpush1.bf16.msra.mxu0 %v970
  %1076 = vmatprep.subr.bf16.mxu0 0
  %1077 = vmatpush1.bf16.msra.mxu0 %v971
  %1078 = vmatprep.subr.bf16.mxu0 0
  %1079 = vmatpush1.bf16.msra.mxu0 %v972
  %1080 = vmatprep.subr.bf16.mxu0 0
  %1081 = vmatpush1.bf16.msra.mxu0 %v973
  %1082 = vmatprep.subr.bf16.mxu0 0
  %1083 = vmatpush1.bf16.msra.mxu0 %v974
  %1084 = vmatprep.subr.bf16.mxu0 0
  %1085 = vmatpush1.bf16.msra.mxu0 %v975
  %1086 = vmatprep.subr.bf16.mxu0 0
  %1087 = vmatpush1.bf16.msra.mxu0 %v976
  %1088 = vmatprep.subr.bf16.mxu0 0
  %1089 = vmatpush1.bf16.msra.mxu0 %v977
  %1090 = vmatprep.mubr.bf16.mxu0 %v662
  %1091 = vmatmul.mubr.bf16.gmra.mrb[0].mxu0 %v661
  %v1092 = vpop.f32.mrb[0].mxu0
  %v1093 = vadd.f32 %v768, %v1092
  %v1094 = vpop.f32.mrb[0].mxu0
  %v1095 = vpop.f32.mrb[0].mxu0
  %v1096 = vadd.f32 %v768, %v1095
  %v1097 = vpop.f32.mrb[0].mxu0
  %1098 = vdwg.mxu0
  %1099 = vmatprep.subr.bf16.mxu0 0
  %1100 = vmatpush1.bf16.msra.mxu0 %v978
  %1101 = vmatprep.subr.bf16.mxu0 0
  %1102 = vmatpush1.bf16.msra.mxu0 %v979
  %1103 = vmatprep.subr.bf16.mxu0 0
  %1104 = vmatpush1.bf16.msra.mxu0 %v980
  %1105 = vmatprep.subr.bf16.mxu0 0
  %1106 = vmatpush1.bf16.msra.mxu0 %v981
  %1107 = vmatprep.subr.bf16.mxu0 0
  %1108 = vmatpush1.bf16.msra.mxu0 %v982
  %1109 = vmatprep.subr.bf16.mxu0 0
  %1110 = vmatpush1.bf16.msra.mxu0 %v983
  %1111 = vmatprep.subr.bf16.mxu0 0
  %1112 = vmatpush1.bf16.msra.mxu0 %v984
  %1113 = vmatprep.subr.bf16.mxu0 0
  %1114 = vmatpush1.bf16.msra.mxu0 %v985
  %1115 = vmatprep.subr.bf16.mxu0 0
  %1116 = vmatpush1.bf16.msra.mxu0 %v986
  %1117 = vmatprep.subr.bf16.mxu0 0
  %1118 = vmatpush1.bf16.msra.mxu0 %v987
  %1119 = vmatprep.subr.bf16.mxu0 0
  %1120 = vmatpush1.bf16.msra.mxu0 %v988
  %1121 = vmatprep.subr.bf16.mxu0 0
  %1122 = vmatpush1.bf16.msra.mxu0 %v989
  %1123 = vmatprep.subr.bf16.mxu0 0
  %1124 = vmatpush1.bf16.msra.mxu0 %v990
  %1125 = vmatprep.subr.bf16.mxu0 0
  %1126 = vmatpush1.bf16.msra.mxu0 %v991
  %1127 = vmatprep.subr.bf16.mxu0 0
  %1128 = vmatpush1.bf16.msra.mxu0 %v992
  %1129 = vmatprep.subr.bf16.mxu0 0
  %1130 = vmatpush1.bf16.msra.mxu0 %v993
  %1131 = vmatprep.mubr.bf16.mxu0 %v664
  %1132 = vmatmul.mubr.bf16.gmra.mrb[0].mxu0 %v663
  %v1133 = vpop.f32.mrb[0].mxu0
  %v1134 = vadd.f32 %v1093, %v1133
  %v1135 = vpop.f32.mrb[0].mxu0
  %v1136 = vpop.f32.mrb[0].mxu0
  %v1137 = vadd.f32 %v1096, %v1136
  %v1138 = vpop.f32.mrb[0].mxu0
  %1139 = vdwg.mxu0
  %1140 = vmatprep.subr.bf16.mxu0 0
  %1141 = vmatpush1.bf16.msra.mxu0 %v994
  %1142 = vmatprep.subr.bf16.mxu0 0
  %1143 = vmatpush1.bf16.msra.mxu0 %v995
  %1144 = vmatprep.subr.bf16.mxu0 0
  %1145 = vmatpush1.bf16.msra.mxu0 %v996
  %1146 = vmatprep.subr.bf16.mxu0 0
  %1147 = vmatpush1.bf16.msra.mxu0 %v997
  %1148 = vmatprep.subr.bf16.mxu0 0
  %1149 = vmatpush1.bf16.msra.mxu0 %v998
  %1150 = vmatprep.subr.bf16.mxu0 0
  %1151 = vmatpush1.bf16.msra.mxu0 %v999
  %1152 = vmatprep.subr.bf16.mxu0 0
  %1153 = vmatpush1.bf16.msra.mxu0 %v1000
  %1154 = vmatprep.subr.bf16.mxu0 0
  %1155 = vmatpush1.bf16.msra.mxu0 %v1001
  %1156 = vmatprep.subr.bf16.mxu0 0
  %1157 = vmatpush1.bf16.msra.mxu0 %v1002
  %1158 = vmatprep.subr.bf16.mxu0 0
  %1159 = vmatpush1.bf16.msra.mxu0 %v1003
  %1160 = vmatprep.subr.bf16.mxu0 0
  %1161 = vmatpush1.bf16.msra.mxu0 %v1004
  %1162 = vmatprep.subr.bf16.mxu0 0
  %1163 = vmatpush1.bf16.msra.mxu0 %v1005
  %1164 = vmatprep.subr.bf16.mxu0 0
  %1165 = vmatpush1.bf16.msra.mxu0 %v1006
  %1166 = vmatprep.subr.bf16.mxu0 0
  %1167 = vmatpush1.bf16.msra.mxu0 %v1007
  %1168 = vmatprep.subr.bf16.mxu0 0
  %1169 = vmatpush1.bf16.msra.mxu0 %v1008
  %1170 = vmatprep.subr.bf16.mxu0 0
  %1171 = vmatpush1.bf16.msra.mxu0 %v1009
  %1172 = vmatprep.mubr.bf16.mxu0 %v666
  %1173 = vmatmul.mubr.bf16.gmra.mrb[0].mxu0 %v665
  %v1174 = vpop.f32.mrb[0].mxu0
  %v1175 = vadd.f32 %v1134, %v1174
  %v1176 = vpop.f32.mrb[0].mxu0
  %v1177 = vpop.f32.mrb[0].mxu0
  %v1178 = vadd.f32 %v1137, %v1177
  %v1179 = vpop.f32.mrb[0].mxu0
  %1180 = vdwg.mxu0
  %v1181 = vmax.f32 %v1175, 0.0
  %v1182 = vmax.f32 %v1178, 0.0
  %v1183 = vsel %vm311, %v1182, 0.0
  %v1184 = vadd.f32 %v1181, %v1183
  %v1185 = vrot.slane %v1184, 4
  %v1186 = vadd.f32 %v1184, %v1185
  %v1187 = vrot.slane %v1186, 2
  %v1188 = vadd.f32 %v1186, %v1187
  %v1189 = vrot.slane %v1188, 1
  %v1190 = vadd.f32 %v1188, %v1189
  %v1191 = vrcp.pop 11.0
  %v1192 = vmul.f32 %v1190, %v1191
  %v1193 = vld [vmem:[%s1] sm:$0xff]
  %v1194 = vld [vmem:[%s1 + $0x8] sm:$0xff]
  %v1195 = vld [vmem:[%s1 + $0x10] sm:$0xff]
  %v1196 = vld [vmem:[%s1 + $0x18] sm:$0xff]
  %v1201 = vrot.slane %v1193, 1
  %v1202 = vrot.slane %v1194, 1
  %v1203 = vsel %vm76, %v1201, %v1202
  %v1204 = vrot.slane %v1195, 1
  %v1205 = vsel %vm76, %v1202, %v1204
  %v1206 = vrot.slane %v1196, 1
  %v1207 = vsel %vm76, %v1204, %v1206
  %1208 = vrot.lane.b32.xlu0 %v1203, 12
  %v1209 = vpop.permute.xlu0 %1208
  %1210 = vrot.lane.b32.xlu0 %v1205, 12
  %v1211 = vpop.permute.xlu0 %1210
  %1212 = vrot.lane.b32.xlu0 %v1207, 12
  %v1213 = vpop.permute.xlu0 %1212
  %1214 = vrot.lane.b32.xlu0 %v1206, 12
  %v1215 = vpop.permute.xlu0 %1214
  %v1220 = vrot.slane %v1193, 2
  %v1221 = vrot.slane %v1194, 2
  %v1222 = vsel %vm96, %v1220, %v1221
  %v1223 = vrot.slane %v1195, 2
  %v1224 = vsel %vm96, %v1221, %v1223
  %v1225 = vrot.slane %v1196, 2
  %v1226 = vsel %vm96, %v1223, %v1225
  %1227 = vrot.lane.b32.xlu0 %v1222, 24
  %v1228 = vpop.permute.xlu0 %1227
  %1229 = vrot.lane.b32.xlu0 %v1224, 24
  %v1230 = vpop.permute.xlu0 %1229
  %1231 = vrot.lane.b32.xlu0 %v1226, 24
  %v1232 = vpop.permute.xlu0 %1231
  %1233 = vrot.lane.b32.xlu0 %v1225, 24
  %v1234 = vpop.permute.xlu0 %1233
  %v1239 = vrot.slane %v1193, 3
  %v1240 = vrot.slane %v1194, 3
  %v1241 = vsel %vm116, %v1239, %v1240
  %v1242 = vrot.slane %v1195, 3
  %v1243 = vsel %vm116, %v1240, %v1242
  %v1244 = vrot.slane %v1196, 3
  %v1245 = vsel %vm116, %v1242, %v1244
  %1246 = vrot.lane.b32.xlu0 %v1241, 36
  %v1247 = vpop.permute.xlu0 %1246
  %1248 = vrot.lane.b32.xlu0 %v1243, 36
  %v1249 = vpop.permute.xlu0 %1248
  %1250 = vrot.lane.b32.xlu0 %v1245, 36
  %v1251 = vpop.permute.xlu0 %1250
  %1252 = vrot.lane.b32.xlu0 %v1244, 36
  %v1253 = vpop.permute.xlu0 %1252
  %vm1258 = vcmask 97280
  %v1259 = vsel %vm1258, %v1193, %v1209
  %v1260 = vsel %vm1258, %v1194, %v1211
  %v1261 = vsel %vm1258, %v1195, %v1213
  %v1262 = vsel %vm1258, %v1196, %v1215
  %vm1263 = vcmask 195584
  %v1264 = vsel %vm1263, %v1259, %v1228
  %v1265 = vsel %vm1263, %v1260, %v1230
  %v1266 = vsel %vm1263, %v1261, %v1232
  %v1267 = vsel %vm1263, %v1262, %v1234
  %vm1268 = vcmask 293888
  %v1269 = vsel %vm1268, %v1264, %v1247
  %v1270 = vsel %vm1268, %v1265, %v1249
  %v1271 = vsel %vm1268, %v1266, %v1251
  %v1272 = vsel %vm1268, %v1267, %v1253
  %v1273 = vpack.c.bf16 %v1270, %v1269
  %v1274 = vpack.c.bf16 %v1272, %v1271
  %v1275 = vld [vmem:[%s8] sm:$0xf]
  %v1276 = vld [vmem:[%s8 + $0x4] sm:$0xf]
  %v1277 = vld [vmem:[%s8 + $0x8] sm:$0xf]
  %v1278 = vld [vmem:[%s8 + $0xc] sm:$0xf]
  %v1279 = vld [vmem:[%s8 + $0x10] sm:$0xf]
  %v1280 = vld [vmem:[%s8 + $0x14] sm:$0xf]
  %v1281 = vld [vmem:[%s9] sm:$0x1]
  %v1283 = vlaneseq
  %v1284 = vshrl.u32 %v1283, 7
  %v1285 = vsub.s32 0, %v1284
  %v1286 = vrot.slane %v1281, %v1285
  %v1294 = vunpack.c.l.b16 %v1275
  %v1295 = vunpack.c.l.b16 %v1276
  %v1296 = vunpack.c.l.b16 %v1277
  %v1297 = vunpack.c.l.b16 %v1278
  %v1298 = vunpack.c.l.b16 %v1279
  %v1299 = vunpack.c.l.b16 %v1280
  %v1300 = vpack.c.b16 %v1295, %v1294
  %v1301 = vpack.c.b16 %v1297, %v1296
  %v1302 = vpack.c.b16 %v1299, %v1298
  %v1307 = vsel %vm146, %v1273, 0
  %v1310 = vsel %vm146, %v1274, 0
  %1312 = vmatprep.subr.bf16.mxu0 0
  %1313 = vmatpush1.bf16.msra.mxu0 %v1300
  %1314 = vmatprep.subr.bf16.mxu0 0
  %1315 = vmatpush1.bf16.msra.mxu0 %v1301
  %1316 = vmatprep.subr.bf16.mxu0 0
  %1317 = vmatpush1.bf16.msra.mxu0 %v1302
  %1318 = vmatprep.subr.bf16.mxu0 0
  %1319 = vmatpush1.bf16.msra.mxu0 0
  %1320 = vmatprep.subr.bf16.mxu0 0
  %1321 = vmatpush1.bf16.msra.mxu0 0
  %1322 = vmatprep.subr.bf16.mxu0 0
  %1323 = vmatpush1.bf16.msra.mxu0 0
  %1324 = vmatprep.subr.bf16.mxu0 0
  %1325 = vmatpush1.bf16.msra.mxu0 0
  %1326 = vmatprep.subr.bf16.mxu0 0
  %1327 = vmatpush1.bf16.msra.mxu0 0
  %1328 = vmatprep.subr.bf16.mxu0 0
  %1329 = vmatpush1.bf16.msra.mxu0 0
  %1330 = vmatprep.subr.bf16.mxu0 0
  %1331 = vmatpush1.bf16.msra.mxu0 0
  %1332 = vmatprep.subr.bf16.mxu0 0
  %1333 = vmatpush1.bf16.msra.mxu0 0
  %1334 = vmatprep.subr.bf16.mxu0 0
  %1335 = vmatpush1.bf16.msra.mxu0 0
  %1336 = vmatprep.subr.bf16.mxu0 0
  %1337 = vmatpush1.bf16.msra.mxu0 0
  %1338 = vmatprep.subr.bf16.mxu0 0
  %1339 = vmatpush1.bf16.msra.mxu0 0
  %1340 = vmatprep.subr.bf16.mxu0 0
  %1341 = vmatpush1.bf16.msra.mxu0 0
  %1342 = vmatprep.subr.bf16.mxu0 0
  %1343 = vmatpush1.bf16.msra.mxu0 0
  %1344 = vmatprep.mubr.bf16.mxu0 0
  %1345 = vmatmul.mubr.bf16.gmra.mrb[0].mxu0 %v1307
  %v1346 = vpop.f32.mrb[0].mxu0
  %v1347 = vadd.f32 %v1286, %v1346
  %v1348 = vpop.f32.mrb[0].mxu0
  %v1349 = vpop.f32.mrb[0].mxu0
  %v1350 = vadd.f32 %v1286, %v1349
  %v1351 = vpop.f32.mrb[0].mxu0
  %1352 = vmatprep.mubr.bf16.mxu0 0
  %1353 = vmatmul.mubr.bf16.gmra.mrb[0].mxu0 %v1310
  %v1354 = vpop.f32.mrb[0].mxu0
  %v1355 = vadd.f32 %v1286, %v1354
  %v1356 = vpop.f32.mrb[0].mxu0
  %v1357 = vpop.f32.mrb[0].mxu0
  %v1358 = vadd.f32 %v1286, %v1357
  %v1359 = vpop.f32.mrb[0].mxu0
  %1360 = vdwg.mxu0
  %v1361 = vmax.f32 %v1347, 0.0
  %v1362 = vmax.f32 %v1350, 0.0
  %v1363 = vmax.f32 %v1355, 0.0
  %v1364 = vmax.f32 %v1358, 0.0
  %v1369 = vrot.slane %v1361, 1
  %v1370 = vrot.slane %v1362, 1
  %v1371 = vsel %vm76, %v1369, %v1370
  %v1372 = vrot.slane %v1363, 1
  %v1373 = vsel %vm76, %v1370, %v1372
  %v1374 = vrot.slane %v1364, 1
  %v1375 = vsel %vm76, %v1372, %v1374
  %1376 = vrot.lane.b32.xlu0 %v1371, 32
  %v1377 = vpop.permute.xlu0 %1376
  %1378 = vrot.lane.b32.xlu0 %v1373, 32
  %v1379 = vpop.permute.xlu0 %1378
  %1380 = vrot.lane.b32.xlu0 %v1375, 32
  %v1381 = vpop.permute.xlu0 %1380
  %v1385 = vrot.slane %v1361, 2
  %v1386 = vrot.slane %v1362, 2
  %v1387 = vsel %vm96, %v1385, %v1386
  %v1388 = vrot.slane %v1363, 2
  %v1389 = vsel %vm96, %v1386, %v1388
  %v1390 = vrot.slane %v1364, 2
  %v1391 = vsel %vm96, %v1388, %v1390
  %1392 = vrot.lane.b32.xlu0 %v1387, 64
  %v1393 = vpop.permute.xlu0 %1392
  %1394 = vrot.lane.b32.xlu0 %v1389, 64
  %v1395 = vpop.permute.xlu0 %1394
  %1396 = vrot.lane.b32.xlu0 %v1391, 64
  %v1397 = vpop.permute.xlu0 %1396
  %v1401 = vrot.slane %v1361, 3
  %v1402 = vrot.slane %v1362, 3
  %v1403 = vsel %vm116, %v1401, %v1402
  %v1404 = vrot.slane %v1363, 3
  %v1405 = vsel %vm116, %v1402, %v1404
  %v1406 = vrot.slane %v1364, 3
  %v1407 = vsel %vm116, %v1404, %v1406
  %1408 = vrot.lane.b32.xlu0 %v1403, 96
  %v1409 = vpop.permute.xlu0 %1408
  %1410 = vrot.lane.b32.xlu0 %v1405, 96
  %v1411 = vpop.permute.xlu0 %1410
  %1412 = vrot.lane.b32.xlu0 %v1407, 96
  %v1413 = vpop.permute.xlu0 %1412
  %v1417 = vrot.slane %v1361, 4
  %v1418 = vrot.slane %v1362, 4
  %v1419 = vsel %vm300, %v1417, %v1418
  %v1420 = vrot.slane %v1363, 4
  %v1421 = vsel %vm300, %v1418, %v1420
  %v1422 = vrot.slane %v1364, 4
  %v1423 = vsel %vm300, %v1420, %v1422
  %v1427 = vrot.slane %v1361, 5
  %v1428 = vrot.slane %v1362, 5
  %v1429 = vsel %vm311, %v1427, %v1428
  %v1430 = vrot.slane %v1363, 5
  %v1431 = vsel %vm311, %v1428, %v1430
  %v1432 = vrot.slane %v1364, 5
  %v1433 = vsel %vm311, %v1430, %v1432
  %1434 = vrot.lane.b32.xlu0 %v1429, 32
  %v1435 = vpop.permute.xlu0 %1434
  %1436 = vrot.lane.b32.xlu0 %v1431, 32
  %v1437 = vpop.permute.xlu0 %1436
  %1438 = vrot.lane.b32.xlu0 %v1433, 32
  %v1439 = vpop.permute.xlu0 %1438
  %v1443 = vsel %vm141, %v1361, %v1377
  %v1444 = vsel %vm141, %v1362, %v1379
  %v1445 = vsel %vm141, %v1363, %v1381
  %v1446 = vsel %vm192, %v1443, %v1393
  %v1447 = vsel %vm192, %v1444, %v1395
  %v1448 = vsel %vm192, %v1445, %v1397
  %v1449 = vsel %vm368, %v1446, %v1409
  %v1450 = vsel %vm368, %v1447, %v1411
  %v1451 = vsel %vm368, %v1448, %v1413
  %v1452 = vsel %vm141, %v1419, %v1435
  %v1453 = vsel %vm141, %v1421, %v1437
  %v1454 = vsel %vm141, %v1423, %v1439
  %v1455 = vpack.c.bf16 %v1450, %v1449
  %v1456 = vpack.c.bf16 %v1453, %v1452
  %v1457 = vpack.c.bf16 %v1451, %v1451
  %v1458 = vpack.c.bf16 %v1454, %v1454
  %v1459 = vld [vmem:[%s10] sm:$0xf]
  %v1460 = vld [vmem:[%s10 + $0x4] sm:$0xf]
  %v1461 = vld [vmem:[%s10 + $0x8] sm:$0xf]
  %v1462 = vld [vmem:[%s10 + $0xc] sm:$0xf]
  %v1463 = vld [vmem:[%s10 + $0x10] sm:$0xf]
  %v1464 = vld [vmem:[%s10 + $0x14] sm:$0xf]
  %v1465 = vld [vmem:[%s10 + $0x18] sm:$0xf]
  %v1466 = vld [vmem:[%s10 + $0x1c] sm:$0xf]
  %v1467 = vld [vmem:[%s10 + $0x20] sm:$0xf]
  %v1468 = vld [vmem:[%s10 + $0x24] sm:$0xf]
  %v1469 = vld [vmem:[%s10 + $0x28] sm:$0xf]
  %v1470 = vld [vmem:[%s10 + $0x2c] sm:$0xf]
  %v1471 = vld [vmem:[%s10 + $0x30] sm:$0xf]
  %v1472 = vld [vmem:[%s10 + $0x34] sm:$0xf]
  %v1473 = vld [vmem:[%s10 + $0x38] sm:$0xf]
  %v1474 = vld [vmem:[%s10 + $0x3c] sm:$0xf]
  %v1475 = vld [vmem:[%s10 + $0x40] sm:$0xf]
  %v1476 = vld [vmem:[%s10 + $0x44] sm:$0xf]
  %v1477 = vld [vmem:[%s10 + $0x48] sm:$0xf]
  %v1478 = vld [vmem:[%s10 + $0x4c] sm:$0xf]
  %v1479 = vld [vmem:[%s10 + $0x50] sm:$0xf]
  %v1480 = vld [vmem:[%s10 + $0x54] sm:$0xf]
  %v1481 = vld [vmem:[%s10 + $0x58] sm:$0xf]
  %v1482 = vld [vmem:[%s10 + $0x5c] sm:$0xf]
  %v1483 = vld [vmem:[%s11] sm:$0x1]
  %v1485 = vlaneseq
  %v1486 = vshrl.u32 %v1485, 7
  %v1487 = vsub.s32 0, %v1486
  %v1488 = vrot.slane %v1483, %v1487
  %v1514 = vunpack.c.l.b16 %v1459
  %v1515 = vunpack.c.l.b16 %v1460
  %v1516 = vunpack.c.l.b16 %v1461
  %v1517 = vunpack.c.l.b16 %v1462
  %v1518 = vunpack.c.l.b16 %v1463
  %v1519 = vunpack.c.l.b16 %v1464
  %v1520 = vunpack.c.l.b16 %v1465
  %v1521 = vunpack.c.l.b16 %v1466
  %v1522 = vunpack.c.l.b16 %v1467
  %v1523 = vunpack.c.l.b16 %v1468
  %v1524 = vunpack.c.l.b16 %v1469
  %v1525 = vunpack.c.l.b16 %v1470
  %v1526 = vunpack.c.l.b16 %v1471
  %v1527 = vunpack.c.l.b16 %v1472
  %v1528 = vunpack.c.l.b16 %v1473
  %v1529 = vunpack.c.l.b16 %v1474
  %v1530 = vunpack.c.l.b16 %v1475
  %v1531 = vunpack.c.l.b16 %v1476
  %v1532 = vunpack.c.l.b16 %v1477
  %v1533 = vunpack.c.l.b16 %v1478
  %v1534 = vunpack.c.l.b16 %v1479
  %v1535 = vunpack.c.l.b16 %v1480
  %v1536 = vunpack.c.l.b16 %v1481
  %v1537 = vunpack.c.l.b16 %v1482
  %v1538 = vpack.c.b16 %v1515, %v1514
  %v1539 = vpack.c.b16 %v1517, %v1516
  %v1540 = vpack.c.b16 %v1519, %v1518
  %v1541 = vpack.c.b16 %v1521, %v1520
  %v1542 = vpack.c.b16 %v1523, %v1522
  %v1543 = vpack.c.b16 %v1525, %v1524
  %v1544 = vpack.c.b16 %v1527, %v1526
  %v1545 = vpack.c.b16 %v1529, %v1528
  %v1546 = vpack.c.b16 %v1531, %v1530
  %v1547 = vpack.c.b16 %v1533, %v1532
  %v1548 = vpack.c.b16 %v1535, %v1534
  %v1549 = vpack.c.b16 %v1537, %v1536
  %v1563 = vsel %vm192, %v1456, 0
  %v1566 = vsel %vm192, %v1458, 0
  %1568 = vmatprep.subr.bf16.mxu0 0
  %1569 = vmatpush1.bf16.msra.mxu0 %v1538
  %1570 = vmatprep.subr.bf16.mxu0 0
  %1571 = vmatpush1.bf16.msra.mxu0 %v1539
  %1572 = vmatprep.subr.bf16.mxu0 0
  %1573 = vmatpush1.bf16.msra.mxu0 %v1540
  %1574 = vmatprep.subr.bf16.mxu0 0
  %1575 = vmatpush1.bf16.msra.mxu0 %v1541
  %1576 = vmatprep.subr.bf16.mxu0 0
  %1577 = vmatpush1.bf16.msra.mxu0 %v1542
  %1578 = vmatprep.subr.bf16.mxu0 0
  %1579 = vmatpush1.bf16.msra.mxu0 %v1543
  %1580 = vmatprep.subr.bf16.mxu0 0
  %1581 = vmatpush1.bf16.msra.mxu0 %v1544
  %1582 = vmatprep.subr.bf16.mxu0 0
  %1583 = vmatpush1.bf16.msra.mxu0 %v1545
  %1584 = vmatprep.subr.bf16.mxu0 0
  %1585 = vmatpush1.bf16.msra.mxu0 %v1546
  %1586 = vmatprep.subr.bf16.mxu0 0
  %1587 = vmatpush1.bf16.msra.mxu0 %v1547
  %1588 = vmatprep.subr.bf16.mxu0 0
  %1589 = vmatpush1.bf16.msra.mxu0 %v1548
  %1590 = vmatprep.subr.bf16.mxu0 0
  %1591 = vmatpush1.bf16.msra.mxu0 %v1549
  %1592 = vmatprep.subr.bf16.mxu0 0
  %1593 = vmatpush1.bf16.msra.mxu0 0
  %1594 = vmatprep.subr.bf16.mxu0 0
  %1595 = vmatpush1.bf16.msra.mxu0 0
  %1596 = vmatprep.subr.bf16.mxu0 0
  %1597 = vmatpush1.bf16.msra.mxu0 0
  %1598 = vmatprep.subr.bf16.mxu0 0
  %1599 = vmatpush1.bf16.msra.mxu0 0
  %1600 = vmatprep.mubr.bf16.mxu0 %v1563
  %1601 = vmatmul.mubr.bf16.gmra.mrb[0].mxu0 %v1455
  %v1602 = vpop.f32.mrb[0].mxu0
  %v1603 = vadd.f32 %v1488, %v1602
  %v1604 = vpop.f32.mrb[0].mxu0
  %v1605 = vpop.f32.mrb[0].mxu0
  %v1606 = vadd.f32 %v1488, %v1605
  %v1607 = vpop.f32.mrb[0].mxu0
  %1608 = vmatprep.mubr.bf16.mxu0 %v1566
  %1609 = vmatmul.mubr.bf16.gmra.mrb[0].mxu0 %v1457
  %v1610 = vpop.f32.mrb[0].mxu0
  %v1611 = vadd.f32 %v1488, %v1610
  %v1612 = vpop.f32.mrb[0].mxu0
  %v1613 = vpop.f32.mrb[0].mxu0
  %v1614 = vpop.f32.mrb[0].mxu0
  %1615 = vdwg.mxu0
  %v1616 = vmax.f32 %v1603, 0.0
  %v1617 = vmax.f32 %v1606, 0.0
  %v1618 = vmax.f32 %v1611, 0.0
  %v1622 = vrot.slane %v1616, 1
  %v1623 = vrot.slane %v1617, 1
  %v1624 = vsel %vm76, %v1622, %v1623
  %v1625 = vrot.slane %v1618, 1
  %v1626 = vsel %vm76, %v1623, %v1625
  %1627 = vrot.lane.b32.xlu0 %v1624, 64
  %v1628 = vpop.permute.xlu0 %1627
  %1629 = vrot.lane.b32.xlu0 %v1626, 64
  %v1630 = vpop.permute.xlu0 %1629
  %1631 = vrot.lane.b32.xlu0 %v1625, 64
  %v1632 = vpop.permute.xlu0 %1631
  %v1636 = vrot.slane %v1616, 2
  %v1637 = vrot.slane %v1617, 2
  %v1638 = vsel %vm96, %v1636, %v1637
  %v1639 = vrot.slane %v1618, 2
  %v1640 = vsel %vm96, %v1637, %v1639
  %v1644 = vrot.slane %v1616, 3
  %v1645 = vrot.slane %v1617, 3
  %v1646 = vsel %vm116, %v1644, %v1645
  %v1647 = vrot.slane %v1618, 3
  %v1648 = vsel %vm116, %v1645, %v1647
  %1649 = vrot.lane.b32.xlu0 %v1646, 64
  %v1650 = vpop.permute.xlu0 %1649
  %1651 = vrot.lane.b32.xlu0 %v1648, 64
  %v1652 = vpop.permute.xlu0 %1651
  %1653 = vrot.lane.b32.xlu0 %v1647, 64
  %v1654 = vpop.permute.xlu0 %1653
  %v1658 = vrot.slane %v1616, 4
  %v1659 = vrot.slane %v1617, 4
  %v1660 = vsel %vm300, %v1658, %v1659
  %v1661 = vrot.slane %v1618, 4
  %v1662 = vsel %vm300, %v1659, %v1661
  %v1666 = vrot.slane %v1616, 5
  %v1667 = vrot.slane %v1617, 5
  %v1668 = vsel %vm311, %v1666, %v1667
  %v1669 = vrot.slane %v1618, 5
  %v1670 = vsel %vm311, %v1667, %v1669
  %1671 = vrot.lane.b32.xlu0 %v1668, 64
  %v1672 = vpop.permute.xlu0 %1671
  %1673 = vrot.lane.b32.xlu0 %v1670, 64
  %v1674 = vpop.permute.xlu0 %1673
  %1675 = vrot.lane.b32.xlu0 %v1669, 64
  %v1676 = vpop.permute.xlu0 %1675
  %v1680 = vrot.slane %v1616, 6
  %v1681 = vrot.slane %v1617, 6
  %v1682 = vsel %vm328, %v1680, %v1681
  %v1683 = vrot.slane %v1618, 6
  %v1684 = vsel %vm328, %v1681, %v1683
  %v1688 = vrot.slane %v1616, 7
  %v1689 = vrot.slane %v1617, 7
  %v1690 = vsel %vm345, %v1688, %v1689
  %v1691 = vrot.slane %v1618, 7
  %v1692 = vsel %vm345, %v1689, %v1691
  %1693 = vrot.lane.b32.xlu0 %v1690, 64
  %v1694 = vpop.permute.xlu0 %1693
  %1695 = vrot.lane.b32.xlu0 %v1692, 64
  %v1696 = vpop.permute.xlu0 %1695
  %1697 = vrot.lane.b32.xlu0 %v1691, 64
  %v1698 = vpop.permute.xlu0 %1697
  %v1702 = vsel %vm192, %v1616, %v1628
  %v1703 = vsel %vm192, %v1617, %v1630
  %v1704 = vsel %vm192, %v1618, %v1632
  %v1705 = vsel %vm192, %v1638, %v1650
  %v1706 = vsel %vm192, %v1640, %v1652
  %v1707 = vsel %vm192, %v1639, %v1654
  %v1708 = vsel %vm192, %v1660, %v1672
  %v1709 = vsel %vm192, %v1662, %v1674
  %v1710 = vsel %vm192, %v1661, %v1676
  %v1711 = vsel %vm192, %v1682, %v1694
  %v1712 = vsel %vm192, %v1684, %v1696
  %v1713 = vsel %vm192, %v1683, %v1698
  %v1714 = vpack.c.bf16 %v1703, %v1702
  %v1715 = vpack.c.bf16 %v1706, %v1705
  %v1716 = vpack.c.bf16 %v1709, %v1708
  %v1717 = vpack.c.bf16 %v1712, %v1711
  %v1718 = vpack.c.bf16 %v1704, %v1704
  %v1719 = vpack.c.bf16 %v1707, %v1707
  %v1720 = vpack.c.bf16 %v1710, %v1710
  %v1721 = vpack.c.bf16 %v1713, %v1713
  %v1722 = vld [vmem:[%s12] sm:$0xf]
  %v1723 = vld [vmem:[%s12 + $0x4] sm:$0xf]
  %v1724 = vld [vmem:[%s12 + $0x8] sm:$0xf]
  %v1725 = vld [vmem:[%s12 + $0xc] sm:$0xf]
  %v1726 = vld [vmem:[%s12 + $0x10] sm:$0xf]
  %v1727 = vld [vmem:[%s12 + $0x14] sm:$0xf]
  %v1728 = vld [vmem:[%s12 + $0x18] sm:$0xf]
  %v1729 = vld [vmem:[%s12 + $0x1c] sm:$0xf]
  %v1730 = vld [vmem:[%s12 + $0x20] sm:$0xf]
  %v1731 = vld [vmem:[%s12 + $0x24] sm:$0xf]
  %v1732 = vld [vmem:[%s12 + $0x28] sm:$0xf]
  %v1733 = vld [vmem:[%s12 + $0x2c] sm:$0xf]
  %v1734 = vld [vmem:[%s12 + $0x30] sm:$0xf]
  %v1735 = vld [vmem:[%s12 + $0x34] sm:$0xf]
  %v1736 = vld [vmem:[%s12 + $0x38] sm:$0xf]
  %v1737 = vld [vmem:[%s12 + $0x3c] sm:$0xf]
  %v1738 = vld [vmem:[%s12 + $0x40] sm:$0xf]
  %v1739 = vld [vmem:[%s12 + $0x44] sm:$0xf]
  %v1740 = vld [vmem:[%s12 + $0x48] sm:$0xf]
  %v1741 = vld [vmem:[%s12 + $0x4c] sm:$0xf]
  %v1742 = vld [vmem:[%s12 + $0x50] sm:$0xf]
  %v1743 = vld [vmem:[%s12 + $0x54] sm:$0xf]
  %v1744 = vld [vmem:[%s12 + $0x58] sm:$0xf]
  %v1745 = vld [vmem:[%s12 + $0x5c] sm:$0xf]
  %v1746 = vld [vmem:[%s12 + $0x60] sm:$0xf]
  %v1747 = vld [vmem:[%s12 + $0x64] sm:$0xf]
  %v1748 = vld [vmem:[%s12 + $0x68] sm:$0xf]
  %v1749 = vld [vmem:[%s12 + $0x6c] sm:$0xf]
  %v1750 = vld [vmem:[%s12 + $0x70] sm:$0xf]
  %v1751 = vld [vmem:[%s12 + $0x74] sm:$0xf]
  %v1752 = vld [vmem:[%s12 + $0x78] sm:$0xf]
  %v1753 = vld [vmem:[%s12 + $0x7c] sm:$0xf]
  %v1754 = vld [vmem:[%s12 + $0x80] sm:$0xf]
  %v1755 = vld [vmem:[%s12 + $0x84] sm:$0xf]
  %v1756 = vld [vmem:[%s12 + $0x88] sm:$0xf]
  %v1757 = vld [vmem:[%s12 + $0x8c] sm:$0xf]
  %v1758 = vld [vmem:[%s12 + $0x90] sm:$0xf]
  %v1759 = vld [vmem:[%s12 + $0x94] sm:$0xf]
  %v1760 = vld [vmem:[%s12 + $0x98] sm:$0xf]
  %v1761 = vld [vmem:[%s12 + $0x9c] sm:$0xf]
  %v1762 = vld [vmem:[%s12 + $0xa0] sm:$0xf]
  %v1763 = vld [vmem:[%s12 + $0xa4] sm:$0xf]
  %v1764 = vld [vmem:[%s12 + $0xa8] sm:$0xf]
  %v1765 = vld [vmem:[%s12 + $0xac] sm:$0xf]
  %v1766 = vld [vmem:[%s12 + $0xb0] sm:$0xf]
  %v1767 = vld [vmem:[%s12 + $0xb4] sm:$0xf]
  %v1768 = vld [vmem:[%s12 + $0xb8] sm:$0xf]
  %v1769 = vld [vmem:[%s12 + $0xbc] sm:$0xf]
  %v1770 = vld [vmem:[%s12 + $0xc0] sm:$0xf]
  %v1771 = vld [vmem:[%s12 + $0xc4] sm:$0xf]
  %v1772 = vld [vmem:[%s12 + $0xc8] sm:$0xf]
  %v1773 = vld [vmem:[%s12 + $0xcc] sm:$0xf]
  %v1774 = vld [vmem:[%s12 + $0xd0] sm:$0xf]
  %v1775 = vld [vmem:[%s12 + $0xd4] sm:$0xf]
  %v1776 = vld [vmem:[%s12 + $0xd8] sm:$0xf]
  %v1777 = vld [vmem:[%s12 + $0xdc] sm:$0xf]
  %v1778 = vld [vmem:[%s12 + $0xe0] sm:$0xf]
  %v1779 = vld [vmem:[%s12 + $0xe4] sm:$0xf]
  %v1780 = vld [vmem:[%s12 + $0xe8] sm:$0xf]
  %v1781 = vld [vmem:[%s12 + $0xec] sm:$0xf]
  %v1782 = vld [vmem:[%s12 + $0xf0] sm:$0xf]
  %v1783 = vld [vmem:[%s12 + $0xf4] sm:$0xf]
  %v1784 = vld [vmem:[%s12 + $0xf8] sm:$0xf]
  %v1785 = vld [vmem:[%s12 + $0xfc] sm:$0xf]
  %v1786 = vld [vmem:[%s13] sm:$0x1]
  %v1788 = vlaneseq
  %v1789 = vshrl.u32 %v1788, 7
  %v1790 = vsub.s32 0, %v1789
  %v1791 = vrot.slane %v1786, %v1790
  %v1857 = vunpack.c.l.b16 %v1722
  %v1858 = vunpack.c.l.b16 %v1723
  %v1859 = vunpack.c.l.b16 %v1724
  %v1860 = vunpack.c.l.b16 %v1725
  %v1861 = vunpack.c.l.b16 %v1726
  %v1862 = vunpack.c.l.b16 %v1727
  %v1863 = vunpack.c.l.b16 %v1728
  %v1864 = vunpack.c.l.b16 %v1729
  %v1865 = vunpack.c.l.b16 %v1730
  %v1866 = vunpack.c.l.b16 %v1731
  %v1867 = vunpack.c.l.b16 %v1732
  %v1868 = vunpack.c.l.b16 %v1733
  %v1869 = vunpack.c.l.b16 %v1734
  %v1870 = vunpack.c.l.b16 %v1735
  %v1871 = vunpack.c.l.b16 %v1736
  %v1872 = vunpack.c.l.b16 %v1737
  %v1873 = vunpack.c.l.b16 %v1738
  %v1874 = vunpack.c.l.b16 %v1739
  %v1875 = vunpack.c.l.b16 %v1740
  %v1876 = vunpack.c.l.b16 %v1741
  %v1877 = vunpack.c.l.b16 %v1742
  %v1878 = vunpack.c.l.b16 %v1743
  %v1879 = vunpack.c.l.b16 %v1744
  %v1880 = vunpack.c.l.b16 %v1745
  %v1881 = vunpack.c.l.b16 %v1746
  %v1882 = vunpack.c.l.b16 %v1747
  %v1883 = vunpack.c.l.b16 %v1748
  %v1884 = vunpack.c.l.b16 %v1749
  %v1885 = vunpack.c.l.b16 %v1750
  %v1886 = vunpack.c.l.b16 %v1751
  %v1887 = vunpack.c.l.b16 %v1752
  %v1888 = vunpack.c.l.b16 %v1753
  %v1889 = vunpack.c.l.b16 %v1754
  %v1890 = vunpack.c.l.b16 %v1755
  %v1891 = vunpack.c.l.b16 %v1756
  %v1892 = vunpack.c.l.b16 %v1757
  %v1893 = vunpack.c.l.b16 %v1758
  %v1894 = vunpack.c.l.b16 %v1759
  %v1895 = vunpack.c.l.b16 %v1760
  %v1896 = vunpack.c.l.b16 %v1761
  %v1897 = vunpack.c.l.b16 %v1762
  %v1898 = vunpack.c.l.b16 %v1763
  %v1899 = vunpack.c.l.b16 %v1764
  %v1900 = vunpack.c.l.b16 %v1765
  %v1901 = vunpack.c.l.b16 %v1766
  %v1902 = vunpack.c.l.b16 %v1767
  %v1903 = vunpack.c.l.b16 %v1768
  %v1904 = vunpack.c.l.b16 %v1769
  %v1905 = vunpack.c.l.b16 %v1770
  %v1906 = vunpack.c.l.b16 %v1771
  %v1907 = vunpack.c.l.b16 %v1772
  %v1908 = vunpack.c.l.b16 %v1773
  %v1909 = vunpack.c.l.b16 %v1774
  %v1910 = vunpack.c.l.b16 %v1775
  %v1911 = vunpack.c.l.b16 %v1776
  %v1912 = vunpack.c.l.b16 %v1777
  %v1913 = vunpack.c.l.b16 %v1778
  %v1914 = vunpack.c.l.b16 %v1779
  %v1915 = vunpack.c.l.b16 %v1780
  %v1916 = vunpack.c.l.b16 %v1781
  %v1917 = vunpack.c.l.b16 %v1782
  %v1918 = vunpack.c.l.b16 %v1783
  %v1919 = vunpack.c.l.b16 %v1784
  %v1920 = vunpack.c.l.b16 %v1785
  %v1921 = vpack.c.b16 %v1858, %v1857
  %v1922 = vpack.c.b16 %v1860, %v1859
  %v1923 = vpack.c.b16 %v1862, %v1861
  %v1924 = vpack.c.b16 %v1864, %v1863
  %v1925 = vpack.c.b16 %v1866, %v1865
  %v1926 = vpack.c.b16 %v1868, %v1867
  %v1927 = vpack.c.b16 %v1870, %v1869
  %v1928 = vpack.c.b16 %v1872, %v1871
  %v1929 = vpack.c.b16 %v1874, %v1873
  %v1930 = vpack.c.b16 %v1876, %v1875
  %v1931 = vpack.c.b16 %v1878, %v1877
  %v1932 = vpack.c.b16 %v1880, %v1879
  %v1933 = vpack.c.b16 %v1882, %v1881
  %v1934 = vpack.c.b16 %v1884, %v1883
  %v1935 = vpack.c.b16 %v1886, %v1885
  %v1936 = vpack.c.b16 %v1888, %v1887
  %v1937 = vpack.c.b16 %v1890, %v1889
  %v1938 = vpack.c.b16 %v1892, %v1891
  %v1939 = vpack.c.b16 %v1894, %v1893
  %v1940 = vpack.c.b16 %v1896, %v1895
  %v1941 = vpack.c.b16 %v1898, %v1897
  %v1942 = vpack.c.b16 %v1900, %v1899
  %v1943 = vpack.c.b16 %v1902, %v1901
  %v1944 = vpack.c.b16 %v1904, %v1903
  %v1945 = vpack.c.b16 %v1906, %v1905
  %v1946 = vpack.c.b16 %v1908, %v1907
  %v1947 = vpack.c.b16 %v1910, %v1909
  %v1948 = vpack.c.b16 %v1912, %v1911
  %v1949 = vpack.c.b16 %v1914, %v1913
  %v1950 = vpack.c.b16 %v1916, %v1915
  %v1951 = vpack.c.b16 %v1918, %v1917
  %v1952 = vpack.c.b16 %v1920, %v1919
  %1985 = vmatprep.subr.bf16.mxu0 0
  %1986 = vmatpush1.bf16.msra.mxu0 %v1921
  %1987 = vmatprep.subr.bf16.mxu0 0
  %1988 = vmatpush1.bf16.msra.mxu0 %v1922
  %1989 = vmatprep.subr.bf16.mxu0 0
  %1990 = vmatpush1.bf16.msra.mxu0 %v1923
  %1991 = vmatprep.subr.bf16.mxu0 0
  %1992 = vmatpush1.bf16.msra.mxu0 %v1924
  %1993 = vmatprep.subr.bf16.mxu0 0
  %1994 = vmatpush1.bf16.msra.mxu0 %v1925
  %1995 = vmatprep.subr.bf16.mxu0 0
  %1996 = vmatpush1.bf16.msra.mxu0 %v1926
  %1997 = vmatprep.subr.bf16.mxu0 0
  %1998 = vmatpush1.bf16.msra.mxu0 %v1927
  %1999 = vmatprep.subr.bf16.mxu0 0
  %2000 = vmatpush1.bf16.msra.mxu0 %v1928
  %2001 = vmatprep.subr.bf16.mxu0 0
  %2002 = vmatpush1.bf16.msra.mxu0 %v1929
  %2003 = vmatprep.subr.bf16.mxu0 0
  %2004 = vmatpush1.bf16.msra.mxu0 %v1930
  %2005 = vmatprep.subr.bf16.mxu0 0
  %2006 = vmatpush1.bf16.msra.mxu0 %v1931
  %2007 = vmatprep.subr.bf16.mxu0 0
  %2008 = vmatpush1.bf16.msra.mxu0 %v1932
  %2009 = vmatprep.subr.bf16.mxu0 0
  %2010 = vmatpush1.bf16.msra.mxu0 %v1933
  %2011 = vmatprep.subr.bf16.mxu0 0
  %2012 = vmatpush1.bf16.msra.mxu0 %v1934
  %2013 = vmatprep.subr.bf16.mxu0 0
  %2014 = vmatpush1.bf16.msra.mxu0 %v1935
  %2015 = vmatprep.subr.bf16.mxu0 0
  %2016 = vmatpush1.bf16.msra.mxu0 %v1936
  %2017 = vmatprep.mubr.bf16.mxu0 %v1715
  %2018 = vmatmul.mubr.bf16.gmra.mrb[0].mxu0 %v1714
  %v2019 = vpop.f32.mrb[0].mxu0
  %v2020 = vadd.f32 %v1791, %v2019
  %v2021 = vpop.f32.mrb[0].mxu0
  %v2022 = vpop.f32.mrb[0].mxu0
  %v2023 = vadd.f32 %v1791, %v2022
  %v2024 = vpop.f32.mrb[0].mxu0
  %2025 = vmatprep.mubr.bf16.mxu0 %v1719
  %2026 = vmatmul.mubr.bf16.gmra.mrb[0].mxu0 %v1718
  %v2027 = vpop.f32.mrb[0].mxu0
  %v2028 = vadd.f32 %v1791, %v2027
  %v2029 = vpop.f32.mrb[0].mxu0
  %v2030 = vpop.f32.mrb[0].mxu0
  %v2031 = vpop.f32.mrb[0].mxu0
  %2032 = vdwg.mxu0
  %2033 = vmatprep.subr.bf16.mxu0 0
  %2034 = vmatpush1.bf16.msra.mxu0 %v1937
  %2035 = vmatprep.subr.bf16.mxu0 0
  %2036 = vmatpush1.bf16.msra.mxu0 %v1938
  %2037 = vmatprep.subr.bf16.mxu0 0
  %2038 = vmatpush1.bf16.msra.mxu0 %v1939
  %2039 = vmatprep.subr.bf16.mxu0 0
  %2040 = vmatpush1.bf16.msra.mxu0 %v1940
  %2041 = vmatprep.subr.bf16.mxu0 0
  %2042 = vmatpush1.bf16.msra.mxu0 %v1941
  %2043 = vmatprep.subr.bf16.mxu0 0
  %2044 = vmatpush1.bf16.msra.mxu0 %v1942
  %2045 = vmatprep.subr.bf16.mxu0 0
  %2046 = vmatpush1.bf16.msra.mxu0 %v1943
  %2047 = vmatprep.subr.bf16.mxu0 0
  %2048 = vmatpush1.bf16.msra.mxu0 %v1944
  %2049 = vmatprep.subr.bf16.mxu0 0
  %2050 = vmatpush1.bf16.msra.mxu0 %v1945
  %2051 = vmatprep.subr.bf16.mxu0 0
  %2052 = vmatpush1.bf16.msra.mxu0 %v1946
  %2053 = vmatprep.subr.bf16.mxu0 0
  %2054 = vmatpush1.bf16.msra.mxu0 %v1947
  %2055 = vmatprep.subr.bf16.mxu0 0
  %2056 = vmatpush1.bf16.msra.mxu0 %v1948
  %2057 = vmatprep.subr.bf16.mxu0 0
  %2058 = vmatpush1.bf16.msra.mxu0 %v1949
  %2059 = vmatprep.subr.bf16.mxu0 0
  %2060 = vmatpush1.bf16.msra.mxu0 %v1950
  %2061 = vmatprep.subr.bf16.mxu0 0
  %2062 = vmatpush1.bf16.msra.mxu0 %v1951
  %2063 = vmatprep.subr.bf16.mxu0 0
  %2064 = vmatpush1.bf16.msra.mxu0 %v1952
  %2065 = vmatprep.mubr.bf16.mxu0 %v1717
  %2066 = vmatmul.mubr.bf16.gmra.mrb[0].mxu0 %v1716
  %v2067 = vpop.f32.mrb[0].mxu0
  %v2068 = vadd.f32 %v2020, %v2067
  %v2069 = vpop.f32.mrb[0].mxu0
  %v2070 = vpop.f32.mrb[0].mxu0
  %v2071 = vadd.f32 %v2023, %v2070
  %v2072 = vpop.f32.mrb[0].mxu0
  %2073 = vmatprep.mubr.bf16.mxu0 %v1721
  %2074 = vmatmul.mubr.bf16.gmra.mrb[0].mxu0 %v1720
  %v2075 = vpop.f32.mrb[0].mxu0
  %v2076 = vadd.f32 %v2028, %v2075
  %v2077 = vpop.f32.mrb[0].mxu0
  %v2078 = vpop.f32.mrb[0].mxu0
  %v2079 = vpop.f32.mrb[0].mxu0
  %2080 = vdwg.mxu0
  %v2081 = vmax.f32 %v2068, 0.0
  %v2082 = vmax.f32 %v2071, 0.0
  %v2083 = vmax.f32 %v2076, 0.0
  %v2084 = vadd.f32 %v2081, %v2082
  %v2085 = vsel %vm345, %v2083, 0.0
  %v2086 = vadd.f32 %v2084, %v2085
  %v2087 = vrot.slane %v2086, 4
  %v2088 = vadd.f32 %v2086, %v2087
  %v2089 = vrot.slane %v2088, 2
  %v2090 = vadd.f32 %v2088, %v2089
  %v2091 = vrot.slane %v2090, 1
  %v2092 = vadd.f32 %v2090, %v2091
  %v2093 = vrcp.pop 17.0
  %v2094 = vmul.f32 %v2092, %v2093
  %s2095 = scalar_lea.vmem %s0, 32
  %v2096 = vld [vmem:[%s2095] sm:$0xff]
  %v2097 = vld [vmem:[%s2095 + $0x8] sm:$0xff]
  %v2098 = vld [vmem:[%s2095 + $0x10] sm:$0xff]
  %v2099 = vld [vmem:[%s2095 + $0x18] sm:$0xff]
  %v2104 = vrot.slane %v2096, 1
  %v2105 = vrot.slane %v2097, 1
  %v2106 = vsel %vm76, %v2104, %v2105
  %v2107 = vrot.slane %v2098, 1
  %v2108 = vsel %vm76, %v2105, %v2107
  %v2109 = vrot.slane %v2099, 1
  %v2110 = vsel %vm76, %v2107, %v2109
  %2111 = vrot.lane.b32.xlu0 %v2106, 16
  %v2112 = vpop.permute.xlu0 %2111
  %2113 = vrot.lane.b32.xlu0 %v2108, 16
  %v2114 = vpop.permute.xlu0 %2113
  %2115 = vrot.lane.b32.xlu0 %v2110, 16
  %v2116 = vpop.permute.xlu0 %2115
  %2117 = vrot.lane.b32.xlu0 %v2109, 16
  %v2118 = vpop.permute.xlu0 %2117
  %v2123 = vrot.slane %v2096, 2
  %v2124 = vrot.slane %v2097, 2
  %v2125 = vsel %vm96, %v2123, %v2124
  %v2126 = vrot.slane %v2098, 2
  %v2127 = vsel %vm96, %v2124, %v2126
  %v2128 = vrot.slane %v2099, 2
  %v2129 = vsel %vm96, %v2126, %v2128
  %2130 = vrot.lane.b32.xlu0 %v2125, 32
  %v2131 = vpop.permute.xlu0 %2130
  %2132 = vrot.lane.b32.xlu0 %v2127, 32
  %v2133 = vpop.permute.xlu0 %2132
  %2134 = vrot.lane.b32.xlu0 %v2129, 32
  %v2135 = vpop.permute.xlu0 %2134
  %2136 = vrot.lane.b32.xlu0 %v2128, 32
  %v2137 = vpop.permute.xlu0 %2136
  %v2142 = vrot.slane %v2096, 3
  %v2143 = vrot.slane %v2097, 3
  %v2144 = vsel %vm116, %v2142, %v2143
  %v2145 = vrot.slane %v2098, 3
  %v2146 = vsel %vm116, %v2143, %v2145
  %v2147 = vrot.slane %v2099, 3
  %v2148 = vsel %vm116, %v2145, %v2147
  %2149 = vrot.lane.b32.xlu0 %v2144, 48
  %v2150 = vpop.permute.xlu0 %2149
  %2151 = vrot.lane.b32.xlu0 %v2146, 48
  %v2152 = vpop.permute.xlu0 %2151
  %2153 = vrot.lane.b32.xlu0 %v2148, 48
  %v2154 = vpop.permute.xlu0 %2153
  %2155 = vrot.lane.b32.xlu0 %v2147, 48
  %v2156 = vpop.permute.xlu0 %2155
  %v2161 = vsel %vm136, %v2096, %v2112
  %v2162 = vsel %vm136, %v2097, %v2114
  %v2163 = vsel %vm136, %v2098, %v2116
  %v2164 = vsel %vm136, %v2099, %v2118
  %v2165 = vsel %vm141, %v2161, %v2131
  %v2166 = vsel %vm141, %v2162, %v2133
  %v2167 = vsel %vm141, %v2163, %v2135
  %v2168 = vsel %vm141, %v2164, %v2137
  %v2169 = vsel %vm146, %v2165, %v2150
  %v2170 = vsel %vm146, %v2166, %v2152
  %v2171 = vsel %vm146, %v2167, %v2154
  %v2172 = vsel %vm146, %v2168, %v2156
  %v2173 = vpack.c.bf16 %v2170, %v2169
  %v2174 = vpack.c.bf16 %v2172, %v2171
  %v2176 = vsel %vm192, %v2173, 0
  %v2179 = vsel %vm192, %v2174, 0
  %2181 = vmatprep.subr.bf16.mxu0 0
  %2182 = vmatpush1.bf16.msra.mxu0 %v184
  %2183 = vmatprep.subr.bf16.mxu0 0
  %2184 = vmatpush1.bf16.msra.mxu0 %v185
  %2185 = vmatprep.subr.bf16.mxu0 0
  %2186 = vmatpush1.bf16.msra.mxu0 %v186
  %2187 = vmatprep.subr.bf16.mxu0 0
  %2188 = vmatpush1.bf16.msra.mxu0 %v187
  %2189 = vmatprep.subr.bf16.mxu0 0
  %2190 = vmatpush1.bf16.msra.mxu0 0
  %2191 = vmatprep.subr.bf16.mxu0 0
  %2192 = vmatpush1.bf16.msra.mxu0 0
  %2193 = vmatprep.subr.bf16.mxu0 0
  %2194 = vmatpush1.bf16.msra.mxu0 0
  %2195 = vmatprep.subr.bf16.mxu0 0
  %2196 = vmatpush1.bf16.msra.mxu0 0
  %2197 = vmatprep.subr.bf16.mxu0 0
  %2198 = vmatpush1.bf16.msra.mxu0 0
  %2199 = vmatprep.subr.bf16.mxu0 0
  %2200 = vmatpush1.bf16.msra.mxu0 0
  %2201 = vmatprep.subr.bf16.mxu0 0
  %2202 = vmatpush1.bf16.msra.mxu0 0
  %2203 = vmatprep.subr.bf16.mxu0 0
  %2204 = vmatpush1.bf16.msra.mxu0 0
  %2205 = vmatprep.subr.bf16.mxu0 0
  %2206 = vmatpush1.bf16.msra.mxu0 0
  %2207 = vmatprep.subr.bf16.mxu0 0
  %2208 = vmatpush1.bf16.msra.mxu0 0
  %2209 = vmatprep.subr.bf16.mxu0 0
  %2210 = vmatpush1.bf16.msra.mxu0 0
  %2211 = vmatprep.subr.bf16.mxu0 0
  %2212 = vmatpush1.bf16.msra.mxu0 0
  %2213 = vmatprep.mubr.bf16.mxu0 0
  %2214 = vmatmul.mubr.bf16.gmra.mrb[0].mxu0 %v2176
  %v2215 = vpop.f32.mrb[0].mxu0
  %v2216 = vadd.f32 %v166, %v2215
  %v2217 = vpop.f32.mrb[0].mxu0
  %v2218 = vpop.f32.mrb[0].mxu0
  %v2219 = vadd.f32 %v166, %v2218
  %v2220 = vpop.f32.mrb[0].mxu0
  %2221 = vmatprep.mubr.bf16.mxu0 0
  %2222 = vmatmul.mubr.bf16.gmra.mrb[0].mxu0 %v2179
  %v2223 = vpop.f32.mrb[0].mxu0
  %v2224 = vadd.f32 %v166, %v2223
  %v2225 = vpop.f32.mrb[0].mxu0
  %v2226 = vpop.f32.mrb[0].mxu0
  %v2227 = vadd.f32 %v166, %v2226
  %v2228 = vpop.f32.mrb[0].mxu0
  %2229 = vdwg.mxu0
  %v2230 = vmax.f32 %v2216, 0.0
  %v2231 = vmax.f32 %v2219, 0.0
  %v2232 = vmax.f32 %v2224, 0.0
  %v2233 = vmax.f32 %v2227, 0.0
  %v2237 = vrot.slane %v2230, 1
  %v2238 = vrot.slane %v2231, 1
  %v2239 = vsel %vm76, %v2237, %v2238
  %v2240 = vrot.slane %v2232, 1
  %v2241 = vsel %vm76, %v2238, %v2240
  %2242 = vrot.lane.b32.xlu0 %v2239, 32
  %v2243 = vpop.permute.xlu0 %2242
  %2244 = vrot.lane.b32.xlu0 %v2241, 32
  %v2245 = vpop.permute.xlu0 %2244
  %2246 = vrot.lane.b32.xlu0 %v2240, 32
  %v2247 = vpop.permute.xlu0 %2246
  %v2251 = vrot.slane %v2230, 2
  %v2252 = vrot.slane %v2231, 2
  %v2253 = vsel %vm96, %v2251, %v2252
  %v2254 = vrot.slane %v2232, 2
  %v2255 = vsel %vm96, %v2252, %v2254
  %2256 = vrot.lane.b32.xlu0 %v2253, 64
  %v2257 = vpop.permute.xlu0 %2256
  %2258 = vrot.lane.b32.xlu0 %v2255, 64
  %v2259 = vpop.permute.xlu0 %2258
  %2260 = vrot.lane.b32.xlu0 %v2254, 64
  %v2261 = vpop.permute.xlu0 %2260
  %v2266 = vrot.slane %v2230, 3
  %v2267 = vrot.slane %v2231, 3
  %v2268 = vsel %vm116, %v2266, %v2267
  %v2269 = vrot.slane %v2232, 3
  %v2270 = vsel %vm116, %v2267, %v2269
  %v2271 = vrot.slane %v2233, 3
  %v2272 = vsel %vm116, %v2269, %v2271
  %2273 = vrot.lane.b32.xlu0 %v2268, 96
  %v2274 = vpop.permute.xlu0 %2273
  %2275 = vrot.lane.b32.xlu0 %v2270, 96
  %v2276 = vpop.permute.xlu0 %2275
  %2277 = vrot.lane.b32.xlu0 %v2272, 96
  %v2278 = vpop.permute.xlu0 %2277
  %v2282 = vrot.slane %v2230, 4
  %v2283 = vrot.slane %v2231, 4
  %v2284 = vsel %vm300, %v2282, %v2283
  %v2285 = vrot.slane %v2232, 4
  %v2286 = vsel %vm300, %v2283, %v2285
  %v2287 = vrot.slane %v2233, 4
  %v2288 = vsel %vm300, %v2285, %v2287
  %v2292 = vrot.slane %v2230, 5
  %v2293 = vrot.slane %v2231, 5
  %v2294 = vsel %vm311, %v2292, %v2293
  %v2295 = vrot.slane %v2232, 5
  %v2296 = vsel %vm311, %v2293, %v2295
  %v2297 = vrot.slane %v2233, 5
  %v2298 = vsel %vm311, %v2295, %v2297
  %2299 = vrot.lane.b32.xlu0 %v2294, 32
  %v2300 = vpop.permute.xlu0 %2299
  %2301 = vrot.lane.b32.xlu0 %v2296, 32
  %v2302 = vpop.permute.xlu0 %2301
  %2303 = vrot.lane.b32.xlu0 %v2298, 32
  %v2304 = vpop.permute.xlu0 %2303
  %v2308 = vrot.slane %v2230, 6
  %v2309 = vrot.slane %v2231, 6
  %v2310 = vsel %vm328, %v2308, %v2309
  %v2311 = vrot.slane %v2232, 6
  %v2312 = vsel %vm328, %v2309, %v2311
  %v2313 = vrot.slane %v2233, 6
  %v2314 = vsel %vm328, %v2311, %v2313
  %2315 = vrot.lane.b32.xlu0 %v2310, 64
  %v2316 = vpop.permute.xlu0 %2315
  %2317 = vrot.lane.b32.xlu0 %v2312, 64
  %v2318 = vpop.permute.xlu0 %2317
  %2319 = vrot.lane.b32.xlu0 %v2314, 64
  %v2320 = vpop.permute.xlu0 %2319
  %v2324 = vrot.slane %v2230, 7
  %v2325 = vrot.slane %v2231, 7
  %v2326 = vsel %vm345, %v2324, %v2325
  %v2327 = vrot.slane %v2232, 7
  %v2328 = vsel %vm345, %v2325, %v2327
  %v2329 = vrot.slane %v2233, 7
  %v2330 = vsel %vm345, %v2327, %v2329
  %2331 = vrot.lane.b32.xlu0 %v2326, 96
  %v2332 = vpop.permute.xlu0 %2331
  %2333 = vrot.lane.b32.xlu0 %v2328, 96
  %v2334 = vpop.permute.xlu0 %2333
  %2335 = vrot.lane.b32.xlu0 %v2330, 96
  %v2336 = vpop.permute.xlu0 %2335
  %v2340 = vsel %vm141, %v2230, %v2243
  %v2341 = vsel %vm141, %v2231, %v2245
  %v2342 = vsel %vm141, %v2232, %v2247
  %v2343 = vsel %vm192, %v2340, %v2257
  %v2344 = vsel %vm192, %v2341, %v2259
  %v2345 = vsel %vm192, %v2342, %v2261
  %v2346 = vsel %vm368, %v2343, %v2274
  %v2347 = vsel %vm368, %v2344, %v2276
  %v2348 = vsel %vm368, %v2345, %v2278
  %v2349 = vsel %vm141, %v2284, %v2300
  %v2350 = vsel %vm141, %v2286, %v2302
  %v2351 = vsel %vm141, %v2288, %v2304
  %v2352 = vsel %vm192, %v2349, %v2316
  %v2353 = vsel %vm192, %v2350, %v2318
  %v2354 = vsel %vm192, %v2351, %v2320
  %v2355 = vsel %vm368, %v2352, %v2332
  %v2356 = vsel %vm368, %v2353, %v2334
  %v2357 = vsel %vm368, %v2354, %v2336
  %v2358 = vpack.c.bf16 %v2347, %v2346
  %v2359 = vpack.c.bf16 %v2356, %v2355
  %v2360 = vpack.c.bf16 %v2348, %v2348
  %v2361 = vpack.c.bf16 %v2357, %v2357
  %2362 = vmatprep.subr.bf16.mxu0 0
  %2363 = vmatpush1.bf16.msra.mxu0 %v488
  %2364 = vmatprep.subr.bf16.mxu0 0
  %2365 = vmatpush1.bf16.msra.mxu0 %v489
  %2366 = vmatprep.subr.bf16.mxu0 0
  %2367 = vmatpush1.bf16.msra.mxu0 %v490
  %2368 = vmatprep.subr.bf16.mxu0 0
  %2369 = vmatpush1.bf16.msra.mxu0 %v491
  %2370 = vmatprep.subr.bf16.mxu0 0
  %2371 = vmatpush1.bf16.msra.mxu0 %v492
  %2372 = vmatprep.subr.bf16.mxu0 0
  %2373 = vmatpush1.bf16.msra.mxu0 %v493
  %2374 = vmatprep.subr.bf16.mxu0 0
  %2375 = vmatpush1.bf16.msra.mxu0 %v494
  %2376 = vmatprep.subr.bf16.mxu0 0
  %2377 = vmatpush1.bf16.msra.mxu0 %v495
  %2378 = vmatprep.subr.bf16.mxu0 0
  %2379 = vmatpush1.bf16.msra.mxu0 %v496
  %2380 = vmatprep.subr.bf16.mxu0 0
  %2381 = vmatpush1.bf16.msra.mxu0 %v497
  %2382 = vmatprep.subr.bf16.mxu0 0
  %2383 = vmatpush1.bf16.msra.mxu0 %v498
  %2384 = vmatprep.subr.bf16.mxu0 0
  %2385 = vmatpush1.bf16.msra.mxu0 %v499
  %2386 = vmatprep.subr.bf16.mxu0 0
  %2387 = vmatpush1.bf16.msra.mxu0 %v500
  %2388 = vmatprep.subr.bf16.mxu0 0
  %2389 = vmatpush1.bf16.msra.mxu0 %v501
  %2390 = vmatprep.subr.bf16.mxu0 0
  %2391 = vmatpush1.bf16.msra.mxu0 %v502
  %2392 = vmatprep.subr.bf16.mxu0 0
  %2393 = vmatpush1.bf16.msra.mxu0 %v503
  %2394 = vmatprep.mubr.bf16.mxu0 %v2359
  %2395 = vmatmul.mubr.bf16.gmra.mrb[0].mxu0 %v2358
  %v2396 = vpop.f32.mrb[0].mxu0
  %v2397 = vadd.f32 %v422, %v2396
  %v2398 = vpop.f32.mrb[0].mxu0
  %v2399 = vpop.f32.mrb[0].mxu0
  %v2400 = vadd.f32 %v422, %v2399
  %v2401 = vpop.f32.mrb[0].mxu0
  %2402 = vmatprep.mubr.bf16.mxu0 %v2361
  %2403 = vmatmul.mubr.bf16.gmra.mrb[0].mxu0 %v2360
  %v2404 = vpop.f32.mrb[0].mxu0
  %v2405 = vadd.f32 %v422, %v2404
  %v2406 = vpop.f32.mrb[0].mxu0
  %v2407 = vpop.f32.mrb[0].mxu0
  %v2408 = vpop.f32.mrb[0].mxu0
  %2409 = vdwg.mxu0
  %v2410 = vmax.f32 %v2397, 0.0
  %v2411 = vmax.f32 %v2400, 0.0
  %v2412 = vmax.f32 %v2405, 0.0
  %v2415 = vrot.slane %v2410, 1
  %v2416 = vrot.slane %v2411, 1
  %v2417 = vsel %vm76, %v2415, %v2416
  %2418 = vrot.lane.b32.xlu0 %v2417, 64
  %v2419 = vpop.permute.xlu0 %2418
  %2420 = vrot.lane.b32.xlu0 %v2416, 64
  %v2421 = vpop.permute.xlu0 %2420
  %v2424 = vrot.slane %v2410, 2
  %v2425 = vrot.slane %v2411, 2
  %v2426 = vsel %vm96, %v2424, %v2425
  %v2429 = vrot.slane %v2410, 3
  %v2430 = vrot.slane %v2411, 3
  %v2431 = vsel %vm116, %v2429, %v2430
  %2432 = vrot.lane.b32.xlu0 %v2431, 64
  %v2433 = vpop.permute.xlu0 %2432
  %2434 = vrot.lane.b32.xlu0 %v2430, 64
  %v2435 = vpop.permute.xlu0 %2434
  %v2438 = vrot.slane %v2410, 4
  %v2439 = vrot.slane %v2411, 4
  %v2440 = vsel %vm300, %v2438, %v2439
  %v2443 = vrot.slane %v2410, 5
  %v2444 = vrot.slane %v2411, 5
  %v2445 = vsel %vm311, %v2443, %v2444
  %2446 = vrot.lane.b32.xlu0 %v2445, 64
  %v2447 = vpop.permute.xlu0 %2446
  %2448 = vrot.lane.b32.xlu0 %v2444, 64
  %v2449 = vpop.permute.xlu0 %2448
  %v2453 = vrot.slane %v2410, 6
  %v2454 = vrot.slane %v2411, 6
  %v2455 = vsel %vm328, %v2453, %v2454
  %v2456 = vrot.slane %v2412, 6
  %v2457 = vsel %vm328, %v2454, %v2456
  %v2460 = vrot.slane %v2410, 7
  %v2461 = vrot.slane %v2411, 7
  %v2462 = vsel %vm345, %v2460, %v2461
  %v2463 = vrot.slane %v2412, 7
  %v2464 = vsel %vm345, %v2461, %v2463
  %2465 = vrot.lane.b32.xlu0 %v2462, 64
  %v2466 = vpop.permute.xlu0 %2465
  %2467 = vrot.lane.b32.xlu0 %v2464, 64
  %v2468 = vpop.permute.xlu0 %2467
  %v2471 = vrot.slane %v2412, 1
  %v2472 = vsel %vm76, %v2416, %v2471
  %2473 = vrot.lane.b32.xlu0 %v2472, 64
  %v2474 = vpop.permute.xlu0 %2473
  %2475 = vrot.lane.b32.xlu0 %v2471, 64
  %v2476 = vpop.permute.xlu0 %2475
  %v2479 = vrot.slane %v2412, 2
  %v2480 = vsel %vm96, %v2425, %v2479
  %v2483 = vrot.slane %v2412, 3
  %v2484 = vsel %vm116, %v2430, %v2483
  %2485 = vrot.lane.b32.xlu0 %v2484, 64
  %v2486 = vpop.permute.xlu0 %2485
  %2487 = vrot.lane.b32.xlu0 %v2483, 64
  %v2488 = vpop.permute.xlu0 %2487
  %v2491 = vsel %vm192, %v2410, %v2419
  %v2492 = vsel %vm192, %v2411, %v2421
  %v2493 = vsel %vm192, %v2426, %v2433
  %v2494 = vsel %vm192, %v2425, %v2435
  %v2495 = vsel %vm192, %v2440, %v2447
  %v2496 = vsel %vm192, %v2439, %v2449
  %v2497 = vsel %vm192, %v2455, %v2466
  %v2498 = vsel %vm192, %v2457, %v2468
  %v2499 = vsel %vm192, %v2411, %v2474
  %v2500 = vsel %vm192, %v2412, %v2476
  %v2501 = vsel %vm192, %v2480, %v2486
  %v2502 = vsel %vm192, %v2479, %v2488
  %v2503 = vpack.c.bf16 %v2492, %v2491
  %v2504 = vpack.c.bf16 %v2494, %v2493
  %v2505 = vpack.c.bf16 %v2496, %v2495
  %v2506 = vpack.c.bf16 %v2498, %v2497
  %v2507 = vpack.c.bf16 %v2500, %v2499
  %v2508 = vpack.c.bf16 %v2502, %v2501
  %2509 = vmatprep.subr.bf16.mxu0 0
  %2510 = vmatpush1.bf16.msra.mxu0 %v962
  %2511 = vmatprep.subr.bf16.mxu0 0
  %2512 = vmatpush1.bf16.msra.mxu0 %v963
  %2513 = vmatprep.subr.bf16.mxu0 0
  %2514 = vmatpush1.bf16.msra.mxu0 %v964
  %2515 = vmatprep.subr.bf16.mxu0 0
  %2516 = vmatpush1.bf16.msra.mxu0 %v965
  %2517 = vmatprep.subr.bf16.mxu0 0
  %2518 = vmatpush1.bf16.msra.mxu0 %v966
  %2519 = vmatprep.subr.bf16.mxu0 0
  %2520 = vmatpush1.bf16.msra.mxu0 %v967
  %2521 = vmatprep.subr.bf16.mxu0 0
  %2522 = vmatpush1.bf16.msra.mxu0 %v968
  %2523 = vmatprep.subr.bf16.mxu0 0
  %2524 = vmatpush1.bf16.msra.mxu0 %v969
  %2525 = vmatprep.subr.bf16.mxu0 0
  %2526 = vmatpush1.bf16.msra.mxu0 %v970
  %2527 = vmatprep.subr.bf16.mxu0 0
  %2528 = vmatpush1.bf16.msra.mxu0 %v971
  %2529 = vmatprep.subr.bf16.mxu0 0
  %2530 = vmatpush1.bf16.msra.mxu0 %v972
  %2531 = vmatprep.subr.bf16.mxu0 0
  %2532 = vmatpush1.bf16.msra.mxu0 %v973
  %2533 = vmatprep.subr.bf16.mxu0 0
  %2534 = vmatpush1.bf16.msra.mxu0 %v974
  %2535 = vmatprep.subr.bf16.mxu0 0
  %2536 = vmatpush1.bf16.msra.mxu0 %v975
  %2537 = vmatprep.subr.bf16.mxu0 0
  %2538 = vmatpush1.bf16.msra.mxu0 %v976
  %2539 = vmatprep.subr.bf16.mxu0 0
  %2540 = vmatpush1.bf16.msra.mxu0 %v977
  %2541 = vmatprep.mubr.bf16.mxu0 %v2504
  %2542 = vmatmul.mubr.bf16.gmra.mrb[0].mxu0 %v2503
  %v2543 = vpop.f32.mrb[0].mxu0
  %v2544 = vadd.f32 %v768, %v2543
  %v2545 = vpop.f32.mrb[0].mxu0
  %v2546 = vpop.f32.mrb[0].mxu0
  %v2547 = vadd.f32 %v768, %v2546
  %v2548 = vpop.f32.mrb[0].mxu0
  %2549 = vdwg.mxu0
  %2550 = vmatprep.subr.bf16.mxu0 0
  %2551 = vmatpush1.bf16.msra.mxu0 %v978
  %2552 = vmatprep.subr.bf16.mxu0 0
  %2553 = vmatpush1.bf16.msra.mxu0 %v979
  %2554 = vmatprep.subr.bf16.mxu0 0
  %2555 = vmatpush1.bf16.msra.mxu0 %v980
  %2556 = vmatprep.subr.bf16.mxu0 0
  %2557 = vmatpush1.bf16.msra.mxu0 %v981
  %2558 = vmatprep.subr.bf16.mxu0 0
  %2559 = vmatpush1.bf16.msra.mxu0 %v982
  %2560 = vmatprep.subr.bf16.mxu0 0
  %2561 = vmatpush1.bf16.msra.mxu0 %v983
  %2562 = vmatprep.subr.bf16.mxu0 0
  %2563 = vmatpush1.bf16.msra.mxu0 %v984
  %2564 = vmatprep.subr.bf16.mxu0 0
  %2565 = vmatpush1.bf16.msra.mxu0 %v985
  %2566 = vmatprep.subr.bf16.mxu0 0
  %2567 = vmatpush1.bf16.msra.mxu0 %v986
  %2568 = vmatprep.subr.bf16.mxu0 0
  %2569 = vmatpush1.bf16.msra.mxu0 %v987
  %2570 = vmatprep.subr.bf16.mxu0 0
  %2571 = vmatpush1.bf16.msra.mxu0 %v988
  %2572 = vmatprep.subr.bf16.mxu0 0
  %2573 = vmatpush1.bf16.msra.mxu0 %v989
  %2574 = vmatprep.subr.bf16.mxu0 0
  %2575 = vmatpush1.bf16.msra.mxu0 %v990
  %2576 = vmatprep.subr.bf16.mxu0 0
  %2577 = vmatpush1.bf16.msra.mxu0 %v991
  %2578 = vmatprep.subr.bf16.mxu0 0
  %2579 = vmatpush1.bf16.msra.mxu0 %v992
  %2580 = vmatprep.subr.bf16.mxu0 0
  %2581 = vmatpush1.bf16.msra.mxu0 %v993
  %2582 = vmatprep.mubr.bf16.mxu0 %v2506
  %2583 = vmatmul.mubr.bf16.gmra.mrb[0].mxu0 %v2505
  %v2584 = vpop.f32.mrb[0].mxu0
  %v2585 = vadd.f32 %v2544, %v2584
  %v2586 = vpop.f32.mrb[0].mxu0
  %v2587 = vpop.f32.mrb[0].mxu0
  %v2588 = vadd.f32 %v2547, %v2587
  %v2589 = vpop.f32.mrb[0].mxu0
  %2590 = vdwg.mxu0
  %2591 = vmatprep.subr.bf16.mxu0 0
  %2592 = vmatpush1.bf16.msra.mxu0 %v994
  %2593 = vmatprep.subr.bf16.mxu0 0
  %2594 = vmatpush1.bf16.msra.mxu0 %v995
  %2595 = vmatprep.subr.bf16.mxu0 0
  %2596 = vmatpush1.bf16.msra.mxu0 %v996
  %2597 = vmatprep.subr.bf16.mxu0 0
  %2598 = vmatpush1.bf16.msra.mxu0 %v997
  %2599 = vmatprep.subr.bf16.mxu0 0
  %2600 = vmatpush1.bf16.msra.mxu0 %v998
  %2601 = vmatprep.subr.bf16.mxu0 0
  %2602 = vmatpush1.bf16.msra.mxu0 %v999
  %2603 = vmatprep.subr.bf16.mxu0 0
  %2604 = vmatpush1.bf16.msra.mxu0 %v1000
  %2605 = vmatprep.subr.bf16.mxu0 0
  %2606 = vmatpush1.bf16.msra.mxu0 %v1001
  %2607 = vmatprep.subr.bf16.mxu0 0
  %2608 = vmatpush1.bf16.msra.mxu0 %v1002
  %2609 = vmatprep.subr.bf16.mxu0 0
  %2610 = vmatpush1.bf16.msra.mxu0 %v1003
  %2611 = vmatprep.subr.bf16.mxu0 0
  %2612 = vmatpush1.bf16.msra.mxu0 %v1004
  %2613 = vmatprep.subr.bf16.mxu0 0
  %2614 = vmatpush1.bf16.msra.mxu0 %v1005
  %2615 = vmatprep.subr.bf16.mxu0 0
  %2616 = vmatpush1.bf16.msra.mxu0 %v1006
  %2617 = vmatprep.subr.bf16.mxu0 0
  %2618 = vmatpush1.bf16.msra.mxu0 %v1007
  %2619 = vmatprep.subr.bf16.mxu0 0
  %2620 = vmatpush1.bf16.msra.mxu0 %v1008
  %2621 = vmatprep.subr.bf16.mxu0 0
  %2622 = vmatpush1.bf16.msra.mxu0 %v1009
  %2623 = vmatprep.mubr.bf16.mxu0 %v2508
  %2624 = vmatmul.mubr.bf16.gmra.mrb[0].mxu0 %v2507
  %v2625 = vpop.f32.mrb[0].mxu0
  %v2626 = vadd.f32 %v2585, %v2625
  %v2627 = vpop.f32.mrb[0].mxu0
  %v2628 = vpop.f32.mrb[0].mxu0
  %v2629 = vadd.f32 %v2588, %v2628
  %v2630 = vpop.f32.mrb[0].mxu0
  %2631 = vdwg.mxu0
  %v2632 = vmax.f32 %v2626, 0.0
  %v2633 = vmax.f32 %v2629, 0.0
  %v2634 = vsel %vm311, %v2633, 0.0
  %v2635 = vadd.f32 %v2632, %v2634
  %v2636 = vrot.slane %v2635, 4
  %v2637 = vadd.f32 %v2635, %v2636
  %v2638 = vrot.slane %v2637, 2
  %v2639 = vadd.f32 %v2637, %v2638
  %v2640 = vrot.slane %v2639, 1
  %v2641 = vadd.f32 %v2639, %v2640
  %v2642 = vmul.f32 %v2641, %v1191
  %s2643 = scalar_lea.vmem %s1, 32
  %v2644 = vld [vmem:[%s2643] sm:$0xff]
  %v2645 = vld [vmem:[%s2643 + $0x8] sm:$0xff]
  %v2646 = vld [vmem:[%s2643 + $0x10] sm:$0xff]
  %v2647 = vld [vmem:[%s2643 + $0x18] sm:$0xff]
  %v2652 = vrot.slane %v2644, 1
  %v2653 = vrot.slane %v2645, 1
  %v2654 = vsel %vm76, %v2652, %v2653
  %v2655 = vrot.slane %v2646, 1
  %v2656 = vsel %vm76, %v2653, %v2655
  %v2657 = vrot.slane %v2647, 1
  %v2658 = vsel %vm76, %v2655, %v2657
  %2659 = vrot.lane.b32.xlu0 %v2654, 12
  %v2660 = vpop.permute.xlu0 %2659
  %2661 = vrot.lane.b32.xlu0 %v2656, 12
  %v2662 = vpop.permute.xlu0 %2661
  %2663 = vrot.lane.b32.xlu0 %v2658, 12
  %v2664 = vpop.permute.xlu0 %2663
  %2665 = vrot.lane.b32.xlu0 %v2657, 12
  %v2666 = vpop.permute.xlu0 %2665
  %v2671 = vrot.slane %v2644, 2
  %v2672 = vrot.slane %v2645, 2
  %v2673 = vsel %vm96, %v2671, %v2672
  %v2674 = vrot.slane %v2646, 2
  %v2675 = vsel %vm96, %v2672, %v2674
  %v2676 = vrot.slane %v2647, 2
  %v2677 = vsel %vm96, %v2674, %v2676
  %2678 = vrot.lane.b32.xlu0 %v2673, 24
  %v2679 = vpop.permute.xlu0 %2678
  %2680 = vrot.lane.b32.xlu0 %v2675, 24
  %v2681 = vpop.permute.xlu0 %2680
  %2682 = vrot.lane.b32.xlu0 %v2677, 24
  %v2683 = vpop.permute.xlu0 %2682
  %2684 = vrot.lane.b32.xlu0 %v2676, 24
  %v2685 = vpop.permute.xlu0 %2684
  %v2690 = vrot.slane %v2644, 3
  %v2691 = vrot.slane %v2645, 3
  %v2692 = vsel %vm116, %v2690, %v2691
  %v2693 = vrot.slane %v2646, 3
  %v2694 = vsel %vm116, %v2691, %v2693
  %v2695 = vrot.slane %v2647, 3
  %v2696 = vsel %vm116, %v2693, %v2695
  %2697 = vrot.lane.b32.xlu0 %v2692, 36
  %v2698 = vpop.permute.xlu0 %2697
  %2699 = vrot.lane.b32.xlu0 %v2694, 36
  %v2700 = vpop.permute.xlu0 %2699
  %2701 = vrot.lane.b32.xlu0 %v2696, 36
  %v2702 = vpop.permute.xlu0 %2701
  %2703 = vrot.lane.b32.xlu0 %v2695, 36
  %v2704 = vpop.permute.xlu0 %2703
  %v2709 = vsel %vm1258, %v2644, %v2660
  %v2710 = vsel %vm1258, %v2645, %v2662
  %v2711 = vsel %vm1258, %v2646, %v2664
  %v2712 = vsel %vm1258, %v2647, %v2666
  %v2713 = vsel %vm1263, %v2709, %v2679
  %v2714 = vsel %vm1263, %v2710, %v2681
  %v2715 = vsel %vm1263, %v2711, %v2683
  %v2716 = vsel %vm1263, %v2712, %v2685
  %v2717 = vsel %vm1268, %v2713, %v2698
  %v2718 = vsel %vm1268, %v2714, %v2700
  %v2719 = vsel %vm1268, %v2715, %v2702
  %v2720 = vsel %vm1268, %v2716, %v2704
  %v2721 = vpack.c.bf16 %v2718, %v2717
  %v2722 = vpack.c.bf16 %v2720, %v2719
  %v2724 = vsel %vm146, %v2721, 0
  %v2727 = vsel %vm146, %v2722, 0
  %2729 = vmatprep.subr.bf16.mxu0 0
  %2730 = vmatpush1.bf16.msra.mxu0 %v1300
  %2731 = vmatprep.subr.bf16.mxu0 0
  %2732 = vmatpush1.bf16.msra.mxu0 %v1301
  %2733 = vmatprep.subr.bf16.mxu0 0
  %2734 = vmatpush1.bf16.msra.mxu0 %v1302
  %2735 = vmatprep.subr.bf16.mxu0 0
  %2736 = vmatpush1.bf16.msra.mxu0 0
  %2737 = vmatprep.subr.bf16.mxu0 0
  %2738 = vmatpush1.bf16.msra.mxu0 0
  %2739 = vmatprep.subr.bf16.mxu0 0
  %2740 = vmatpush1.bf16.msra.mxu0 0
  %2741 = vmatprep.subr.bf16.mxu0 0
  %2742 = vmatpush1.bf16.msra.mxu0 0
  %2743 = vmatprep.subr.bf16.mxu0 0
  %2744 = vmatpush1.bf16.msra.mxu0 0
  %2745 = vmatprep.subr.bf16.mxu0 0
  %2746 = vmatpush1.bf16.msra.mxu0 0
  %2747 = vmatprep.subr.bf16.mxu0 0
  %2748 = vmatpush1.bf16.msra.mxu0 0
  %2749 = vmatprep.subr.bf16.mxu0 0
  %2750 = vmatpush1.bf16.msra.mxu0 0
  %2751 = vmatprep.subr.bf16.mxu0 0
  %2752 = vmatpush1.bf16.msra.mxu0 0
  %2753 = vmatprep.subr.bf16.mxu0 0
  %2754 = vmatpush1.bf16.msra.mxu0 0
  %2755 = vmatprep.subr.bf16.mxu0 0
  %2756 = vmatpush1.bf16.msra.mxu0 0
  %2757 = vmatprep.subr.bf16.mxu0 0
  %2758 = vmatpush1.bf16.msra.mxu0 0
  %2759 = vmatprep.subr.bf16.mxu0 0
  %2760 = vmatpush1.bf16.msra.mxu0 0
  %2761 = vmatprep.mubr.bf16.mxu0 0
  %2762 = vmatmul.mubr.bf16.gmra.mrb[0].mxu0 %v2724
  %v2763 = vpop.f32.mrb[0].mxu0
  %v2764 = vadd.f32 %v1286, %v2763
  %v2765 = vpop.f32.mrb[0].mxu0
  %v2766 = vpop.f32.mrb[0].mxu0
  %v2767 = vadd.f32 %v1286, %v2766
  %v2768 = vpop.f32.mrb[0].mxu0
  %2769 = vmatprep.mubr.bf16.mxu0 0
  %2770 = vmatmul.mubr.bf16.gmra.mrb[0].mxu0 %v2727
  %v2771 = vpop.f32.mrb[0].mxu0
  %v2772 = vadd.f32 %v1286, %v2771
  %v2773 = vpop.f32.mrb[0].mxu0
  %v2774 = vpop.f32.mrb[0].mxu0
  %v2775 = vadd.f32 %v1286, %v2774
  %v2776 = vpop.f32.mrb[0].mxu0
  %2777 = vdwg.mxu0
  %v2778 = vmax.f32 %v2764, 0.0
  %v2779 = vmax.f32 %v2767, 0.0
  %v2780 = vmax.f32 %v2772, 0.0
  %v2781 = vmax.f32 %v2775, 0.0
  %v2786 = vrot.slane %v2778, 1
  %v2787 = vrot.slane %v2779, 1
  %v2788 = vsel %vm76, %v2786, %v2787
  %v2789 = vrot.slane %v2780, 1
  %v2790 = vsel %vm76, %v2787, %v2789
  %v2791 = vrot.slane %v2781, 1
  %v2792 = vsel %vm76, %v2789, %v2791
  %2793 = vrot.lane.b32.xlu0 %v2788, 32
  %v2794 = vpop.permute.xlu0 %2793
  %2795 = vrot.lane.b32.xlu0 %v2790, 32
  %v2796 = vpop.permute.xlu0 %2795
  %2797 = vrot.lane.b32.xlu0 %v2792, 32
  %v2798 = vpop.permute.xlu0 %2797
  %v2802 = vrot.slane %v2778, 2
  %v2803 = vrot.slane %v2779, 2
  %v2804 = vsel %vm96, %v2802, %v2803
  %v2805 = vrot.slane %v2780, 2
  %v2806 = vsel %vm96, %v2803, %v2805
  %v2807 = vrot.slane %v2781, 2
  %v2808 = vsel %vm96, %v2805, %v2807
  %2809 = vrot.lane.b32.xlu0 %v2804, 64
  %v2810 = vpop.permute.xlu0 %2809
  %2811 = vrot.lane.b32.xlu0 %v2806, 64
  %v2812 = vpop.permute.xlu0 %2811
  %2813 = vrot.lane.b32.xlu0 %v2808, 64
  %v2814 = vpop.permute.xlu0 %2813
  %v2818 = vrot.slane %v2778, 3
  %v2819 = vrot.slane %v2779, 3
  %v2820 = vsel %vm116, %v2818, %v2819
  %v2821 = vrot.slane %v2780, 3
  %v2822 = vsel %vm116, %v2819, %v2821
  %v2823 = vrot.slane %v2781, 3
  %v2824 = vsel %vm116, %v2821, %v2823
  %2825 = vrot.lane.b32.xlu0 %v2820, 96
  %v2826 = vpop.permute.xlu0 %2825
  %2827 = vrot.lane.b32.xlu0 %v2822, 96
  %v2828 = vpop.permute.xlu0 %2827
  %2829 = vrot.lane.b32.xlu0 %v2824, 96
  %v2830 = vpop.permute.xlu0 %2829
  %v2834 = vrot.slane %v2778, 4
  %v2835 = vrot.slane %v2779, 4
  %v2836 = vsel %vm300, %v2834, %v2835
  %v2837 = vrot.slane %v2780, 4
  %v2838 = vsel %vm300, %v2835, %v2837
  %v2839 = vrot.slane %v2781, 4
  %v2840 = vsel %vm300, %v2837, %v2839
  %v2844 = vrot.slane %v2778, 5
  %v2845 = vrot.slane %v2779, 5
  %v2846 = vsel %vm311, %v2844, %v2845
  %v2847 = vrot.slane %v2780, 5
  %v2848 = vsel %vm311, %v2845, %v2847
  %v2849 = vrot.slane %v2781, 5
  %v2850 = vsel %vm311, %v2847, %v2849
  %2851 = vrot.lane.b32.xlu0 %v2846, 32
  %v2852 = vpop.permute.xlu0 %2851
  %2853 = vrot.lane.b32.xlu0 %v2848, 32
  %v2854 = vpop.permute.xlu0 %2853
  %2855 = vrot.lane.b32.xlu0 %v2850, 32
  %v2856 = vpop.permute.xlu0 %2855
  %v2860 = vsel %vm141, %v2778, %v2794
  %v2861 = vsel %vm141, %v2779, %v2796
  %v2862 = vsel %vm141, %v2780, %v2798
  %v2863 = vsel %vm192, %v2860, %v2810
  %v2864 = vsel %vm192, %v2861, %v2812
  %v2865 = vsel %vm192, %v2862, %v2814
  %v2866 = vsel %vm368, %v2863, %v2826
  %v2867 = vsel %vm368, %v2864, %v2828
  %v2868 = vsel %vm368, %v2865, %v2830
  %v2869 = vsel %vm141, %v2836, %v2852
  %v2870 = vsel %vm141, %v2838, %v2854
  %v2871 = vsel %vm141, %v2840, %v2856
  %v2872 = vpack.c.bf16 %v2867, %v2866
  %v2873 = vpack.c.bf16 %v2870, %v2869
  %v2874 = vpack.c.bf16 %v2868, %v2868
  %v2875 = vpack.c.bf16 %v2871, %v2871
  %v2877 = vsel %vm192, %v2873, 0
  %v2880 = vsel %vm192, %v2875, 0
  %2882 = vmatprep.subr.bf16.mxu0 0
  %2883 = vmatpush1.bf16.msra.mxu0 %v1538
  %2884 = vmatprep.subr.bf16.mxu0 0
  %2885 = vmatpush1.bf16.msra.mxu0 %v1539
  %2886 = vmatprep.subr.bf16.mxu0 0
  %2887 = vmatpush1.bf16.msra.mxu0 %v1540
  %2888 = vmatprep.subr.bf16.mxu0 0
  %2889 = vmatpush1.bf16.msra.mxu0 %v1541
  %2890 = vmatprep.subr.bf16.mxu0 0
  %2891 = vmatpush1.bf16.msra.mxu0 %v1542
  %2892 = vmatprep.subr.bf16.mxu0 0
  %2893 = vmatpush1.bf16.msra.mxu0 %v1543
  %2894 = vmatprep.subr.bf16.mxu0 0
  %2895 = vmatpush1.bf16.msra.mxu0 %v1544
  %2896 = vmatprep.subr.bf16.mxu0 0
  %2897 = vmatpush1.bf16.msra.mxu0 %v1545
  %2898 = vmatprep.subr.bf16.mxu0 0
  %2899 = vmatpush1.bf16.msra.mxu0 %v1546
  %2900 = vmatprep.subr.bf16.mxu0 0
  %2901 = vmatpush1.bf16.msra.mxu0 %v1547
  %2902 = vmatprep.subr.bf16.mxu0 0
  %2903 = vmatpush1.bf16.msra.mxu0 %v1548
  %2904 = vmatprep.subr.bf16.mxu0 0
  %2905 = vmatpush1.bf16.msra.mxu0 %v1549
  %2906 = vmatprep.subr.bf16.mxu0 0
  %2907 = vmatpush1.bf16.msra.mxu0 0
  %2908 = vmatprep.subr.bf16.mxu0 0
  %2909 = vmatpush1.bf16.msra.mxu0 0
  %2910 = vmatprep.subr.bf16.mxu0 0
  %2911 = vmatpush1.bf16.msra.mxu0 0
  %2912 = vmatprep.subr.bf16.mxu0 0
  %2913 = vmatpush1.bf16.msra.mxu0 0
  %2914 = vmatprep.mubr.bf16.mxu0 %v2877
  %2915 = vmatmul.mubr.bf16.gmra.mrb[0].mxu0 %v2872
  %v2916 = vpop.f32.mrb[0].mxu0
  %v2917 = vadd.f32 %v1488, %v2916
  %v2918 = vpop.f32.mrb[0].mxu0
  %v2919 = vpop.f32.mrb[0].mxu0
  %v2920 = vadd.f32 %v1488, %v2919
  %v2921 = vpop.f32.mrb[0].mxu0
  %2922 = vmatprep.mubr.bf16.mxu0 %v2880
  %2923 = vmatmul.mubr.bf16.gmra.mrb[0].mxu0 %v2874
  %v2924 = vpop.f32.mrb[0].mxu0
  %v2925 = vadd.f32 %v1488, %v2924
  %v2926 = vpop.f32.mrb[0].mxu0
  %v2927 = vpop.f32.mrb[0].mxu0
  %v2928 = vpop.f32.mrb[0].mxu0
  %2929 = vdwg.mxu0
  %v2930 = vmax.f32 %v2917, 0.0
  %v2931 = vmax.f32 %v2920, 0.0
  %v2932 = vmax.f32 %v2925, 0.0
  %v2936 = vrot.slane %v2930, 1
  %v2937 = vrot.slane %v2931, 1
  %v2938 = vsel %vm76, %v2936, %v2937
  %v2939 = vrot.slane %v2932, 1
  %v2940 = vsel %vm76, %v2937, %v2939
  %2941 = vrot.lane.b32.xlu0 %v2938, 64
  %v2942 = vpop.permute.xlu0 %2941
  %2943 = vrot.lane.b32.xlu0 %v2940, 64
  %v2944 = vpop.permute.xlu0 %2943
  %2945 = vrot.lane.b32.xlu0 %v2939, 64
  %v2946 = vpop.permute.xlu0 %2945
  %v2950 = vrot.slane %v2930, 2
  %v2951 = vrot.slane %v2931, 2
  %v2952 = vsel %vm96, %v2950, %v2951
  %v2953 = vrot.slane %v2932, 2
  %v2954 = vsel %vm96, %v2951, %v2953
  %v2958 = vrot.slane %v2930, 3
  %v2959 = vrot.slane %v2931, 3
  %v2960 = vsel %vm116, %v2958, %v2959
  %v2961 = vrot.slane %v2932, 3
  %v2962 = vsel %vm116, %v2959, %v2961
  %2963 = vrot.lane.b32.xlu0 %v2960, 64
  %v2964 = vpop.permute.xlu0 %2963
  %2965 = vrot.lane.b32.xlu0 %v2962, 64
  %v2966 = vpop.permute.xlu0 %2965
  %2967 = vrot.lane.b32.xlu0 %v2961, 64
  %v2968 = vpop.permute.xlu0 %2967
  %v2972 = vrot.slane %v2930, 4
  %v2973 = vrot.slane %v2931, 4
  %v2974 = vsel %vm300, %v2972, %v2973
  %v2975 = vrot.slane %v2932, 4
  %v2976 = vsel %vm300, %v2973, %v2975
  %v2980 = vrot.slane %v2930, 5
  %v2981 = vrot.slane %v2931, 5
  %v2982 = vsel %vm311, %v2980, %v2981
  %v2983 = vrot.slane %v2932, 5
  %v2984 = vsel %vm311, %v2981, %v2983
  %2985 = vrot.lane.b32.xlu0 %v2982, 64
  %v2986 = vpop.permute.xlu0 %2985
  %2987 = vrot.lane.b32.xlu0 %v2984, 64
  %v2988 = vpop.permute.xlu0 %2987
  %2989 = vrot.lane.b32.xlu0 %v2983, 64
  %v2990 = vpop.permute.xlu0 %2989
  %v2994 = vrot.slane %v2930, 6
  %v2995 = vrot.slane %v2931, 6
  %v2996 = vsel %vm328, %v2994, %v2995
  %v2997 = vrot.slane %v2932, 6
  %v2998 = vsel %vm328, %v2995, %v2997
  %v3002 = vrot.slane %v2930, 7
  %v3003 = vrot.slane %v2931, 7
  %v3004 = vsel %vm345, %v3002, %v3003
  %v3005 = vrot.slane %v2932, 7
  %v3006 = vsel %vm345, %v3003, %v3005
  %3007 = vrot.lane.b32.xlu0 %v3004, 64
  %v3008 = vpop.permute.xlu0 %3007
  %3009 = vrot.lane.b32.xlu0 %v3006, 64
  %v3010 = vpop.permute.xlu0 %3009
  %3011 = vrot.lane.b32.xlu0 %v3005, 64
  %v3012 = vpop.permute.xlu0 %3011
  %v3016 = vsel %vm192, %v2930, %v2942
  %v3017 = vsel %vm192, %v2931, %v2944
  %v3018 = vsel %vm192, %v2932, %v2946
  %v3019 = vsel %vm192, %v2952, %v2964
  %v3020 = vsel %vm192, %v2954, %v2966
  %v3021 = vsel %vm192, %v2953, %v2968
  %v3022 = vsel %vm192, %v2974, %v2986
  %v3023 = vsel %vm192, %v2976, %v2988
  %v3024 = vsel %vm192, %v2975, %v2990
  %v3025 = vsel %vm192, %v2996, %v3008
  %v3026 = vsel %vm192, %v2998, %v3010
  %v3027 = vsel %vm192, %v2997, %v3012
  %v3028 = vpack.c.bf16 %v3017, %v3016
  %v3029 = vpack.c.bf16 %v3020, %v3019
  %v3030 = vpack.c.bf16 %v3023, %v3022
  %v3031 = vpack.c.bf16 %v3026, %v3025
  %v3032 = vpack.c.bf16 %v3018, %v3018
  %v3033 = vpack.c.bf16 %v3021, %v3021
  %v3034 = vpack.c.bf16 %v3024, %v3024
  %v3035 = vpack.c.bf16 %v3027, %v3027
  %3036 = vmatprep.subr.bf16.mxu0 0
  %3037 = vmatpush1.bf16.msra.mxu0 %v1921
  %3038 = vmatprep.subr.bf16.mxu0 0
  %3039 = vmatpush1.bf16.msra.mxu0 %v1922
  %3040 = vmatprep.subr.bf16.mxu0 0
  %3041 = vmatpush1.bf16.msra.mxu0 %v1923
  %3042 = vmatprep.subr.bf16.mxu0 0
  %3043 = vmatpush1.bf16.msra.mxu0 %v1924
  %3044 = vmatprep.subr.bf16.mxu0 0
  %3045 = vmatpush1.bf16.msra.mxu0 %v1925
  %3046 = vmatprep.subr.bf16.mxu0 0
  %3047 = vmatpush1.bf16.msra.mxu0 %v1926
  %3048 = vmatprep.subr.bf16.mxu0 0
  %3049 = vmatpush1.bf16.msra.mxu0 %v1927
  %3050 = vmatprep.subr.bf16.mxu0 0
  %3051 = vmatpush1.bf16.msra.mxu0 %v1928
  %3052 = vmatprep.subr.bf16.mxu0 0
  %3053 = vmatpush1.bf16.msra.mxu0 %v1929
  %3054 = vmatprep.subr.bf16.mxu0 0
  %3055 = vmatpush1.bf16.msra.mxu0 %v1930
  %3056 = vmatprep.subr.bf16.mxu0 0
  %3057 = vmatpush1.bf16.msra.mxu0 %v1931
  %3058 = vmatprep.subr.bf16.mxu0 0
  %3059 = vmatpush1.bf16.msra.mxu0 %v1932
  %3060 = vmatprep.subr.bf16.mxu0 0
  %3061 = vmatpush1.bf16.msra.mxu0 %v1933
  %3062 = vmatprep.subr.bf16.mxu0 0
  %3063 = vmatpush1.bf16.msra.mxu0 %v1934
  %3064 = vmatprep.subr.bf16.mxu0 0
  %3065 = vmatpush1.bf16.msra.mxu0 %v1935
  %3066 = vmatprep.subr.bf16.mxu0 0
  %3067 = vmatpush1.bf16.msra.mxu0 %v1936
  %3068 = vmatprep.mubr.bf16.mxu0 %v3029
  %3069 = vmatmul.mubr.bf16.gmra.mrb[0].mxu0 %v3028
  %v3070 = vpop.f32.mrb[0].mxu0
  %v3071 = vadd.f32 %v1791, %v3070
  %v3072 = vpop.f32.mrb[0].mxu0
  %v3073 = vpop.f32.mrb[0].mxu0
  %v3074 = vadd.f32 %v1791, %v3073
  %v3075 = vpop.f32.mrb[0].mxu0
  %3076 = vmatprep.mubr.bf16.mxu0 %v3033
  %3077 = vmatmul.mubr.bf16.gmra.mrb[0].mxu0 %v3032
  %v3078 = vpop.f32.mrb[0].mxu0
  %v3079 = vadd.f32 %v1791, %v3078
  %v3080 = vpop.f32.mrb[0].mxu0
  %v3081 = vpop.f32.mrb[0].mxu0
  %v3082 = vpop.f32.mrb[0].mxu0
  %3083 = vdwg.mxu0
  %3084 = vmatprep.subr.bf16.mxu0 0
  %3085 = vmatpush1.bf16.msra.mxu0 %v1937
  %3086 = vmatprep.subr.bf16.mxu0 0
  %3087 = vmatpush1.bf16.msra.mxu0 %v1938
  %3088 = vmatprep.subr.bf16.mxu0 0
  %3089 = vmatpush1.bf16.msra.mxu0 %v1939
  %3090 = vmatprep.subr.bf16.mxu0 0
  %3091 = vmatpush1.bf16.msra.mxu0 %v1940
  %3092 = vmatprep.subr.bf16.mxu0 0
  %3093 = vmatpush1.bf16.msra.mxu0 %v1941
  %3094 = vmatprep.subr.bf16.mxu0 0
  %3095 = vmatpush1.bf16.msra.mxu0 %v1942
  %3096 = vmatprep.subr.bf16.mxu0 0
  %3097 = vmatpush1.bf16.msra.mxu0 %v1943
  %3098 = vmatprep.subr.bf16.mxu0 0
  %3099 = vmatpush1.bf16.msra.mxu0 %v1944
  %3100 = vmatprep.subr.bf16.mxu0 0
  %3101 = vmatpush1.bf16.msra.mxu0 %v1945
  %3102 = vmatprep.subr.bf16.mxu0 0
  %3103 = vmatpush1.bf16.msra.mxu0 %v1946
  %3104 = vmatprep.subr.bf16.mxu0 0
  %3105 = vmatpush1.bf16.msra.mxu0 %v1947
  %3106 = vmatprep.subr.bf16.mxu0 0
  %3107 = vmatpush1.bf16.msra.mxu0 %v1948
  %3108 = vmatprep.subr.bf16.mxu0 0
  %3109 = vmatpush1.bf16.msra.mxu0 %v1949
  %3110 = vmatprep.subr.bf16.mxu0 0
  %3111 = vmatpush1.bf16.msra.mxu0 %v1950
  %3112 = vmatprep.subr.bf16.mxu0 0
  %3113 = vmatpush1.bf16.msra.mxu0 %v1951
  %3114 = vmatprep.subr.bf16.mxu0 0
  %3115 = vmatpush1.bf16.msra.mxu0 %v1952
  %3116 = vmatprep.mubr.bf16.mxu0 %v3031
  %3117 = vmatmul.mubr.bf16.gmra.mrb[0].mxu0 %v3030
  %v3118 = vpop.f32.mrb[0].mxu0
  %v3119 = vadd.f32 %v3071, %v3118
  %v3120 = vpop.f32.mrb[0].mxu0
  %v3121 = vpop.f32.mrb[0].mxu0
  %v3122 = vadd.f32 %v3074, %v3121
  %v3123 = vpop.f32.mrb[0].mxu0
  %3124 = vmatprep.mubr.bf16.mxu0 %v3035
  %3125 = vmatmul.mubr.bf16.gmra.mrb[0].mxu0 %v3034
  %v3126 = vpop.f32.mrb[0].mxu0
  %v3127 = vadd.f32 %v3079, %v3126
  %v3128 = vpop.f32.mrb[0].mxu0
  %v3129 = vpop.f32.mrb[0].mxu0
  %v3130 = vpop.f32.mrb[0].mxu0
  %3131 = vdwg.mxu0
  %v3132 = vmax.f32 %v3119, 0.0
  %v3133 = vmax.f32 %v3122, 0.0
  %v3134 = vmax.f32 %v3127, 0.0
  %v3135 = vadd.f32 %v3132, %v3133
  %v3136 = vsel %vm345, %v3134, 0.0
  %v3137 = vadd.f32 %v3135, %v3136
  %v3138 = vrot.slane %v3137, 4
  %v3139 = vadd.f32 %v3137, %v3138
  %v3140 = vrot.slane %v3139, 2
  %v3141 = vadd.f32 %v3139, %v3140
  %v3142 = vrot.slane %v3141, 1
  %v3143 = vadd.f32 %v3141, %v3142
  %v3144 = vmul.f32 %v3143, %v2093
  %v3147 = vrot.slane %v2642, 7
  %v3148 = vrot.slane %v3144, 7
  %v3151 = vsel %vm345, %v1192, %v3147
  %v3152 = vsel %vm345, %v2094, %v3148
  %v3153 = vpack.c.bf16 %v3151, %v3151
  %v3154 = vpack.c.bf16 %v3152, %v3152
  %v3155 = vld [vmem:[%s14] sm:$0xff]
  %v3156 = vld [vmem:[%s14 + $0x8] sm:$0xff]
  %v3157 = vld [vmem:[%s14 + $0x10] sm:$0xff]
  %v3158 = vld [vmem:[%s14 + $0x18] sm:$0xff]
  %v3159 = vld [vmem:[%s14 + $0x20] sm:$0xff]
  %v3160 = vld [vmem:[%s14 + $0x28] sm:$0xff]
  %v3161 = vld [vmem:[%s14 + $0x30] sm:$0xff]
  %v3162 = vld [vmem:[%s14 + $0x38] sm:$0xff]
  %v3163 = vld [vmem:[%s14 + $0x40] sm:$0xff]
  %v3164 = vld [vmem:[%s14 + $0x48] sm:$0xff]
  %v3165 = vld [vmem:[%s14 + $0x50] sm:$0xff]
  %v3166 = vld [vmem:[%s14 + $0x58] sm:$0xff]
  %v3167 = vld [vmem:[%s14 + $0x60] sm:$0xff]
  %v3168 = vld [vmem:[%s14 + $0x68] sm:$0xff]
  %v3169 = vld [vmem:[%s14 + $0x70] sm:$0xff]
  %v3170 = vld [vmem:[%s14 + $0x78] sm:$0xff]
  %v3171 = vld [vmem:[%s14 + $0x80] sm:$0xff]
  %v3172 = vld [vmem:[%s14 + $0x88] sm:$0xff]
  %v3173 = vld [vmem:[%s14 + $0x90] sm:$0xff]
  %v3174 = vld [vmem:[%s14 + $0x98] sm:$0xff]
  %v3175 = vld [vmem:[%s14 + $0xa0] sm:$0xff]
  %v3176 = vld [vmem:[%s14 + $0xa8] sm:$0xff]
  %v3177 = vld [vmem:[%s14 + $0xb0] sm:$0xff]
  %v3178 = vld [vmem:[%s14 + $0xb8] sm:$0xff]
  %v3179 = vld [vmem:[%s14 + $0xc0] sm:$0xff]
  %v3180 = vld [vmem:[%s14 + $0xc8] sm:$0xff]
  %v3181 = vld [vmem:[%s14 + $0xd0] sm:$0xff]
  %v3182 = vld [vmem:[%s14 + $0xd8] sm:$0xff]
  %v3183 = vld [vmem:[%s14 + $0xe0] sm:$0xff]
  %v3184 = vld [vmem:[%s14 + $0xe8] sm:$0xff]
  %v3185 = vld [vmem:[%s14 + $0xf0] sm:$0xff]
  %v3186 = vld [vmem:[%s14 + $0xf8] sm:$0xff]
  %v3187 = vld [vmem:[%s15] sm:$0x3]
  %v3189 = vlaneseq
  %v3190 = vshrl.u32 %v3189, 7
  %v3191 = vsub.s32 0, %v3190
  %v3192 = vrot.slane %v3187, %v3191
  %v3193 = vlaneseq
  %v3194 = vshrl.u32 %v3193, 7
  %v3195 = vsub.s32 1, %v3194
  %v3196 = vrot.slane %v3187, %v3195
  %v3231 = vunpack.c.l.b16 %v3155
  %v3232 = vunpack.c.h.b16 %v3155
  %v3233 = vunpack.c.l.b16 %v3156
  %v3234 = vunpack.c.h.b16 %v3156
  %v3235 = vunpack.c.l.b16 %v3157
  %v3236 = vunpack.c.h.b16 %v3157
  %v3237 = vunpack.c.l.b16 %v3158
  %v3238 = vunpack.c.h.b16 %v3158
  %v3239 = vunpack.c.l.b16 %v3159
  %v3240 = vunpack.c.h.b16 %v3159
  %v3241 = vunpack.c.l.b16 %v3160
  %v3242 = vunpack.c.h.b16 %v3160
  %v3243 = vunpack.c.l.b16 %v3161
  %v3244 = vunpack.c.h.b16 %v3161
  %v3245 = vunpack.c.l.b16 %v3162
  %v3246 = vunpack.c.h.b16 %v3162
  %v3247 = vunpack.c.l.b16 %v3163
  %v3248 = vunpack.c.h.b16 %v3163
  %v3249 = vunpack.c.l.b16 %v3164
  %v3250 = vunpack.c.h.b16 %v3164
  %v3251 = vunpack.c.l.b16 %v3165
  %v3252 = vunpack.c.h.b16 %v3165
  %v3253 = vunpack.c.l.b16 %v3166
  %v3254 = vunpack.c.h.b16 %v3166
  %v3255 = vunpack.c.l.b16 %v3167
  %v3256 = vunpack.c.h.b16 %v3167
  %v3257 = vunpack.c.l.b16 %v3168
  %v3258 = vunpack.c.h.b16 %v3168
  %v3259 = vunpack.c.l.b16 %v3169
  %v3260 = vunpack.c.h.b16 %v3169
  %v3261 = vunpack.c.l.b16 %v3170
  %v3262 = vunpack.c.h.b16 %v3170
  %v3263 = vunpack.c.l.b16 %v3171
  %v3264 = vunpack.c.h.b16 %v3171
  %v3265 = vunpack.c.l.b16 %v3172
  %v3266 = vunpack.c.h.b16 %v3172
  %v3267 = vunpack.c.l.b16 %v3173
  %v3268 = vunpack.c.h.b16 %v3173
  %v3269 = vunpack.c.l.b16 %v3174
  %v3270 = vunpack.c.h.b16 %v3174
  %v3271 = vunpack.c.l.b16 %v3175
  %v3272 = vunpack.c.h.b16 %v3175
  %v3273 = vunpack.c.l.b16 %v3176
  %v3274 = vunpack.c.h.b16 %v3176
  %v3275 = vunpack.c.l.b16 %v3177
  %v3276 = vunpack.c.h.b16 %v3177
  %v3277 = vunpack.c.l.b16 %v3178
  %v3278 = vunpack.c.h.b16 %v3178
  %v3279 = vunpack.c.l.b16 %v3179
  %v3280 = vunpack.c.h.b16 %v3179
  %v3281 = vunpack.c.l.b16 %v3180
  %v3282 = vunpack.c.h.b16 %v3180
  %v3283 = vunpack.c.l.b16 %v3181
  %v3284 = vunpack.c.h.b16 %v3181
  %v3285 = vunpack.c.l.b16 %v3182
  %v3286 = vunpack.c.h.b16 %v3182
  %v3287 = vunpack.c.l.b16 %v3183
  %v3288 = vunpack.c.h.b16 %v3183
  %v3289 = vunpack.c.l.b16 %v3184
  %v3290 = vunpack.c.h.b16 %v3184
  %v3291 = vunpack.c.l.b16 %v3185
  %v3292 = vunpack.c.h.b16 %v3185
  %v3293 = vunpack.c.l.b16 %v3186
  %v3294 = vunpack.c.h.b16 %v3186
  %v3295 = vpack.c.b16 %v3233, %v3231
  %v3296 = vpack.c.b16 %v3234, %v3232
  %v3297 = vpack.c.b16 %v3237, %v3235
  %v3298 = vpack.c.b16 %v3238, %v3236
  %v3299 = vpack.c.b16 %v3241, %v3239
  %v3300 = vpack.c.b16 %v3242, %v3240
  %v3301 = vpack.c.b16 %v3245, %v3243
  %v3302 = vpack.c.b16 %v3246, %v3244
  %v3303 = vpack.c.b16 %v3249, %v3247
  %v3304 = vpack.c.b16 %v3250, %v3248
  %v3305 = vpack.c.b16 %v3253, %v3251
  %v3306 = vpack.c.b16 %v3254, %v3252
  %v3307 = vpack.c.b16 %v3257, %v3255
  %v3308 = vpack.c.b16 %v3258, %v3256
  %v3309 = vpack.c.b16 %v3261, %v3259
  %v3310 = vpack.c.b16 %v3262, %v3260
  %v3311 = vpack.c.b16 %v3265, %v3263
  %v3312 = vpack.c.b16 %v3266, %v3264
  %v3313 = vpack.c.b16 %v3269, %v3267
  %v3314 = vpack.c.b16 %v3270, %v3268
  %v3315 = vpack.c.b16 %v3273, %v3271
  %v3316 = vpack.c.b16 %v3274, %v3272
  %v3317 = vpack.c.b16 %v3277, %v3275
  %v3318 = vpack.c.b16 %v3278, %v3276
  %v3319 = vpack.c.b16 %v3281, %v3279
  %v3320 = vpack.c.b16 %v3282, %v3280
  %v3321 = vpack.c.b16 %v3285, %v3283
  %v3322 = vpack.c.b16 %v3286, %v3284
  %v3323 = vpack.c.b16 %v3289, %v3287
  %v3324 = vpack.c.b16 %v3290, %v3288
  %v3325 = vpack.c.b16 %v3293, %v3291
  %v3326 = vpack.c.b16 %v3294, %v3292
  %3359 = vmatprep.subr.bf16.mxu0 %v3296
  %3360 = vmatpush1.bf16.msra.mxu0 %v3295
  %3361 = vmatprep.subr.bf16.mxu0 %v3298
  %3362 = vmatpush1.bf16.msra.mxu0 %v3297
  %3363 = vmatprep.subr.bf16.mxu0 %v3300
  %3364 = vmatpush1.bf16.msra.mxu0 %v3299
  %3365 = vmatprep.subr.bf16.mxu0 %v3302
  %3366 = vmatpush1.bf16.msra.mxu0 %v3301
  %3367 = vmatprep.subr.bf16.mxu0 %v3304
  %3368 = vmatpush1.bf16.msra.mxu0 %v3303
  %3369 = vmatprep.subr.bf16.mxu0 %v3306
  %3370 = vmatpush1.bf16.msra.mxu0 %v3305
  %3371 = vmatprep.subr.bf16.mxu0 %v3308
  %3372 = vmatpush1.bf16.msra.mxu0 %v3307
  %3373 = vmatprep.subr.bf16.mxu0 %v3310
  %3374 = vmatpush1.bf16.msra.mxu0 %v3309
  %3375 = vmatprep.subr.bf16.mxu0 %v3312
  %3376 = vmatpush1.bf16.msra.mxu0 %v3311
  %3377 = vmatprep.subr.bf16.mxu0 %v3314
  %3378 = vmatpush1.bf16.msra.mxu0 %v3313
  %3379 = vmatprep.subr.bf16.mxu0 %v3316
  %3380 = vmatpush1.bf16.msra.mxu0 %v3315
  %3381 = vmatprep.subr.bf16.mxu0 %v3318
  %3382 = vmatpush1.bf16.msra.mxu0 %v3317
  %3383 = vmatprep.subr.bf16.mxu0 %v3320
  %3384 = vmatpush1.bf16.msra.mxu0 %v3319
  %3385 = vmatprep.subr.bf16.mxu0 %v3322
  %3386 = vmatpush1.bf16.msra.mxu0 %v3321
  %3387 = vmatprep.subr.bf16.mxu0 %v3324
  %3388 = vmatpush1.bf16.msra.mxu0 %v3323
  %3389 = vmatprep.subr.bf16.mxu0 %v3326
  %3390 = vmatpush1.bf16.msra.mxu0 %v3325
  %3391 = vmatprep.mubr.bf16.mxu0 %v3154
  %3392 = vmatmul.mubr.bf16.gmra.mrb[0].mxu0 %v3153
  %v3393 = vpop.f32.mrb[0].mxu0
  %v3394 = vadd.f32 %v3192, %v3393
  %v3395 = vpop.f32.mrb[0].mxu0
  %v3396 = vadd.f32 %v3196, %v3395
  %v3397 = vpop.f32.mrb[0].mxu0
  %v3398 = vpop.f32.mrb[0].mxu0
  %3399 = vdwg.mxu0
  %v3400 = vmax.f32 %v3394, 0.0
  %v3401 = vmax.f32 %v3396, 0.0
  %v3402 = vpack.c.bf16 %v3400, %v3400
  %v3403 = vpack.c.bf16 %v3401, %v3401
  %v3404 = vld [vmem:[%s16] sm:$0xf]
  %v3405 = vld [vmem:[%s16 + $0x4] sm:$0xf]
  %v3406 = vld [vmem:[%s16 + $0x8] sm:$0xf]
  %v3407 = vld [vmem:[%s16 + $0xc] sm:$0xf]
  %v3408 = vld [vmem:[%s16 + $0x10] sm:$0xf]
  %v3409 = vld [vmem:[%s16 + $0x14] sm:$0xf]
  %v3410 = vld [vmem:[%s16 + $0x18] sm:$0xf]
  %v3411 = vld [vmem:[%s16 + $0x1c] sm:$0xf]
  %v3412 = vld [vmem:[%s16 + $0x20] sm:$0xf]
  %v3413 = vld [vmem:[%s16 + $0x24] sm:$0xf]
  %v3414 = vld [vmem:[%s16 + $0x28] sm:$0xf]
  %v3415 = vld [vmem:[%s16 + $0x2c] sm:$0xf]
  %v3416 = vld [vmem:[%s16 + $0x30] sm:$0xf]
  %v3417 = vld [vmem:[%s16 + $0x34] sm:$0xf]
  %v3418 = vld [vmem:[%s16 + $0x38] sm:$0xf]
  %v3419 = vld [vmem:[%s16 + $0x3c] sm:$0xf]
  %v3420 = vld [vmem:[%s16 + $0x40] sm:$0xf]
  %v3421 = vld [vmem:[%s16 + $0x44] sm:$0xf]
  %v3422 = vld [vmem:[%s16 + $0x48] sm:$0xf]
  %v3423 = vld [vmem:[%s16 + $0x4c] sm:$0xf]
  %v3424 = vld [vmem:[%s16 + $0x50] sm:$0xf]
  %v3425 = vld [vmem:[%s16 + $0x54] sm:$0xf]
  %v3426 = vld [vmem:[%s16 + $0x58] sm:$0xf]
  %v3427 = vld [vmem:[%s16 + $0x5c] sm:$0xf]
  %v3428 = vld [vmem:[%s16 + $0x60] sm:$0xf]
  %v3429 = vld [vmem:[%s16 + $0x64] sm:$0xf]
  %v3430 = vld [vmem:[%s16 + $0x68] sm:$0xf]
  %v3431 = vld [vmem:[%s16 + $0x6c] sm:$0xf]
  %v3432 = vld [vmem:[%s16 + $0x70] sm:$0xf]
  %v3433 = vld [vmem:[%s16 + $0x74] sm:$0xf]
  %v3434 = vld [vmem:[%s16 + $0x78] sm:$0xf]
  %v3435 = vld [vmem:[%s16 + $0x7c] sm:$0xf]
  %v3436 = vld [vmem:[%s17] sm:$0x1]
  %v3438 = vlaneseq
  %v3439 = vshrl.u32 %v3438, 7
  %v3440 = vsub.s32 0, %v3439
  %v3441 = vrot.slane %v3436, %v3440
  %v3475 = vunpack.c.l.b16 %v3404
  %v3476 = vunpack.c.l.b16 %v3405
  %v3477 = vunpack.c.l.b16 %v3406
  %v3478 = vunpack.c.l.b16 %v3407
  %v3479 = vunpack.c.l.b16 %v3408
  %v3480 = vunpack.c.l.b16 %v3409
  %v3481 = vunpack.c.l.b16 %v3410
  %v3482 = vunpack.c.l.b16 %v3411
  %v3483 = vunpack.c.l.b16 %v3412
  %v3484 = vunpack.c.l.b16 %v3413
  %v3485 = vunpack.c.l.b16 %v3414
  %v3486 = vunpack.c.l.b16 %v3415
  %v3487 = vunpack.c.l.b16 %v3416
  %v3488 = vunpack.c.l.b16 %v3417
  %v3489 = vunpack.c.l.b16 %v3418
  %v3490 = vunpack.c.l.b16 %v3419
  %v3491 = vunpack.c.l.b16 %v3420
  %v3492 = vunpack.c.l.b16 %v3421
  %v3493 = vunpack.c.l.b16 %v3422
  %v3494 = vunpack.c.l.b16 %v3423
  %v3495 = vunpack.c.l.b16 %v3424
  %v3496 = vunpack.c.l.b16 %v3425
  %v3497 = vunpack.c.l.b16 %v3426
  %v3498 = vunpack.c.l.b16 %v3427
  %v3499 = vunpack.c.l.b16 %v3428
  %v3500 = vunpack.c.l.b16 %v3429
  %v3501 = vunpack.c.l.b16 %v3430
  %v3502 = vunpack.c.l.b16 %v3431
  %v3503 = vunpack.c.l.b16 %v3432
  %v3504 = vunpack.c.l.b16 %v3433
  %v3505 = vunpack.c.l.b16 %v3434
  %v3506 = vunpack.c.l.b16 %v3435
  %v3507 = vpack.c.b16 %v3476, %v3475
  %v3508 = vpack.c.b16 %v3478, %v3477
  %v3509 = vpack.c.b16 %v3480, %v3479
  %v3510 = vpack.c.b16 %v3482, %v3481
  %v3511 = vpack.c.b16 %v3484, %v3483
  %v3512 = vpack.c.b16 %v3486, %v3485
  %v3513 = vpack.c.b16 %v3488, %v3487
  %v3514 = vpack.c.b16 %v3490, %v3489
  %v3515 = vpack.c.b16 %v3492, %v3491
  %v3516 = vpack.c.b16 %v3494, %v3493
  %v3517 = vpack.c.b16 %v3496, %v3495
  %v3518 = vpack.c.b16 %v3498, %v3497
  %v3519 = vpack.c.b16 %v3500, %v3499
  %v3520 = vpack.c.b16 %v3502, %v3501
  %v3521 = vpack.c.b16 %v3504, %v3503
  %v3522 = vpack.c.b16 %v3506, %v3505
  %3539 = vmatprep.subr.bf16.mxu0 0
  %3540 = vmatpush1.bf16.msra.mxu0 %v3507
  %3541 = vmatprep.subr.bf16.mxu0 0
  %3542 = vmatpush1.bf16.msra.mxu0 %v3508
  %3543 = vmatprep.subr.bf16.mxu0 0
  %3544 = vmatpush1.bf16.msra.mxu0 %v3509
  %3545 = vmatprep.subr.bf16.mxu0 0
  %3546 = vmatpush1.bf16.msra.mxu0 %v3510
  %3547 = vmatprep.subr.bf16.mxu0 0
  %3548 = vmatpush1.bf16.msra.mxu0 %v3511
  %3549 = vmatprep.subr.bf16.mxu0 0
  %3550 = vmatpush1.bf16.msra.mxu0 %v3512
  %3551 = vmatprep.subr.bf16.mxu0 0
  %3552 = vmatpush1.bf16.msra.mxu0 %v3513
  %3553 = vmatprep.subr.bf16.mxu0 0
  %3554 = vmatpush1.bf16.msra.mxu0 %v3514
  %3555 = vmatprep.subr.bf16.mxu0 0
  %3556 = vmatpush1.bf16.msra.mxu0 %v3515
  %3557 = vmatprep.subr.bf16.mxu0 0
  %3558 = vmatpush1.bf16.msra.mxu0 %v3516
  %3559 = vmatprep.subr.bf16.mxu0 0
  %3560 = vmatpush1.bf16.msra.mxu0 %v3517
  %3561 = vmatprep.subr.bf16.mxu0 0
  %3562 = vmatpush1.bf16.msra.mxu0 %v3518
  %3563 = vmatprep.subr.bf16.mxu0 0
  %3564 = vmatpush1.bf16.msra.mxu0 %v3519
  %3565 = vmatprep.subr.bf16.mxu0 0
  %3566 = vmatpush1.bf16.msra.mxu0 %v3520
  %3567 = vmatprep.subr.bf16.mxu0 0
  %3568 = vmatpush1.bf16.msra.mxu0 %v3521
  %3569 = vmatprep.subr.bf16.mxu0 0
  %3570 = vmatpush1.bf16.msra.mxu0 %v3522
  %3571 = vmatprep.mubr.bf16.mxu0 %v3403
  %3572 = vmatmul.mubr.bf16.gmra.mrb[0].mxu0 %v3402
  %v3573 = vpop.f32.mrb[0].mxu0
  %v3574 = vadd.f32 %v3441, %v3573
  %v3575 = vpop.f32.mrb[0].mxu0
  %v3576 = vpop.f32.mrb[0].mxu0
  %v3577 = vpop.f32.mrb[0].mxu0
  %3578 = vdwg.mxu0
  %v3579 = vmax.f32 %v3574, 0.0
  %v3580 = vld [vmem:[%s18] sm:$0x1]
  %v3582 = vlaneseq
  %v3583 = vshrl.u32 %v3582, 7
  %v3584 = vsub.s32 0, %v3583
  %v3585 = vrot.slane %v3580, %v3584
  %v3587 = vmul.f32 %v3579, %v3585
  %v3588 = vsel %vm328, %v3587, 0.0
  %3589 = vadd.xlane.f32.xlu0 %v3588
  %v3590 = vpop.xlane.xlu0 %3589
  %v3591 = vld [vmem:[#allocation2] sm:$0x1]
  %v3593 = vlaneseq
  %v3594 = vshrl.u32 %v3593, 7
  %v3595 = vsub.s32 0, %v3594
  %v3596 = vrot.slane %v3591, %v3595
  %v3598 = vadd.f32 %v3590, %v3596
  %vm3599 = vcmask 1024
  %3600 = vst.msk [vmem:[%s20] sm:$0x3] %vm3599, %v3598
  // Predicated region
  $region82: #{affinity_predict.1} parent=0 // pred_check
    _
  $region83: #{affinity_predict.1} parent=0 // pred_check_branch
    %3602 = sbr.rel (0) target = $region85
  $region84: #{affinity_predict.1} parent=0 // pred_region
    _
  $region85: #{affinity_predict.1} parent=0 // pred_fallthru
    _
  // Predicated region
  $region86: #{affinity_predict.1} parent=0 // pred_check
    _
  $region87: #{affinity_predict.1} parent=0 // pred_check_branch
    %3604 = sbr.rel (0) target = $region89
  $region88: #{affinity_predict.1} parent=0 // pred_region
    _
  $region89: #{affinity_predict.1} parent=0 // pred_fallthru
    _

</llo_original>
